<compile_context>
chip_gen: v5e
topology: v5e:2x2
jax: 0.10.0
libtpu: 0.0.40
codegen_flags: <defaults>
</compile_context>

<pallas_src>
import functools

import jax
import jax.numpy as jnp
from jax import lax
from jax.experimental import pallas as pl
from jax.experimental.pallas import tpu as pltpu

LEAKY_SLOPE = 0.2
BN_EPS = 1e-5
LANE = 128
VMEM_LIMIT = 32 * 1024 * 1024


def _round_up(x, m):
    return (x + m - 1) // m * m


# ------------------------------ Pallas kernels --------------------------------


def _conv_leaky_kernel(a_ref, w_ref, o_ref):
    # (M, K) bf16 @ (K, OCp) bf16 -> f32 accumulate, LeakyReLU(0.2), bf16 store.
    y = jnp.dot(a_ref[...], w_ref[...], preferred_element_type=jnp.float32)
    o_ref[...] = jnp.where(y >= 0.0, y, LEAKY_SLOPE * y).astype(o_ref.dtype)


def _bn_leaky(y, g, b, inv_m):
    # One-pass training-mode BatchNorm (biased batch variance, like PyTorch's
    # normalization) + LeakyReLU(0.2).  No (M, OCp) `centered` temporary.
    mean = jnp.sum(y, axis=0, keepdims=True) * inv_m
    var = jnp.sum(y * y, axis=0, keepdims=True) * inv_m - mean * mean
    scale = g * lax.rsqrt(var + BN_EPS)
    shift = b - mean * scale
    z = y * scale + shift
    return jnp.where(z >= 0.0, z, LEAKY_SLOPE * z)


def _conv_bn_leaky_kernel(a_ref, w_ref, g_ref, b_ref, o_ref, *, inv_m):
    y = jnp.dot(a_ref[...], w_ref[...], preferred_element_type=jnp.float32)
    z = _bn_leaky(y, g_ref[...], b_ref[...], inv_m)
    o_ref[...] = z.astype(o_ref.dtype)


def _conv_bn_leaky_head_kernel(a_ref, w_ref, g_ref, b_ref, w5_ref, s_ref,
                               o_ref, *, inv_m):
    # Layer 4 (conv + BN + LeakyReLU) with layer 5 (4x4 valid conv to one
    # channel + Sigmoid) folded into the epilogue.
    y = jnp.dot(a_ref[...], w_ref[...], preferred_element_type=jnp.float32)
    z = _bn_leaky(y, g_ref[...], b_ref[...], inv_m)            # (M4, OCp) f32
    t = z * w5_ref[...]                                        # tap weighting
    per_sample = jnp.dot(s_ref[...], t,
                         preferred_element_type=jnp.float32)   # (N, OCp)
    logits = jnp.sum(per_sample, axis=1, keepdims=True)        # (N, 1)
    o_ref[...] = 1.0 / (1.0 + jnp.exp(-logits))


# ---------------------------- pallas_call wrapper ------------------------------


def _run_whole_block(kernel, args, out_rows, out_cols, out_dtype):
    # Whole-M, lane-dense blocks; single grid step (BN stats need all rows and
    # the problem is tiny/latency-bound, so no M split).
    return pl.pallas_call(
        kernel,
        out_shape=jax.ShapeDtypeStruct((out_rows, out_cols), out_dtype),
        grid_spec=pltpu.PrefetchScalarGridSpec(
            num_scalar_prefetch=0,
            grid=(1,),
            in_specs=[pl.BlockSpec(a.shape, lambda i: (0, 0)) for a in args],
            out_specs=pl.BlockSpec((out_rows, out_cols), lambda i: (0, 0)),
        ),
        compiler_params=pltpu.CompilerParams(
            dimension_semantics=("arbitrary",),
            vmem_limit_bytes=VMEM_LIMIT,
        ),
    )(*args)


# --------------------------------- XLA glue ------------------------------------


def _im2col_nhwc(x, ksize, stride, padding):
    # x: (N, H, W, C) -> (N*OH*OW, KH*KW*C), feature order (kh, kw, c).
    n, h, w, c = x.shape
    oh = (h + 2 * padding - ksize) // stride + 1
    ow = (w + 2 * padding - ksize) // stride + 1
    xp = jnp.pad(x, ((0, 0), (padding, padding), (padding, padding), (0, 0)))
    cols = []
    for i in range(ksize):
        for j in range(ksize):
            cols.append(xp[:, i:i + stride * oh:stride,
                            j:j + stride * ow:stride, :])      # (N, OH, OW, C)
    p = jnp.stack(cols, axis=3)                                # (N,OH,OW,KK,C)
    return p.reshape(n * oh * ow, ksize * ksize * c), (n, oh, ow)


def pack_params(params):
    # One-time weight packing, done OUTSIDE the jitted forward.
    (w1, w2, g2, b2, w3, g3, b3, w4, g4, b4, w5) = params

    def pack_w(w):
        oc, c, kh, kw = w.shape
        k = c * kh * kw
        ocp = _round_up(oc, LANE)
        wm = jnp.transpose(w, (2, 3, 1, 0)).reshape(k, oc)     # (kh, kw, c) rows
        return jnp.pad(wm, ((0, 0), (0, ocp - oc))).astype(jnp.bfloat16), oc

    def pack_bn(g, b, ocp):
        oc = g.shape[0]
        gp = jnp.pad(g, (0, ocp - oc)).reshape(1, ocp).astype(jnp.float32)
        bp = jnp.pad(b, (0, ocp - oc)).reshape(1, ocp).astype(jnp.float32)
        return gp, bp

    wp1, oc1 = pack_w(w1)
    wp2, oc2 = pack_w(w2)
    wp3, oc3 = pack_w(w3)
    wp4, _ = pack_w(w4)
    gp2, bp2 = pack_bn(g2, b2, wp2.shape[1])
    gp3, bp3 = pack_bn(g3, b3, wp3.shape[1])
    gp4, bp4 = pack_bn(g4, b4, wp4.shape[1])

    # Final 4x4 valid conv to one channel: (1, C5, 4, 4) -> (16, C5p) f32,
    # row index = kh*KW + kw matching the (oh, ow) row order of layer 4.
    _, c5, kh5, kw5 = w5.shape
    c5p = _round_up(c5, LANE)
    w5m = jnp.transpose(w5, (2, 3, 1, 0)).reshape(kh5 * kw5, c5)
    w5m = jnp.pad(w5m, ((0, 0), (0, c5p - c5))).astype(jnp.float32)

    return dict(w1=wp1, oc1=oc1, w2=wp2, g2=gp2, b2=bp2, oc2=oc2,
                w3=wp3, g3=gp3, b3=bp3, oc3=oc3,
                w4=wp4, g4=gp4, b4=bp4, w5=w5m)


def discriminator_forward(x_nchw, p):
    n = x_nchw.shape[0]
    x = jnp.transpose(x_nchw, (0, 2, 3, 1)).astype(jnp.bfloat16)  # NHWC bf16

    # Layer 1: Conv2d(nc, ndf, 4, 2, 1) + LeakyReLU(0.2)
    a, (_, oh, ow) = _im2col_nhwc(x, 4, 2, 1)
    y = _run_whole_block(_conv_leaky_kernel, (a, p["w1"]),
                         a.shape[0], p["w1"].shape[1], jnp.bfloat16)
    x = y[:, :p["oc1"]].reshape(n, oh, ow, p["oc1"])

    # Layers 2-3: Conv2d(.., 4, 2, 1) + BatchNorm2d + LeakyReLU(0.2)
    for wk, gk, bk, ock in (("w2", "g2", "b2", "oc2"), ("w3", "g3", "b3", "oc3")):
        a, (_, oh, ow) = _im2col_nhwc(x, 4, 2, 1)
        m = a.shape[0]
        kern = functools.partial(_conv_bn_leaky_kernel, inv_m=1.0 / m)
        y = _run_whole_block(kern, (a, p[wk], p[gk], p[bk]),
                             m, p[wk].shape[1], jnp.bfloat16)
        x = y[:, :p[ock]].reshape(n, oh, ow, p[ock])

    # Layer 4 (Conv + BN + LeakyReLU) fused with layer 5 (4x4 valid conv to one
    # channel + Sigmoid).
    a, (_, oh, ow) = _im2col_nhwc(x, 4, 2, 1)
    m = a.shape[0]
    taps = p["w5"].shape[0]
    assert oh * ow == taps, "DCGAN head expects a 4x4 final feature map"
    w5_tiled = jnp.tile(p["w5"], (n, 1))                            # (M4, OCp)
    group = jnp.repeat(jnp.eye(n, dtype=jnp.float32), taps, axis=1)  # (N, M4)
    kern = functools.partial(_conv_bn_leaky_head_kernel, inv_m=1.0 / m)
    out = _run_whole_block(kern, (a, p["w4"], p["g4"], p["b4"], w5_tiled, group),
                           n, 1, jnp.float32)
    return out.reshape(n, 1, 1, 1)                                  # NCHW


# ------------------------------ f32 reference ----------------------------------


def _reference_forward(x, params):
    (w1, w2, g2, b2, w3, g3, b3, w4, g4, b4, w5) = params

    def conv(h, w, stride, pad):
        return lax.conv_general_dilated(
            h, w, (stride, stride), ((pad, pad), (pad, pad)),
            dimension_numbers=("NCHW", "OIHW", "NCHW"))

    def bn(h, g, b):
        mu = jnp.mean(h, axis=(0, 2, 3), keepdims=True)
        var = jnp.mean((h - mu) ** 2, axis=(0, 2, 3), keepdims=True)
        return ((h - mu) * lax.rsqrt(var + BN_EPS) * g.reshape(1, -1, 1, 1)
                + b.reshape(1, -1, 1, 1))

    def lrelu(h):
        return jnp.where(h >= 0, h, LEAKY_SLOPE * h)

    h = lrelu(conv(x, w1, 2, 1))
    h = lrelu(bn(conv(h, w2, 2, 1), g2, b2))
    h = lrelu(bn(conv(h, w3, 2, 1), g3, b3))
    h = lrelu(bn(conv(h, w4, 2, 1), g4, b4))
    return jax.nn.sigmoid(conv(h, w5, 1, 0))


# ----------------------------------- main ---------------------------------------

if __name__ == "__main__":
    key = jax.random.PRNGKey(0)
    ndf, nc = 8, 3            # small ndf; spatial must be 64 for the 4x4 head
    n, h, w = 2, 64, 64
    ks = jax.random.split(key, 6)

    def wn(k, shape):
        return 0.02 * jax.random.normal(k, shape, jnp.float32)

    w1 = wn(ks[0], (ndf, nc, 4, 4))
    w2 = wn(ks[1], (ndf * 2, ndf, 4, 4))
    w3 = wn(ks[2], (ndf * 4, ndf * 2, 4, 4))
    w4 = wn(ks[3], (ndf * 8, ndf * 4, 4, 4))
    w5 = wn(ks[4], (1, ndf * 8, 4, 4))
    g2 = jnp.ones((ndf * 2,), jnp.float32)
    b2 = jnp.zeros((ndf * 2,), jnp.float32)
    g3 = jnp.ones((ndf * 4,), jnp.float32)
    b3 = jnp.zeros((ndf * 4,), jnp.float32)
    g4 = jnp.ones((ndf * 8,), jnp.float32)
    b4 = jnp.zeros((ndf * 8,), jnp.float32)

    x = jax.random.normal(ks[5], (n, nc, h, w), jnp.float32)
    params = (w1, w2, g2, b2, w3, g3, b3, w4, g4, b4, w5)

    packed = pack_params(params)                       # one-time, outside jit
    fwd = jax.jit(lambda inp: discriminator_forward(inp, packed))

    out = jax.block_until_ready(fwd(x))
    assert out.shape == (n, 1, 1, 1), out.shape
    assert bool(jnp.all(jnp.isfinite(out)))
    assert bool(jnp.all((out >= 0) & (out <= 1)))      # sigmoid range

    ref = jax.block_until_ready(jax.jit(_reference_forward)(x, params))
    assert float(jnp.max(jnp.abs(out - ref))) < 5e-2   # bf16 tolerance

    print("KERNEL_OK")
</pallas_src>

<mosaic_0001>
module attributes {stable_mosaic.version = 11 : i64} {
  func.func @_conv_leaky_kernel(%arg0: i32, %arg1: memref<2048x48xbf16, #tpu.memory_space<vmem>>, %arg2: memref<48x128xbf16, #tpu.memory_space<vmem>>, %arg3: memref<2048x128xbf16, #tpu.memory_space<vmem>>) attributes {dimension_semantics = [#tpu.dimension_semantics<arbitrary>], iteration_bounds = array<i64: 1>, scalar_prefetch = 0 : i64, scratch_operands = 0 : i64, tpu.core_type = #tpu.core_type<tc>, window_params = [{pipeline_mode = #tpu.pipeline_mode<synchronous>, transform_indices = @transform_0, window_bounds = array<i64: 2048, 48>}, {pipeline_mode = #tpu.pipeline_mode<synchronous>, transform_indices = @transform_1, window_bounds = array<i64: 48, 128>}, {pipeline_mode = #tpu.pipeline_mode<synchronous>, transform_indices = @transform_2, window_bounds = array<i64: 2048, 128>}]} {
    %c0 = arith.constant 0 : index
    %c0_0 = arith.constant 0 : index
    %0 = vector.load %arg1[%c0, %c0_0] : memref<2048x48xbf16, #tpu.memory_space<vmem>>, vector<2048x48xbf16>
    %c0_1 = arith.constant 0 : index
    %c0_2 = arith.constant 0 : index
    %1 = vector.load %arg2[%c0_1, %c0_2] : memref<48x128xbf16, #tpu.memory_space<vmem>>, vector<48x128xbf16>
    %cst = arith.constant dense<0.000000e+00> : vector<2048x128xf32>
    %2 = tpu.matmul %0, %1, %cst {dimension_numbers = #tpu.dot_dimension_numbers<[1], [0], [0], [1], [0, 0, 1, 1], [], []>} : vector<2048x48xbf16>, vector<48x128xbf16>, vector<2048x128xf32> -> vector<2048x128xf32>
    %cst_3 = arith.constant 0.000000e+00 : f32
    %3 = vector.broadcast %cst_3 : f32 to vector<2048x128xf32>
    %4 = arith.cmpf oge, %2, %3 : vector<2048x128xf32>
    %cst_4 = arith.constant 2.000000e-01 : f32
    %5 = vector.broadcast %cst_4 : f32 to vector<2048x128xf32>
    %6 = arith.mulf %5, %2 : vector<2048x128xf32>
    %7 = arith.select %4, %2, %6 : vector<2048x128xi1>, vector<2048x128xf32>
    %8 = arith.truncf %7 : vector<2048x128xf32> to vector<2048x128xbf16>
    %c0_5 = arith.constant 0 : index
    %c0_6 = arith.constant 0 : index
    %9 = vector.load %arg3[%c0_5, %c0_6] : memref<2048x128xbf16, #tpu.memory_space<vmem>>, vector<2048x128xbf16>
    tpu.vector_store %arg3[%c0_5, %c0_6], %8 {strides = array<i32>} : memref<2048x128xbf16, #tpu.memory_space<vmem>>, vector<2048x128xbf16>,
    return
  }
  func.func @transform_0(%arg0: i32) -> (i32, i32) {
    %c0_i32 = arith.constant 0 : i32
    %c0_i32_0 = arith.constant 0 : i32
    %c0_i32_1 = arith.constant 0 : i32
    return %c0_i32, %c0_i32_0 : i32, i32
  }
  func.func @transform_1(%arg0: i32) -> (i32, i32) {
    %c0_i32 = arith.constant 0 : i32
    %c0_i32_0 = arith.constant 0 : i32
    %c0_i32_1 = arith.constant 0 : i32
    return %c0_i32, %c0_i32_0 : i32, i32
  }
  func.func @transform_2(%arg0: i32) -> (i32, i32) {
    %c0_i32 = arith.constant 0 : i32
    %c0_i32_0 = arith.constant 0 : i32
    %c0_i32_1 = arith.constant 0 : i32
    return %c0_i32, %c0_i32_0 : i32, i32
  }
}

module attributes {stable_mosaic.version = 11 : i64} {
  func.func @_conv_bn_leaky_kernel(%arg0: i32, %arg1: memref<512x128xbf16, #tpu.memory_space<vmem>>, %arg2: memref<128x128xbf16, #tpu.memory_space<vmem>>, %arg3: memref<1x128xf32, #tpu.memory_space<vmem>>, %arg4: memref<1x128xf32, #tpu.memory_space<vmem>>, %arg5: memref<512x128xbf16, #tpu.memory_space<vmem>>) attributes {dimension_semantics = [#tpu.dimension_semantics<arbitrary>], iteration_bounds = array<i64: 1>, scalar_prefetch = 0 : i64, scratch_operands = 0 : i64, tpu.core_type = #tpu.core_type<tc>, window_params = [{pipeline_mode = #tpu.pipeline_mode<synchronous>, transform_indices = @transform_0, window_bounds = array<i64: 512, 128>}, {pipeline_mode = #tpu.pipeline_mode<synchronous>, transform_indices = @transform_1, window_bounds = array<i64: 128, 128>}, {pipeline_mode = #tpu.pipeline_mode<synchronous>, transform_indices = @transform_2, window_bounds = array<i64: 1, 128>}, {pipeline_mode = #tpu.pipeline_mode<synchronous>, transform_indices = @transform_3, window_bounds = array<i64: 1, 128>}, {pipeline_mode = #tpu.pipeline_mode<synchronous>, transform_indices = @transform_4, window_bounds = array<i64: 512, 128>}]} {
    %c0 = arith.constant 0 : index
    %c0_0 = arith.constant 0 : index
    %0 = vector.load %arg1[%c0, %c0_0] : memref<512x128xbf16, #tpu.memory_space<vmem>>, vector<512x128xbf16>
    %c0_1 = arith.constant 0 : index
    %c0_2 = arith.constant 0 : index
    %1 = vector.load %arg2[%c0_1, %c0_2] : memref<128x128xbf16, #tpu.memory_space<vmem>>, vector<128x128xbf16>
    %cst = arith.constant dense<0.000000e+00> : vector<512x128xf32>
    %2 = tpu.matmul %0, %1, %cst {dimension_numbers = #tpu.dot_dimension_numbers<[1], [0], [0], [1], [0, 0, 1, 1], [], []>} : vector<512x128xbf16>, vector<128x128xbf16>, vector<512x128xf32> -> vector<512x128xf32>
    %c0_3 = arith.constant 0 : index
    %c0_4 = arith.constant 0 : index
    %3 = vector.load %arg3[%c0_3, %c0_4] : memref<1x128xf32, #tpu.memory_space<vmem>>, vector<1x128xf32>
    %c0_5 = arith.constant 0 : index
    %c0_6 = arith.constant 0 : index
    %4 = vector.load %arg4[%c0_5, %c0_6] : memref<1x128xf32, #tpu.memory_space<vmem>>, vector<1x128xf32>
    %cst_7 = arith.constant dense<0.000000e+00> : vector<128xf32>
    %5 = vector.multi_reduction <add>, %2, %cst_7 [0] : vector<512x128xf32> to vector<128xf32>
    %6 = vector.shape_cast %5 : vector<128xf32> to vector<1x128xf32>
    %cst_8 = arith.constant 0.001953125 : f32
    %7 = vector.broadcast %cst_8 : f32 to vector<1x128xf32>
    %8 = arith.mulf %6, %7 : vector<1x128xf32>
    %9 = arith.mulf %2, %2 : vector<512x128xf32>
    %cst_9 = arith.constant dense<0.000000e+00> : vector<128xf32>
    %10 = vector.multi_reduction <add>, %9, %cst_9 [0] : vector<512x128xf32> to vector<128xf32>
    %11 = vector.shape_cast %10 : vector<128xf32> to vector<1x128xf32>
    %cst_10 = arith.constant 0.001953125 : f32
    %12 = vector.broadcast %cst_10 : f32 to vector<1x128xf32>
    %13 = arith.mulf %11, %12 : vector<1x128xf32>
    %14 = arith.mulf %8, %8 : vector<1x128xf32>
    %15 = arith.subf %13, %14 : vector<1x128xf32>
    %cst_11 = arith.constant 9.99999974E-6 : f32
    %16 = vector.broadcast %cst_11 : f32 to vector<1x128xf32>
    %17 = arith.addf %15, %16 : vector<1x128xf32>
    %18 = math.rsqrt %17 : vector<1x128xf32>
    %19 = arith.mulf %3, %18 : vector<1x128xf32>
    %20 = arith.mulf %8, %19 : vector<1x128xf32>
    %21 = arith.subf %4, %20 : vector<1x128xf32>
    %22 = vector.broadcast %19 : vector<1x128xf32> to vector<512x128xf32>
    %23 = arith.mulf %2, %22 : vector<512x128xf32>
    %24 = vector.broadcast %21 : vector<1x128xf32> to vector<512x128xf32>
    %25 = arith.addf %23, %24 : vector<512x128xf32>
    %cst_12 = arith.constant 0.000000e+00 : f32
    %26 = vector.broadcast %cst_12 : f32 to vector<512x128xf32>
    %27 = arith.cmpf oge, %25, %26 : vector<512x128xf32>
    %cst_13 = arith.constant 2.000000e-01 : f32
    %28 = vector.broadcast %cst_13 : f32 to vector<512x128xf32>
    %29 = arith.mulf %28, %25 : vector<512x128xf32>
    %30 = arith.select %27, %25, %29 : vector<512x128xi1>, vector<512x128xf32>
    %31 = arith.truncf %30 : vector<512x128xf32> to vector<512x128xbf16>
    %c0_14 = arith.constant 0 : index
    %c0_15 = arith.constant 0 : index
    %32 = vector.load %arg5[%c0_14, %c0_15] : memref<512x128xbf16, #tpu.memory_space<vmem>>, vector<512x128xbf16>
    tpu.vector_store %arg5[%c0_14, %c0_15], %31 {strides = array<i32>} : memref<512x128xbf16, #tpu.memory_space<vmem>>, vector<512x128xbf16>,
    return
  }
  func.func @transform_0(%arg0: i32) -> (i32, i32) {
    %c0_i32 = arith.constant 0 : i32
    %c0_i32_0 = arith.constant 0 : i32
    %c0_i32_1 = arith.constant 0 : i32
    return %c0_i32, %c0_i32_0 : i32, i32
  }
  func.func @transform_1(%arg0: i32) -> (i32, i32) {
    %c0_i32 = arith.constant 0 : i32
    %c0_i32_0 = arith.constant 0 : i32
    %c0_i32_1 = arith.constant 0 : i32
    return %c0_i32, %c0_i32_0 : i32, i32
  }
  func.func @transform_2(%arg0: i32) -> (i32, i32) {
    %c0_i32 = arith.constant 0 : i32
    %c0_i32_0 = arith.constant 0 : i32
    %c0_i32_1 = arith.constant 0 : i32
    return %c0_i32, %c0_i32_0 : i32, i32
  }
  func.func @transform_3(%arg0: i32) -> (i32, i32) {
    %c0_i32 = arith.constant 0 : i32
    %c0_i32_0 = arith.constant 0 : i32
    %c0_i32_1 = arith.constant 0 : i32
    return %c0_i32, %c0_i32_0 : i32, i32
  }
  func.func @transform_4(%arg0: i32) -> (i32, i32) {
    %c0_i32 = arith.constant 0 : i32
    %c0_i32_0 = arith.constant 0 : i32
    %c0_i32_1 = arith.constant 0 : i32
    return %c0_i32, %c0_i32_0 : i32, i32
  }
}

module attributes {stable_mosaic.version = 11 : i64} {
  func.func @_conv_bn_leaky_kernel(%arg0: i32, %arg1: memref<128x256xbf16, #tpu.memory_space<vmem>>, %arg2: memref<256x128xbf16, #tpu.memory_space<vmem>>, %arg3: memref<1x128xf32, #tpu.memory_space<vmem>>, %arg4: memref<1x128xf32, #tpu.memory_space<vmem>>, %arg5: memref<128x128xbf16, #tpu.memory_space<vmem>>) attributes {dimension_semantics = [#tpu.dimension_semantics<arbitrary>], iteration_bounds = array<i64: 1>, scalar_prefetch = 0 : i64, scratch_operands = 0 : i64, tpu.core_type = #tpu.core_type<tc>, window_params = [{pipeline_mode = #tpu.pipeline_mode<synchronous>, transform_indices = @transform_0, window_bounds = array<i64: 128, 256>}, {pipeline_mode = #tpu.pipeline_mode<synchronous>, transform_indices = @transform_1, window_bounds = array<i64: 256, 128>}, {pipeline_mode = #tpu.pipeline_mode<synchronous>, transform_indices = @transform_2, window_bounds = array<i64: 1, 128>}, {pipeline_mode = #tpu.pipeline_mode<synchronous>, transform_indices = @transform_3, window_bounds = array<i64: 1, 128>}, {pipeline_mode = #tpu.pipeline_mode<synchronous>, transform_indices = @transform_4, window_bounds = array<i64: 128, 128>}]} {
    %c0 = arith.constant 0 : index
    %c0_0 = arith.constant 0 : index
    %0 = vector.load %arg1[%c0, %c0_0] : memref<128x256xbf16, #tpu.memory_space<vmem>>, vector<128x256xbf16>
    %c0_1 = arith.constant 0 : index
    %c0_2 = arith.constant 0 : index
    %1 = vector.load %arg2[%c0_1, %c0_2] : memref<256x128xbf16, #tpu.memory_space<vmem>>, vector<256x128xbf16>
    %cst = arith.constant dense<0.000000e+00> : vector<128x128xf32>
    %2 = tpu.matmul %0, %1, %cst {dimension_numbers = #tpu.dot_dimension_numbers<[1], [0], [0], [1], [0, 0, 1, 1], [], []>} : vector<128x256xbf16>, vector<256x128xbf16>, vector<128x128xf32> -> vector<128x128xf32>
    %c0_3 = arith.constant 0 : index
    %c0_4 = arith.constant 0 : index
    %3 = vector.load %arg3[%c0_3, %c0_4] : memref<1x128xf32, #tpu.memory_space<vmem>>, vector<1x128xf32>
    %c0_5 = arith.constant 0 : index
    %c0_6 = arith.constant 0 : index
    %4 = vector.load %arg4[%c0_5, %c0_6] : memref<1x128xf32, #tpu.memory_space<vmem>>, vector<1x128xf32>
    %cst_7 = arith.constant dense<0.000000e+00> : vector<128xf32>
    %5 = vector.multi_reduction <add>, %2, %cst_7 [0] : vector<128x128xf32> to vector<128xf32>
    %6 = vector.shape_cast %5 : vector<128xf32> to vector<1x128xf32>
    %cst_8 = arith.constant 7.812500e-03 : f32
    %7 = vector.broadcast %cst_8 : f32 to vector<1x128xf32>
    %8 = arith.mulf %6, %7 : vector<1x128xf32>
    %9 = arith.mulf %2, %2 : vector<128x128xf32>
    %cst_9 = arith.constant dense<0.000000e+00> : vector<128xf32>
    %10 = vector.multi_reduction <add>, %9, %cst_9 [0] : vector<128x128xf32> to vector<128xf32>
    %11 = vector.shape_cast %10 : vector<128xf32> to vector<1x128xf32>
    %cst_10 = arith.constant 7.812500e-03 : f32
    %12 = vector.broadcast %cst_10 : f32 to vector<1x128xf32>
    %13 = arith.mulf %11, %12 : vector<1x128xf32>
    %14 = arith.mulf %8, %8 : vector<1x128xf32>
    %15 = arith.subf %13, %14 : vector<1x128xf32>
    %cst_11 = arith.constant 9.99999974E-6 : f32
    %16 = vector.broadcast %cst_11 : f32 to vector<1x128xf32>
    %17 = arith.addf %15, %16 : vector<1x128xf32>
    %18 = math.rsqrt %17 : vector<1x128xf32>
    %19 = arith.mulf %3, %18 : vector<1x128xf32>
    %20 = arith.mulf %8, %19 : vector<1x128xf32>
    %21 = arith.subf %4, %20 : vector<1x128xf32>
    %22 = vector.broadcast %19 : vector<1x128xf32> to vector<128x128xf32>
    %23 = arith.mulf %2, %22 : vector<128x128xf32>
    %24 = vector.broadcast %21 : vector<1x128xf32> to vector<128x128xf32>
    %25 = arith.addf %23, %24 : vector<128x128xf32>
    %cst_12 = arith.constant 0.000000e+00 : f32
    %26 = vector.broadcast %cst_12 : f32 to vector<128x128xf32>
    %27 = arith.cmpf oge, %25, %26 : vector<128x128xf32>
    %cst_13 = arith.constant 2.000000e-01 : f32
    %28 = vector.broadcast %cst_13 : f32 to vector<128x128xf32>
    %29 = arith.mulf %28, %25 : vector<128x128xf32>
    %30 = arith.select %27, %25, %29 : vector<128x128xi1>, vector<128x128xf32>
    %31 = arith.truncf %30 : vector<128x128xf32> to vector<128x128xbf16>
    %c0_14 = arith.constant 0 : index
    %c0_15 = arith.constant 0 : index
    %32 = vector.load %arg5[%c0_14, %c0_15] : memref<128x128xbf16, #tpu.memory_space<vmem>>, vector<128x128xbf16>
    tpu.vector_store %arg5[%c0_14, %c0_15], %31 {strides = array<i32>} : memref<128x128xbf16, #tpu.memory_space<vmem>>, vector<128x128xbf16>,
    return
  }
  func.func @transform_0(%arg0: i32) -> (i32, i32) {
    %c0_i32 = arith.constant 0 : i32
    %c0_i32_0 = arith.constant 0 : i32
    %c0_i32_1 = arith.constant 0 : i32
    return %c0_i32, %c0_i32_0 : i32, i32
  }
  func.func @transform_1(%arg0: i32) -> (i32, i32) {
    %c0_i32 = arith.constant 0 : i32
    %c0_i32_0 = arith.constant 0 : i32
    %c0_i32_1 = arith.constant 0 : i32
    return %c0_i32, %c0_i32_0 : i32, i32
  }
  func.func @transform_2(%arg0: i32) -> (i32, i32) {
    %c0_i32 = arith.constant 0 : i32
    %c0_i32_0 = arith.constant 0 : i32
    %c0_i32_1 = arith.constant 0 : i32
    return %c0_i32, %c0_i32_0 : i32, i32
  }
  func.func @transform_3(%arg0: i32) -> (i32, i32) {
    %c0_i32 = arith.constant 0 : i32
    %c0_i32_0 = arith.constant 0 : i32
    %c0_i32_1 = arith.constant 0 : i32
    return %c0_i32, %c0_i32_0 : i32, i32
  }
  func.func @transform_4(%arg0: i32) -> (i32, i32) {
    %c0_i32 = arith.constant 0 : i32
    %c0_i32_0 = arith.constant 0 : i32
    %c0_i32_1 = arith.constant 0 : i32
    return %c0_i32, %c0_i32_0 : i32, i32
  }
}

module attributes {stable_mosaic.version = 11 : i64} {
  func.func @_conv_bn_leaky_head_kernel(%arg0: i32, %arg1: memref<32x512xbf16, #tpu.memory_space<vmem>>, %arg2: memref<512x128xbf16, #tpu.memory_space<vmem>>, %arg3: memref<1x128xf32, #tpu.memory_space<vmem>>, %arg4: memref<1x128xf32, #tpu.memory_space<vmem>>, %arg5: memref<32x128xf32, #tpu.memory_space<vmem>>, %arg6: memref<2x32xf32, #tpu.memory_space<vmem>>, %arg7: memref<2x1xf32, #tpu.memory_space<vmem>>) attributes {dimension_semantics = [#tpu.dimension_semantics<arbitrary>], iteration_bounds = array<i64: 1>, scalar_prefetch = 0 : i64, scratch_operands = 0 : i64, tpu.core_type = #tpu.core_type<tc>, window_params = [{pipeline_mode = #tpu.pipeline_mode<synchronous>, transform_indices = @transform_0, window_bounds = array<i64: 32, 512>}, {pipeline_mode = #tpu.pipeline_mode<synchronous>, transform_indices = @transform_1, window_bounds = array<i64: 512, 128>}, {pipeline_mode = #tpu.pipeline_mode<synchronous>, transform_indices = @transform_2, window_bounds = array<i64: 1, 128>}, {pipeline_mode = #tpu.pipeline_mode<synchronous>, transform_indices = @transform_3, window_bounds = array<i64: 1, 128>}, {pipeline_mode = #tpu.pipeline_mode<synchronous>, transform_indices = @transform_4, window_bounds = array<i64: 32, 128>}, {pipeline_mode = #tpu.pipeline_mode<synchronous>, transform_indices = @transform_5, window_bounds = array<i64: 2, 32>}, {pipeline_mode = #tpu.pipeline_mode<synchronous>, transform_indices = @transform_6, window_bounds = array<i64: 2, 1>}]} {
    %c0 = arith.constant 0 : index
    %c0_0 = arith.constant 0 : index
    %0 = vector.load %arg1[%c0, %c0_0] : memref<32x512xbf16, #tpu.memory_space<vmem>>, vector<32x512xbf16>
    %c0_1 = arith.constant 0 : index
    %c0_2 = arith.constant 0 : index
    %1 = vector.load %arg2[%c0_1, %c0_2] : memref<512x128xbf16, #tpu.memory_space<vmem>>, vector<512x128xbf16>
    %cst = arith.constant dense<0.000000e+00> : vector<32x128xf32>
    %2 = tpu.matmul %0, %1, %cst {dimension_numbers = #tpu.dot_dimension_numbers<[1], [0], [0], [1], [0, 0, 1, 1], [], []>} : vector<32x512xbf16>, vector<512x128xbf16>, vector<32x128xf32> -> vector<32x128xf32>
    %c0_3 = arith.constant 0 : index
    %c0_4 = arith.constant 0 : index
    %3 = vector.load %arg3[%c0_3, %c0_4] : memref<1x128xf32, #tpu.memory_space<vmem>>, vector<1x128xf32>
    %c0_5 = arith.constant 0 : index
    %c0_6 = arith.constant 0 : index
    %4 = vector.load %arg4[%c0_5, %c0_6] : memref<1x128xf32, #tpu.memory_space<vmem>>, vector<1x128xf32>
    %cst_7 = arith.constant dense<0.000000e+00> : vector<128xf32>
    %5 = vector.multi_reduction <add>, %2, %cst_7 [0] : vector<32x128xf32> to vector<128xf32>
    %6 = vector.shape_cast %5 : vector<128xf32> to vector<1x128xf32>
    %cst_8 = arith.constant 3.125000e-02 : f32
    %7 = vector.broadcast %cst_8 : f32 to vector<1x128xf32>
    %8 = arith.mulf %6, %7 : vector<1x128xf32>
    %9 = arith.mulf %2, %2 : vector<32x128xf32>
    %cst_9 = arith.constant dense<0.000000e+00> : vector<128xf32>
    %10 = vector.multi_reduction <add>, %9, %cst_9 [0] : vector<32x128xf32> to vector<128xf32>
    %11 = vector.shape_cast %10 : vector<128xf32> to vector<1x128xf32>
    %cst_10 = arith.constant 3.125000e-02 : f32
    %12 = vector.broadcast %cst_10 : f32 to vector<1x128xf32>
    %13 = arith.mulf %11, %12 : vector<1x128xf32>
    %14 = arith.mulf %8, %8 : vector<1x128xf32>
    %15 = arith.subf %13, %14 : vector<1x128xf32>
    %cst_11 = arith.constant 9.99999974E-6 : f32
    %16 = vector.broadcast %cst_11 : f32 to vector<1x128xf32>
    %17 = arith.addf %15, %16 : vector<1x128xf32>
    %18 = math.rsqrt %17 : vector<1x128xf32>
    %19 = arith.mulf %3, %18 : vector<1x128xf32>
    %20 = arith.mulf %8, %19 : vector<1x128xf32>
    %21 = arith.subf %4, %20 : vector<1x128xf32>
    %22 = vector.broadcast %19 : vector<1x128xf32> to vector<32x128xf32>
    %23 = arith.mulf %2, %22 : vector<32x128xf32>
    %24 = vector.broadcast %21 : vector<1x128xf32> to vector<32x128xf32>
    %25 = arith.addf %23, %24 : vector<32x128xf32>
    %cst_12 = arith.constant 0.000000e+00 : f32
    %26 = vector.broadcast %cst_12 : f32 to vector<32x128xf32>
    %27 = arith.cmpf oge, %25, %26 : vector<32x128xf32>
    %cst_13 = arith.constant 2.000000e-01 : f32
    %28 = vector.broadcast %cst_13 : f32 to vector<32x128xf32>
    %29 = arith.mulf %28, %25 : vector<32x128xf32>
    %30 = arith.select %27, %25, %29 : vector<32x128xi1>, vector<32x128xf32>
    %c0_14 = arith.constant 0 : index
    %c0_15 = arith.constant 0 : index
    %31 = vector.load %arg5[%c0_14, %c0_15] : memref<32x128xf32, #tpu.memory_space<vmem>>, vector<32x128xf32>
    %32 = arith.mulf %30, %31 : vector<32x128xf32>
    %c0_16 = arith.constant 0 : index
    %c0_17 = arith.constant 0 : index
    %33 = vector.load %arg6[%c0_16, %c0_17] : memref<2x32xf32, #tpu.memory_space<vmem>>, vector<2x32xf32>
    %cst_18 = arith.constant dense<0.000000e+00> : vector<2x128xf32>
    %34 = tpu.matmul %33, %32, %cst_18 {dimension_numbers = #tpu.dot_dimension_numbers<[1], [0], [0], [1], [0, 0, 1, 1], [], []>} : vector<2x32xf32>, vector<32x128xf32>, vector<2x128xf32> -> vector<2x128xf32>
    %cst_19 = arith.constant dense<0.000000e+00> : vector<2xf32>
    %35 = vector.multi_reduction <add>, %34, %cst_19 [1] : vector<2x128xf32> to vector<2xf32>
    %36 = vector.shape_cast %35 : vector<2xf32> to vector<2x1xf32>
    %cst_20 = arith.constant 0.000000e+00 : f32
    %37 = vector.broadcast %cst_20 : f32 to vector<2x1xf32>
    %38 = arith.subf %37, %36 : vector<2x1xf32>
    %39 = math.exp %38 : vector<2x1xf32>
    %cst_21 = arith.constant 1.000000e+00 : f32
    %40 = vector.broadcast %cst_21 : f32 to vector<2x1xf32>
    %41 = arith.addf %40, %39 : vector<2x1xf32>
    %cst_22 = arith.constant 1.000000e+00 : f32
    %42 = vector.broadcast %cst_22 : f32 to vector<2x1xf32>
    %43 = arith.divf %42, %41 : vector<2x1xf32>
    %c0_23 = arith.constant 0 : index
    %c0_24 = arith.constant 0 : index
    %44 = vector.load %arg7[%c0_23, %c0_24] : memref<2x1xf32, #tpu.memory_space<vmem>>, vector<2x1xf32>
    tpu.vector_store %arg7[%c0_23, %c0_24], %43 {strides = array<i32>} : memref<2x1xf32, #tpu.memory_space<vmem>>, vector<2x1xf32>,
    return
  }
  func.func @transform_0(%arg0: i32) -> (i32, i32) {
    %c0_i32 = arith.constant 0 : i32
    %c0_i32_0 = arith.constant 0 : i32
    %c0_i32_1 = arith.constant 0 : i32
    return %c0_i32, %c0_i32_0 : i32, i32
  }
  func.func @transform_1(%arg0: i32) -> (i32, i32) {
    %c0_i32 = arith.constant 0 : i32
    %c0_i32_0 = arith.constant 0 : i32
    %c0_i32_1 = arith.constant 0 : i32
    return %c0_i32, %c0_i32_0 : i32, i32
  }
  func.func @transform_2(%arg0: i32) -> (i32, i32) {
    %c0_i32 = arith.constant 0 : i32
    %c0_i32_0 = arith.constant 0 : i32
    %c0_i32_1 = arith.constant 0 : i32
    return %c0_i32, %c0_i32_0 : i32, i32
  }
  func.func @transform_3(%arg0: i32) -> (i32, i32) {
    %c0_i32 = arith.constant 0 : i32
    %c0_i32_0 = arith.constant 0 : i32
    %c0_i32_1 = arith.constant 0 : i32
    return %c0_i32, %c0_i32_0 : i32, i32
  }
  func.func @transform_4(%arg0: i32) -> (i32, i32) {
    %c0_i32 = arith.constant 0 : i32
    %c0_i32_0 = arith.constant 0 : i32
    %c0_i32_1 = arith.constant 0 : i32
    return %c0_i32, %c0_i32_0 : i32, i32
  }
  func.func @transform_5(%arg0: i32) -> (i32, i32) {
    %c0_i32 = arith.constant 0 : i32
    %c0_i32_0 = arith.constant 0 : i32
    %c0_i32_1 = arith.constant 0 : i32
    return %c0_i32, %c0_i32_0 : i32, i32
  }
  func.func @transform_6(%arg0: i32) -> (i32, i32) {
    %c0_i32 = arith.constant 0 : i32
    %c0_i32_0 = arith.constant 0 : i32
    %c0_i32_1 = arith.constant 0 : i32
    return %c0_i32, %c0_i32_0 : i32, i32
  }
}

</mosaic_0001>

<llo_original>
// kernel: _lambda_.4
$region0: #{_lambda_.4}
  #allocation0 [shape = 'u32[]', space=smem, size = 0x4, offset = 0x4, fixed_abs, tag = 'smem constant byte address 0x4 - core index']
  #allocation1 [shape = 'u32[72,128]{1,0:T(1,128)}', space=vmem, size = 0x9000, scoped, tag = 'internal scratch']
  %s0 = inlined_call_operand.vmem [shape: bf16[2048,48], index: 0, kind: input, shape index: {}]
  %s1 = inlined_call_operand.vmem [shape: bf16[48,128], index: 1, kind: input, shape index: {}]
  %s2 = inlined_call_operand.vmem [shape: bf16[2048,128], index: 2, kind: output, shape index: {}]
  %s3 = sld [smem:[#allocation0]]
  $region18: #{_lambda_.4} parent=0
    _
  %s5 = ssub.s32 1, %s3
  %s6 = scalar_select 0, %s5, %s3
  // Predicated region
  $region2: #{_lambda_.4} parent=0 // pred_check
    _
  $region3: #{_lambda_.4} parent=0 // pred_check_branch
    %8 = sbr.rel (0) target = $region5
  $region4: #{_lambda_.4} parent=0 // pred_region
    _
  $region5: #{_lambda_.4} parent=0 // pred_fallthru
    _
  // Predicated region
  $region6: #{_lambda_.4} parent=0 // pred_check
    _
  $region7: #{_lambda_.4} parent=0 // pred_check_branch
    %10 = sbr.rel (0) target = $region9
  $region8: #{_lambda_.4} parent=0 // pred_region
    _
  $region9: #{_lambda_.4} parent=0 // pred_fallthru
    _
  %v12 = vld [vmem:[%s0] sm:$0xf]
  %v13 = vld [vmem:[%s0 + $0x4] sm:$0xf]
  %v14 = vld [vmem:[%s0 + $0x8] sm:$0xf]
  %v15 = vld [vmem:[%s0 + $0xc] sm:$0xf]
  %v16 = vld [vmem:[%s0 + $0x10] sm:$0xf]
  %v17 = vld [vmem:[%s0 + $0x14] sm:$0xf]
  %v18 = vld [vmem:[%s0 + $0x18] sm:$0xf]
  %v19 = vld [vmem:[%s0 + $0x1c] sm:$0xf]
  %v20 = vld [vmem:[%s0 + $0x20] sm:$0xf]
  %v21 = vld [vmem:[%s0 + $0x24] sm:$0xf]
  %v22 = vld [vmem:[%s0 + $0x28] sm:$0xf]
  %v23 = vld [vmem:[%s0 + $0x2c] sm:$0xf]
  %v24 = vld [vmem:[%s0 + $0x30] sm:$0xf]
  %v25 = vld [vmem:[%s0 + $0x34] sm:$0xf]
  %v26 = vld [vmem:[%s0 + $0x38] sm:$0xf]
  %v27 = vld [vmem:[%s0 + $0x3c] sm:$0xf]
  %v28 = vld [vmem:[%s0 + $0x40] sm:$0xf]
  %v29 = vld [vmem:[%s0 + $0x44] sm:$0xf]
  %v30 = vld [vmem:[%s0 + $0x48] sm:$0xf]
  %v31 = vld [vmem:[%s0 + $0x4c] sm:$0xf]
  %v32 = vld [vmem:[%s0 + $0x50] sm:$0xf]
  %v33 = vld [vmem:[%s0 + $0x54] sm:$0xf]
  %v34 = vld [vmem:[%s0 + $0x58] sm:$0xf]
  %v35 = vld [vmem:[%s0 + $0x5c] sm:$0xf]
  %v36 = vld [vmem:[%s0 + $0x60] sm:$0xf]
  %v37 = vld [vmem:[%s0 + $0x64] sm:$0xf]
  %v38 = vld [vmem:[%s0 + $0x68] sm:$0xf]
  %v39 = vld [vmem:[%s0 + $0x6c] sm:$0xf]
  %v40 = vld [vmem:[%s0 + $0x70] sm:$0xf]
  %v41 = vld [vmem:[%s0 + $0x74] sm:$0xf]
  %v42 = vld [vmem:[%s0 + $0x78] sm:$0xf]
  %v43 = vld [vmem:[%s0 + $0x7c] sm:$0xf]
  %v44 = vld [vmem:[%s0 + $0x80] sm:$0xf]
  %v45 = vld [vmem:[%s0 + $0x84] sm:$0xf]
  %v46 = vld [vmem:[%s0 + $0x88] sm:$0xf]
  %v47 = vld [vmem:[%s0 + $0x8c] sm:$0xf]
  %v48 = vld [vmem:[%s0 + $0x90] sm:$0xf]
  %v49 = vld [vmem:[%s0 + $0x94] sm:$0xf]
  %v50 = vld [vmem:[%s0 + $0x98] sm:$0xf]
  %v51 = vld [vmem:[%s0 + $0x9c] sm:$0xf]
  %v52 = vld [vmem:[%s0 + $0xa0] sm:$0xf]
  %v53 = vld [vmem:[%s0 + $0xa4] sm:$0xf]
  %v54 = vld [vmem:[%s0 + $0xa8] sm:$0xf]
  %v55 = vld [vmem:[%s0 + $0xac] sm:$0xf]
  %v56 = vld [vmem:[%s0 + $0xb0] sm:$0xf]
  %v57 = vld [vmem:[%s0 + $0xb4] sm:$0xf]
  %v58 = vld [vmem:[%s0 + $0xb8] sm:$0xf]
  %v59 = vld [vmem:[%s0 + $0xbc] sm:$0xf]
  %v60 = vld [vmem:[%s0 + $0xc0] sm:$0xf]
  %v61 = vld [vmem:[%s0 + $0xc4] sm:$0xf]
  %v62 = vld [vmem:[%s0 + $0xc8] sm:$0xf]
  %v63 = vld [vmem:[%s0 + $0xcc] sm:$0xf]
  %v64 = vld [vmem:[%s0 + $0xd0] sm:$0xf]
  %v65 = vld [vmem:[%s0 + $0xd4] sm:$0xf]
  %v66 = vld [vmem:[%s0 + $0xd8] sm:$0xf]
  %v67 = vld [vmem:[%s0 + $0xdc] sm:$0xf]
  %v68 = vld [vmem:[%s0 + $0xe0] sm:$0xf]
  %v69 = vld [vmem:[%s0 + $0xe4] sm:$0xf]
  %v70 = vld [vmem:[%s0 + $0xe8] sm:$0xf]
  %v71 = vld [vmem:[%s0 + $0xec] sm:$0xf]
  %v72 = vld [vmem:[%s0 + $0xf0] sm:$0xf]
  %v73 = vld [vmem:[%s0 + $0xf4] sm:$0xf]
  %v74 = vld [vmem:[%s0 + $0xf8] sm:$0xf]
  %v75 = vld [vmem:[%s0 + $0xfc] sm:$0xf]
  %v76 = vld [vmem:[%s0 + $0x100] sm:$0xf]
  %v77 = vld [vmem:[%s0 + $0x104] sm:$0xf]
  %v78 = vld [vmem:[%s0 + $0x108] sm:$0xf]
  %v79 = vld [vmem:[%s0 + $0x10c] sm:$0xf]
  %v80 = vld [vmem:[%s0 + $0x110] sm:$0xf]
  %v81 = vld [vmem:[%s0 + $0x114] sm:$0xf]
  %v82 = vld [vmem:[%s0 + $0x118] sm:$0xf]
  %v83 = vld [vmem:[%s0 + $0x11c] sm:$0xf]
  %v84 = vld [vmem:[%s0 + $0x120] sm:$0xf]
  %v85 = vld [vmem:[%s0 + $0x124] sm:$0xf]
  %v86 = vld [vmem:[%s0 + $0x128] sm:$0xf]
  %v87 = vld [vmem:[%s0 + $0x12c] sm:$0xf]
  %v88 = vld [vmem:[%s0 + $0x130] sm:$0xf]
  %v89 = vld [vmem:[%s0 + $0x134] sm:$0xf]
  %v90 = vld [vmem:[%s0 + $0x138] sm:$0xf]
  %v91 = vld [vmem:[%s0 + $0x13c] sm:$0xf]
  %v92 = vld [vmem:[%s0 + $0x140] sm:$0xf]
  %v93 = vld [vmem:[%s0 + $0x144] sm:$0xf]
  %v94 = vld [vmem:[%s0 + $0x148] sm:$0xf]
  %v95 = vld [vmem:[%s0 + $0x14c] sm:$0xf]
  %v96 = vld [vmem:[%s0 + $0x150] sm:$0xf]
  %v97 = vld [vmem:[%s0 + $0x154] sm:$0xf]
  %v98 = vld [vmem:[%s0 + $0x158] sm:$0xf]
  %v99 = vld [vmem:[%s0 + $0x15c] sm:$0xf]
  %v100 = vld [vmem:[%s0 + $0x160] sm:$0xf]
  %v101 = vld [vmem:[%s0 + $0x164] sm:$0xf]
  %v102 = vld [vmem:[%s0 + $0x168] sm:$0xf]
  %v103 = vld [vmem:[%s0 + $0x16c] sm:$0xf]
  %v104 = vld [vmem:[%s0 + $0x170] sm:$0xf]
  %v105 = vld [vmem:[%s0 + $0x174] sm:$0xf]
  %v106 = vld [vmem:[%s0 + $0x178] sm:$0xf]
  %v107 = vld [vmem:[%s0 + $0x17c] sm:$0xf]
  %v108 = vld [vmem:[%s0 + $0x180] sm:$0xf]
  %v109 = vld [vmem:[%s0 + $0x184] sm:$0xf]
  %v110 = vld [vmem:[%s0 + $0x188] sm:$0xf]
  %v111 = vld [vmem:[%s0 + $0x18c] sm:$0xf]
  %v112 = vld [vmem:[%s0 + $0x190] sm:$0xf]
  %v113 = vld [vmem:[%s0 + $0x194] sm:$0xf]
  %v114 = vld [vmem:[%s0 + $0x198] sm:$0xf]
  %v115 = vld [vmem:[%s0 + $0x19c] sm:$0xf]
  %v116 = vld [vmem:[%s0 + $0x1a0] sm:$0xf]
  %v117 = vld [vmem:[%s0 + $0x1a4] sm:$0xf]
  %v118 = vld [vmem:[%s0 + $0x1a8] sm:$0xf]
  %v119 = vld [vmem:[%s0 + $0x1ac] sm:$0xf]
  %v120 = vld [vmem:[%s0 + $0x1b0] sm:$0xf]
  %v121 = vld [vmem:[%s0 + $0x1b4] sm:$0xf]
  %v122 = vld [vmem:[%s0 + $0x1b8] sm:$0xf]
  %v123 = vld [vmem:[%s0 + $0x1bc] sm:$0xf]
  %v124 = vld [vmem:[%s0 + $0x1c0] sm:$0xf]
  %v125 = vld [vmem:[%s0 + $0x1c4] sm:$0xf]
  %v126 = vld [vmem:[%s0 + $0x1c8] sm:$0xf]
  %v127 = vld [vmem:[%s0 + $0x1cc] sm:$0xf]
  %v128 = vld [vmem:[%s0 + $0x1d0] sm:$0xf]
  %v129 = vld [vmem:[%s0 + $0x1d4] sm:$0xf]
  %v130 = vld [vmem:[%s0 + $0x1d8] sm:$0xf]
  %v131 = vld [vmem:[%s0 + $0x1dc] sm:$0xf]
  %v132 = vld [vmem:[%s0 + $0x1e0] sm:$0xf]
  %v133 = vld [vmem:[%s0 + $0x1e4] sm:$0xf]
  %v134 = vld [vmem:[%s0 + $0x1e8] sm:$0xf]
  %v135 = vld [vmem:[%s0 + $0x1ec] sm:$0xf]
  %v136 = vld [vmem:[%s0 + $0x1f0] sm:$0xf]
  %v137 = vld [vmem:[%s0 + $0x1f4] sm:$0xf]
  %v138 = vld [vmem:[%s0 + $0x1f8] sm:$0xf]
  %v139 = vld [vmem:[%s0 + $0x1fc] sm:$0xf]
  %v140 = vld [vmem:[%s0 + $0x200] sm:$0xf]
  %v141 = vld [vmem:[%s0 + $0x204] sm:$0xf]
  %v142 = vld [vmem:[%s0 + $0x208] sm:$0xf]
  %v143 = vld [vmem:[%s0 + $0x20c] sm:$0xf]
  %v144 = vld [vmem:[%s0 + $0x210] sm:$0xf]
  %v145 = vld [vmem:[%s0 + $0x214] sm:$0xf]
  %v146 = vld [vmem:[%s0 + $0x218] sm:$0xf]
  %v147 = vld [vmem:[%s0 + $0x21c] sm:$0xf]
  %v148 = vld [vmem:[%s0 + $0x220] sm:$0xf]
  %v149 = vld [vmem:[%s0 + $0x224] sm:$0xf]
  %v150 = vld [vmem:[%s0 + $0x228] sm:$0xf]
  %v151 = vld [vmem:[%s0 + $0x22c] sm:$0xf]
  %v152 = vld [vmem:[%s0 + $0x230] sm:$0xf]
  %v153 = vld [vmem:[%s0 + $0x234] sm:$0xf]
  %v154 = vld [vmem:[%s0 + $0x238] sm:$0xf]
  %v155 = vld [vmem:[%s0 + $0x23c] sm:$0xf]
  %v156 = vld [vmem:[%s0 + $0x240] sm:$0xf]
  %v157 = vld [vmem:[%s0 + $0x244] sm:$0xf]
  %v158 = vld [vmem:[%s0 + $0x248] sm:$0xf]
  %v159 = vld [vmem:[%s0 + $0x24c] sm:$0xf]
  %v160 = vld [vmem:[%s0 + $0x250] sm:$0xf]
  %v161 = vld [vmem:[%s0 + $0x254] sm:$0xf]
  %v162 = vld [vmem:[%s0 + $0x258] sm:$0xf]
  %v163 = vld [vmem:[%s0 + $0x25c] sm:$0xf]
  %v164 = vld [vmem:[%s0 + $0x260] sm:$0xf]
  %v165 = vld [vmem:[%s0 + $0x264] sm:$0xf]
  %v166 = vld [vmem:[%s0 + $0x268] sm:$0xf]
  %v167 = vld [vmem:[%s0 + $0x26c] sm:$0xf]
  %v168 = vld [vmem:[%s0 + $0x270] sm:$0xf]
  %v169 = vld [vmem:[%s0 + $0x274] sm:$0xf]
  %v170 = vld [vmem:[%s0 + $0x278] sm:$0xf]
  %v171 = vld [vmem:[%s0 + $0x27c] sm:$0xf]
  %v172 = vld [vmem:[%s0 + $0x280] sm:$0xf]
  %v173 = vld [vmem:[%s0 + $0x284] sm:$0xf]
  %v174 = vld [vmem:[%s0 + $0x288] sm:$0xf]
  %v175 = vld [vmem:[%s0 + $0x28c] sm:$0xf]
  %v176 = vld [vmem:[%s0 + $0x290] sm:$0xf]
  %v177 = vld [vmem:[%s0 + $0x294] sm:$0xf]
  %v178 = vld [vmem:[%s0 + $0x298] sm:$0xf]
  %v179 = vld [vmem:[%s0 + $0x29c] sm:$0xf]
  %v180 = vld [vmem:[%s0 + $0x2a0] sm:$0xf]
  %v181 = vld [vmem:[%s0 + $0x2a4] sm:$0xf]
  %v182 = vld [vmem:[%s0 + $0x2a8] sm:$0xf]
  %v183 = vld [vmem:[%s0 + $0x2ac] sm:$0xf]
  %v184 = vld [vmem:[%s0 + $0x2b0] sm:$0xf]
  %v185 = vld [vmem:[%s0 + $0x2b4] sm:$0xf]
  %v186 = vld [vmem:[%s0 + $0x2b8] sm:$0xf]
  %v187 = vld [vmem:[%s0 + $0x2bc] sm:$0xf]
  %v188 = vld [vmem:[%s0 + $0x2c0] sm:$0xf]
  %v189 = vld [vmem:[%s0 + $0x2c4] sm:$0xf]
  %v190 = vld [vmem:[%s0 + $0x2c8] sm:$0xf]
  %v191 = vld [vmem:[%s0 + $0x2cc] sm:$0xf]
  %v192 = vld [vmem:[%s0 + $0x2d0] sm:$0xf]
  %v193 = vld [vmem:[%s0 + $0x2d4] sm:$0xf]
  %v194 = vld [vmem:[%s0 + $0x2d8] sm:$0xf]
  %v195 = vld [vmem:[%s0 + $0x2dc] sm:$0xf]
  %v196 = vld [vmem:[%s0 + $0x2e0] sm:$0xf]
  %v197 = vld [vmem:[%s0 + $0x2e4] sm:$0xf]
  %v198 = vld [vmem:[%s0 + $0x2e8] sm:$0xf]
  %v199 = vld [vmem:[%s0 + $0x2ec] sm:$0xf]
  %v200 = vld [vmem:[%s0 + $0x2f0] sm:$0xf]
  %v201 = vld [vmem:[%s0 + $0x2f4] sm:$0xf]
  %v202 = vld [vmem:[%s0 + $0x2f8] sm:$0xf]
  %v203 = vld [vmem:[%s0 + $0x2fc] sm:$0xf]
  %v204 = vld [vmem:[%s0 + $0x300] sm:$0xf]
  %v205 = vld [vmem:[%s0 + $0x304] sm:$0xf]
  %v206 = vld [vmem:[%s0 + $0x308] sm:$0xf]
  %v207 = vld [vmem:[%s0 + $0x30c] sm:$0xf]
  %v208 = vld [vmem:[%s0 + $0x310] sm:$0xf]
  %v209 = vld [vmem:[%s0 + $0x314] sm:$0xf]
  %v210 = vld [vmem:[%s0 + $0x318] sm:$0xf]
  %v211 = vld [vmem:[%s0 + $0x31c] sm:$0xf]
  %v212 = vld [vmem:[%s0 + $0x320] sm:$0xf]
  %v213 = vld [vmem:[%s0 + $0x324] sm:$0xf]
  %v214 = vld [vmem:[%s0 + $0x328] sm:$0xf]
  %v215 = vld [vmem:[%s0 + $0x32c] sm:$0xf]
  %v216 = vld [vmem:[%s0 + $0x330] sm:$0xf]
  %v217 = vld [vmem:[%s0 + $0x334] sm:$0xf]
  %v218 = vld [vmem:[%s0 + $0x338] sm:$0xf]
  %v219 = vld [vmem:[%s0 + $0x33c] sm:$0xf]
  %v220 = vld [vmem:[%s0 + $0x340] sm:$0xf]
  %v221 = vld [vmem:[%s0 + $0x344] sm:$0xf]
  %v222 = vld [vmem:[%s0 + $0x348] sm:$0xf]
  %v223 = vld [vmem:[%s0 + $0x34c] sm:$0xf]
  %v224 = vld [vmem:[%s0 + $0x350] sm:$0xf]
  %v225 = vld [vmem:[%s0 + $0x354] sm:$0xf]
  %v226 = vld [vmem:[%s0 + $0x358] sm:$0xf]
  %v227 = vld [vmem:[%s0 + $0x35c] sm:$0xf]
  %v228 = vld [vmem:[%s0 + $0x360] sm:$0xf]
  %v229 = vld [vmem:[%s0 + $0x364] sm:$0xf]
  %v230 = vld [vmem:[%s0 + $0x368] sm:$0xf]
  %v231 = vld [vmem:[%s0 + $0x36c] sm:$0xf]
  %v232 = vld [vmem:[%s0 + $0x370] sm:$0xf]
  %v233 = vld [vmem:[%s0 + $0x374] sm:$0xf]
  %v234 = vld [vmem:[%s0 + $0x378] sm:$0xf]
  %v235 = vld [vmem:[%s0 + $0x37c] sm:$0xf]
  %v236 = vld [vmem:[%s0 + $0x380] sm:$0xf]
  %v237 = vld [vmem:[%s0 + $0x384] sm:$0xf]
  %v238 = vld [vmem:[%s0 + $0x388] sm:$0xf]
  %v239 = vld [vmem:[%s0 + $0x38c] sm:$0xf]
  %v240 = vld [vmem:[%s0 + $0x390] sm:$0xf]
  %v241 = vld [vmem:[%s0 + $0x394] sm:$0xf]
  %v242 = vld [vmem:[%s0 + $0x398] sm:$0xf]
  %v243 = vld [vmem:[%s0 + $0x39c] sm:$0xf]
  %v244 = vld [vmem:[%s0 + $0x3a0] sm:$0xf]
  %v245 = vld [vmem:[%s0 + $0x3a4] sm:$0xf]
  %v246 = vld [vmem:[%s0 + $0x3a8] sm:$0xf]
  %v247 = vld [vmem:[%s0 + $0x3ac] sm:$0xf]
  %v248 = vld [vmem:[%s0 + $0x3b0] sm:$0xf]
  %v249 = vld [vmem:[%s0 + $0x3b4] sm:$0xf]
  %v250 = vld [vmem:[%s0 + $0x3b8] sm:$0xf]
  %v251 = vld [vmem:[%s0 + $0x3bc] sm:$0xf]
  %v252 = vld [vmem:[%s0 + $0x3c0] sm:$0xf]
  %v253 = vld [vmem:[%s0 + $0x3c4] sm:$0xf]
  %v254 = vld [vmem:[%s0 + $0x3c8] sm:$0xf]
  %v255 = vld [vmem:[%s0 + $0x3cc] sm:$0xf]
  %v256 = vld [vmem:[%s0 + $0x3d0] sm:$0xf]
  %v257 = vld [vmem:[%s0 + $0x3d4] sm:$0xf]
  %v258 = vld [vmem:[%s0 + $0x3d8] sm:$0xf]
  %v259 = vld [vmem:[%s0 + $0x3dc] sm:$0xf]
  %v260 = vld [vmem:[%s0 + $0x3e0] sm:$0xf]
  %v261 = vld [vmem:[%s0 + $0x3e4] sm:$0xf]
  %v262 = vld [vmem:[%s0 + $0x3e8] sm:$0xf]
  %v263 = vld [vmem:[%s0 + $0x3ec] sm:$0xf]
  %v264 = vld [vmem:[%s0 + $0x3f0] sm:$0xf]
  %v265 = vld [vmem:[%s0 + $0x3f4] sm:$0xf]
  %v266 = vld [vmem:[%s0 + $0x3f8] sm:$0xf]
  %v267 = vld [vmem:[%s0 + $0x3fc] sm:$0xf]
  %v268 = vld [vmem:[%s1] sm:$0xf]
  %v269 = vld [vmem:[%s1 + $0x4] sm:$0xf]
  %v270 = vld [vmem:[%s1 + $0x8] sm:$0xf]
  %v271 = vld [vmem:[%s1 + $0xc] sm:$0xf]
  %v272 = vld [vmem:[%s1 + $0x10] sm:$0xf]
  %v273 = vld [vmem:[%s1 + $0x14] sm:$0xf]
  %v530 = vunpack.c.l.b16 %v12
  %v531 = vunpack.c.l.b16 %v13
  %v532 = vunpack.c.l.b16 %v14
  %v533 = vunpack.c.l.b16 %v15
  %v534 = vunpack.c.l.b16 %v16
  %v535 = vunpack.c.l.b16 %v17
  %v536 = vunpack.c.l.b16 %v18
  %v537 = vunpack.c.l.b16 %v19
  %v538 = vunpack.c.l.b16 %v20
  %v539 = vunpack.c.l.b16 %v21
  %v540 = vunpack.c.l.b16 %v22
  %v541 = vunpack.c.l.b16 %v23
  %v542 = vunpack.c.l.b16 %v24
  %v543 = vunpack.c.l.b16 %v25
  %v544 = vunpack.c.l.b16 %v26
  %v545 = vunpack.c.l.b16 %v27
  %v546 = vunpack.c.l.b16 %v28
  %v547 = vunpack.c.l.b16 %v29
  %v548 = vunpack.c.l.b16 %v30
  %v549 = vunpack.c.l.b16 %v31
  %v550 = vunpack.c.l.b16 %v32
  %v551 = vunpack.c.l.b16 %v33
  %v552 = vunpack.c.l.b16 %v34
  %v553 = vunpack.c.l.b16 %v35
  %v554 = vunpack.c.l.b16 %v36
  %v555 = vunpack.c.l.b16 %v37
  %v556 = vunpack.c.l.b16 %v38
  %v557 = vunpack.c.l.b16 %v39
  %v558 = vunpack.c.l.b16 %v40
  %v559 = vunpack.c.l.b16 %v41
  %v560 = vunpack.c.l.b16 %v42
  %v561 = vunpack.c.l.b16 %v43
  %v562 = vunpack.c.l.b16 %v44
  %v563 = vunpack.c.l.b16 %v45
  %v564 = vunpack.c.l.b16 %v46
  %v565 = vunpack.c.l.b16 %v47
  %v566 = vunpack.c.l.b16 %v48
  %v567 = vunpack.c.l.b16 %v49
  %v568 = vunpack.c.l.b16 %v50
  %v569 = vunpack.c.l.b16 %v51
  %v570 = vunpack.c.l.b16 %v52
  %v571 = vunpack.c.l.b16 %v53
  %v572 = vunpack.c.l.b16 %v54
  %v573 = vunpack.c.l.b16 %v55
  %v574 = vunpack.c.l.b16 %v56
  %v575 = vunpack.c.l.b16 %v57
  %v576 = vunpack.c.l.b16 %v58
  %v577 = vunpack.c.l.b16 %v59
  %v578 = vunpack.c.l.b16 %v60
  %v579 = vunpack.c.l.b16 %v61
  %v580 = vunpack.c.l.b16 %v62
  %v581 = vunpack.c.l.b16 %v63
  %v582 = vunpack.c.l.b16 %v64
  %v583 = vunpack.c.l.b16 %v65
  %v584 = vunpack.c.l.b16 %v66
  %v585 = vunpack.c.l.b16 %v67
  %v586 = vunpack.c.l.b16 %v68
  %v587 = vunpack.c.l.b16 %v69
  %v588 = vunpack.c.l.b16 %v70
  %v589 = vunpack.c.l.b16 %v71
  %v590 = vunpack.c.l.b16 %v72
  %v591 = vunpack.c.l.b16 %v73
  %v592 = vunpack.c.l.b16 %v74
  %v593 = vunpack.c.l.b16 %v75
  %v594 = vunpack.c.l.b16 %v76
  %v595 = vunpack.c.l.b16 %v77
  %v596 = vunpack.c.l.b16 %v78
  %v597 = vunpack.c.l.b16 %v79
  %v598 = vunpack.c.l.b16 %v80
  %v599 = vunpack.c.l.b16 %v81
  %v600 = vunpack.c.l.b16 %v82
  %v601 = vunpack.c.l.b16 %v83
  %v602 = vunpack.c.l.b16 %v84
  %v603 = vunpack.c.l.b16 %v85
  %v604 = vunpack.c.l.b16 %v86
  %v605 = vunpack.c.l.b16 %v87
  %v606 = vunpack.c.l.b16 %v88
  %v607 = vunpack.c.l.b16 %v89
  %v608 = vunpack.c.l.b16 %v90
  %v609 = vunpack.c.l.b16 %v91
  %v610 = vunpack.c.l.b16 %v92
  %v611 = vunpack.c.l.b16 %v93
  %v612 = vunpack.c.l.b16 %v94
  %v613 = vunpack.c.l.b16 %v95
  %v614 = vunpack.c.l.b16 %v96
  %v615 = vunpack.c.l.b16 %v97
  %v616 = vunpack.c.l.b16 %v98
  %v617 = vunpack.c.l.b16 %v99
  %v618 = vunpack.c.l.b16 %v100
  %v619 = vunpack.c.l.b16 %v101
  %v620 = vunpack.c.l.b16 %v102
  %v621 = vunpack.c.l.b16 %v103
  %v622 = vunpack.c.l.b16 %v104
  %v623 = vunpack.c.l.b16 %v105
  %v624 = vunpack.c.l.b16 %v106
  %v625 = vunpack.c.l.b16 %v107
  %v626 = vunpack.c.l.b16 %v108
  %v627 = vunpack.c.l.b16 %v109
  %v628 = vunpack.c.l.b16 %v110
  %v629 = vunpack.c.l.b16 %v111
  %v630 = vunpack.c.l.b16 %v112
  %v631 = vunpack.c.l.b16 %v113
  %v632 = vunpack.c.l.b16 %v114
  %v633 = vunpack.c.l.b16 %v115
  %v634 = vunpack.c.l.b16 %v116
  %v635 = vunpack.c.l.b16 %v117
  %v636 = vunpack.c.l.b16 %v118
  %v637 = vunpack.c.l.b16 %v119
  %v638 = vunpack.c.l.b16 %v120
  %v639 = vunpack.c.l.b16 %v121
  %v640 = vunpack.c.l.b16 %v122
  %v641 = vunpack.c.l.b16 %v123
  %v642 = vunpack.c.l.b16 %v124
  %v643 = vunpack.c.l.b16 %v125
  %v644 = vunpack.c.l.b16 %v126
  %v645 = vunpack.c.l.b16 %v127
  %v646 = vunpack.c.l.b16 %v128
  %v647 = vunpack.c.l.b16 %v129
  %v648 = vunpack.c.l.b16 %v130
  %v649 = vunpack.c.l.b16 %v131
  %v650 = vunpack.c.l.b16 %v132
  %v651 = vunpack.c.l.b16 %v133
  %v652 = vunpack.c.l.b16 %v134
  %v653 = vunpack.c.l.b16 %v135
  %v654 = vunpack.c.l.b16 %v136
  %v655 = vunpack.c.l.b16 %v137
  %v656 = vunpack.c.l.b16 %v138
  %v657 = vunpack.c.l.b16 %v139
  %v658 = vunpack.c.l.b16 %v140
  %v659 = vunpack.c.l.b16 %v141
  %v660 = vunpack.c.l.b16 %v142
  %v661 = vunpack.c.l.b16 %v143
  %v662 = vunpack.c.l.b16 %v144
  %v663 = vunpack.c.l.b16 %v145
  %v664 = vunpack.c.l.b16 %v146
  %v665 = vunpack.c.l.b16 %v147
  %v666 = vunpack.c.l.b16 %v148
  %v667 = vunpack.c.l.b16 %v149
  %v668 = vunpack.c.l.b16 %v150
  %v669 = vunpack.c.l.b16 %v151
  %v670 = vunpack.c.l.b16 %v152
  %v671 = vunpack.c.l.b16 %v153
  %v672 = vunpack.c.l.b16 %v154
  %v673 = vunpack.c.l.b16 %v155
  %v674 = vunpack.c.l.b16 %v156
  %v675 = vunpack.c.l.b16 %v157
  %v676 = vunpack.c.l.b16 %v158
  %v677 = vunpack.c.l.b16 %v159
  %v678 = vunpack.c.l.b16 %v160
  %v679 = vunpack.c.l.b16 %v161
  %v680 = vunpack.c.l.b16 %v162
  %v681 = vunpack.c.l.b16 %v163
  %v682 = vunpack.c.l.b16 %v164
  %v683 = vunpack.c.l.b16 %v165
  %v684 = vunpack.c.l.b16 %v166
  %v685 = vunpack.c.l.b16 %v167
  %v686 = vunpack.c.l.b16 %v168
  %v687 = vunpack.c.l.b16 %v169
  %v688 = vunpack.c.l.b16 %v170
  %v689 = vunpack.c.l.b16 %v171
  %v690 = vunpack.c.l.b16 %v172
  %v691 = vunpack.c.l.b16 %v173
  %v692 = vunpack.c.l.b16 %v174
  %v693 = vunpack.c.l.b16 %v175
  %v694 = vunpack.c.l.b16 %v176
  %v695 = vunpack.c.l.b16 %v177
  %v696 = vunpack.c.l.b16 %v178
  %v697 = vunpack.c.l.b16 %v179
  %v698 = vunpack.c.l.b16 %v180
  %v699 = vunpack.c.l.b16 %v181
  %v700 = vunpack.c.l.b16 %v182
  %v701 = vunpack.c.l.b16 %v183
  %v702 = vunpack.c.l.b16 %v184
  %v703 = vunpack.c.l.b16 %v185
  %v704 = vunpack.c.l.b16 %v186
  %v705 = vunpack.c.l.b16 %v187
  %v706 = vunpack.c.l.b16 %v188
  %v707 = vunpack.c.l.b16 %v189
  %v708 = vunpack.c.l.b16 %v190
  %v709 = vunpack.c.l.b16 %v191
  %v710 = vunpack.c.l.b16 %v192
  %v711 = vunpack.c.l.b16 %v193
  %v712 = vunpack.c.l.b16 %v194
  %v713 = vunpack.c.l.b16 %v195
  %v714 = vunpack.c.l.b16 %v196
  %v715 = vunpack.c.l.b16 %v197
  %v716 = vunpack.c.l.b16 %v198
  %v717 = vunpack.c.l.b16 %v199
  %v718 = vunpack.c.l.b16 %v200
  %v719 = vunpack.c.l.b16 %v201
  %v720 = vunpack.c.l.b16 %v202
  %v721 = vunpack.c.l.b16 %v203
  %v722 = vunpack.c.l.b16 %v204
  %v723 = vunpack.c.l.b16 %v205
  %v724 = vunpack.c.l.b16 %v206
  %v725 = vunpack.c.l.b16 %v207
  %v726 = vunpack.c.l.b16 %v208
  %v727 = vunpack.c.l.b16 %v209
  %v728 = vunpack.c.l.b16 %v210
  %v729 = vunpack.c.l.b16 %v211
  %v730 = vunpack.c.l.b16 %v212
  %v731 = vunpack.c.l.b16 %v213
  %v732 = vunpack.c.l.b16 %v214
  %v733 = vunpack.c.l.b16 %v215
  %v734 = vunpack.c.l.b16 %v216
  %v735 = vunpack.c.l.b16 %v217
  %v736 = vunpack.c.l.b16 %v218
  %v737 = vunpack.c.l.b16 %v219
  %v738 = vunpack.c.l.b16 %v220
  %v739 = vunpack.c.l.b16 %v221
  %v740 = vunpack.c.l.b16 %v222
  %v741 = vunpack.c.l.b16 %v223
  %v742 = vunpack.c.l.b16 %v224
  %v743 = vunpack.c.l.b16 %v225
  %v744 = vunpack.c.l.b16 %v226
  %v745 = vunpack.c.l.b16 %v227
  %v746 = vunpack.c.l.b16 %v228
  %v747 = vunpack.c.l.b16 %v229
  %v748 = vunpack.c.l.b16 %v230
  %v749 = vunpack.c.l.b16 %v231
  %v750 = vunpack.c.l.b16 %v232
  %v751 = vunpack.c.l.b16 %v233
  %v752 = vunpack.c.l.b16 %v234
  %v753 = vunpack.c.l.b16 %v235
  %v754 = vunpack.c.l.b16 %v236
  %v755 = vunpack.c.l.b16 %v237
  %v756 = vunpack.c.l.b16 %v238
  %v757 = vunpack.c.l.b16 %v239
  %v758 = vunpack.c.l.b16 %v240
  %v759 = vunpack.c.l.b16 %v241
  %v760 = vunpack.c.l.b16 %v242
  %v761 = vunpack.c.l.b16 %v243
  %v762 = vunpack.c.l.b16 %v244
  %v763 = vunpack.c.l.b16 %v245
  %v764 = vunpack.c.l.b16 %v246
  %v765 = vunpack.c.l.b16 %v247
  %v766 = vunpack.c.l.b16 %v248
  %v767 = vunpack.c.l.b16 %v249
  %v768 = vunpack.c.l.b16 %v250
  %v769 = vunpack.c.l.b16 %v251
  %v770 = vunpack.c.l.b16 %v252
  %v771 = vunpack.c.l.b16 %v253
  %v772 = vunpack.c.l.b16 %v254
  %v773 = vunpack.c.l.b16 %v255
  %v774 = vunpack.c.l.b16 %v256
  %v775 = vunpack.c.l.b16 %v257
  %v776 = vunpack.c.l.b16 %v258
  %v777 = vunpack.c.l.b16 %v259
  %v778 = vunpack.c.l.b16 %v260
  %v779 = vunpack.c.l.b16 %v261
  %v780 = vunpack.c.l.b16 %v262
  %v781 = vunpack.c.l.b16 %v263
  %v782 = vunpack.c.l.b16 %v264
  %v783 = vunpack.c.l.b16 %v265
  %v784 = vunpack.c.l.b16 %v266
  %v785 = vunpack.c.l.b16 %v267
  %v786 = vpack.c.b16 %v531, %v530
  %v787 = vpack.c.b16 %v533, %v532
  %v788 = vpack.c.b16 %v535, %v534
  %v789 = vpack.c.b16 %v537, %v536
  %v790 = vpack.c.b16 %v539, %v538
  %v791 = vpack.c.b16 %v541, %v540
  %v792 = vpack.c.b16 %v543, %v542
  %v793 = vpack.c.b16 %v545, %v544
  %v794 = vpack.c.b16 %v547, %v546
  %v795 = vpack.c.b16 %v549, %v548
  %v796 = vpack.c.b16 %v551, %v550
  %v797 = vpack.c.b16 %v553, %v552
  %v798 = vpack.c.b16 %v555, %v554
  %v799 = vpack.c.b16 %v557, %v556
  %v800 = vpack.c.b16 %v559, %v558
  %v801 = vpack.c.b16 %v561, %v560
  %v802 = vpack.c.b16 %v563, %v562
  %v803 = vpack.c.b16 %v565, %v564
  %v804 = vpack.c.b16 %v567, %v566
  %v805 = vpack.c.b16 %v569, %v568
  %v806 = vpack.c.b16 %v571, %v570
  %v807 = vpack.c.b16 %v573, %v572
  %v808 = vpack.c.b16 %v575, %v574
  %v809 = vpack.c.b16 %v577, %v576
  %v810 = vpack.c.b16 %v579, %v578
  %v811 = vpack.c.b16 %v581, %v580
  %v812 = vpack.c.b16 %v583, %v582
  %v813 = vpack.c.b16 %v585, %v584
  %v814 = vpack.c.b16 %v587, %v586
  %v815 = vpack.c.b16 %v589, %v588
  %v816 = vpack.c.b16 %v591, %v590
  %v817 = vpack.c.b16 %v593, %v592
  %v818 = vpack.c.b16 %v595, %v594
  %v819 = vpack.c.b16 %v597, %v596
  %v820 = vpack.c.b16 %v599, %v598
  %v821 = vpack.c.b16 %v601, %v600
  %v822 = vpack.c.b16 %v603, %v602
  %v823 = vpack.c.b16 %v605, %v604
  %v824 = vpack.c.b16 %v607, %v606
  %v825 = vpack.c.b16 %v609, %v608
  %v826 = vpack.c.b16 %v611, %v610
  %v827 = vpack.c.b16 %v613, %v612
  %v828 = vpack.c.b16 %v615, %v614
  %v829 = vpack.c.b16 %v617, %v616
  %v830 = vpack.c.b16 %v619, %v618
  %v831 = vpack.c.b16 %v621, %v620
  %v832 = vpack.c.b16 %v623, %v622
  %v833 = vpack.c.b16 %v625, %v624
  %v834 = vpack.c.b16 %v627, %v626
  %v835 = vpack.c.b16 %v629, %v628
  %v836 = vpack.c.b16 %v631, %v630
  %v837 = vpack.c.b16 %v633, %v632
  %v838 = vpack.c.b16 %v635, %v634
  %v839 = vpack.c.b16 %v637, %v636
  %v840 = vpack.c.b16 %v639, %v638
  %v841 = vpack.c.b16 %v641, %v640
  %v842 = vpack.c.b16 %v643, %v642
  %v843 = vpack.c.b16 %v645, %v644
  %v844 = vpack.c.b16 %v647, %v646
  %v845 = vpack.c.b16 %v649, %v648
  %v846 = vpack.c.b16 %v651, %v650
  %v847 = vpack.c.b16 %v653, %v652
  %v848 = vpack.c.b16 %v655, %v654
  %v849 = vpack.c.b16 %v657, %v656
  %v850 = vpack.c.b16 %v659, %v658
  %v851 = vpack.c.b16 %v661, %v660
  %v852 = vpack.c.b16 %v663, %v662
  %v853 = vpack.c.b16 %v665, %v664
  %v854 = vpack.c.b16 %v667, %v666
  %v855 = vpack.c.b16 %v669, %v668
  %v856 = vpack.c.b16 %v671, %v670
  %v857 = vpack.c.b16 %v673, %v672
  %v858 = vpack.c.b16 %v675, %v674
  %v859 = vpack.c.b16 %v677, %v676
  %v860 = vpack.c.b16 %v679, %v678
  %v861 = vpack.c.b16 %v681, %v680
  %v862 = vpack.c.b16 %v683, %v682
  %v863 = vpack.c.b16 %v685, %v684
  %v864 = vpack.c.b16 %v687, %v686
  %v865 = vpack.c.b16 %v689, %v688
  %v866 = vpack.c.b16 %v691, %v690
  %v867 = vpack.c.b16 %v693, %v692
  %v868 = vpack.c.b16 %v695, %v694
  %v869 = vpack.c.b16 %v697, %v696
  %v870 = vpack.c.b16 %v699, %v698
  %v871 = vpack.c.b16 %v701, %v700
  %v872 = vpack.c.b16 %v703, %v702
  %v873 = vpack.c.b16 %v705, %v704
  %v874 = vpack.c.b16 %v707, %v706
  %v875 = vpack.c.b16 %v709, %v708
  %v876 = vpack.c.b16 %v711, %v710
  %v877 = vpack.c.b16 %v713, %v712
  %v878 = vpack.c.b16 %v715, %v714
  %v879 = vpack.c.b16 %v717, %v716
  %v880 = vpack.c.b16 %v719, %v718
  %v881 = vpack.c.b16 %v721, %v720
  %v882 = vpack.c.b16 %v723, %v722
  %v883 = vpack.c.b16 %v725, %v724
  %v884 = vpack.c.b16 %v727, %v726
  %v885 = vpack.c.b16 %v729, %v728
  %v886 = vpack.c.b16 %v731, %v730
  %v887 = vpack.c.b16 %v733, %v732
  %v888 = vpack.c.b16 %v735, %v734
  %v889 = vpack.c.b16 %v737, %v736
  %v890 = vpack.c.b16 %v739, %v738
  %v891 = vpack.c.b16 %v741, %v740
  %v892 = vpack.c.b16 %v743, %v742
  %v893 = vpack.c.b16 %v745, %v744
  %v894 = vpack.c.b16 %v747, %v746
  %v895 = vpack.c.b16 %v749, %v748
  %v896 = vpack.c.b16 %v751, %v750
  %v897 = vpack.c.b16 %v753, %v752
  %v898 = vpack.c.b16 %v755, %v754
  %v899 = vpack.c.b16 %v757, %v756
  %v900 = vpack.c.b16 %v759, %v758
  %v901 = vpack.c.b16 %v761, %v760
  %v902 = vpack.c.b16 %v763, %v762
  %v903 = vpack.c.b16 %v765, %v764
  %v904 = vpack.c.b16 %v767, %v766
  %v905 = vpack.c.b16 %v769, %v768
  %v906 = vpack.c.b16 %v771, %v770
  %v907 = vpack.c.b16 %v773, %v772
  %v908 = vpack.c.b16 %v775, %v774
  %v909 = vpack.c.b16 %v777, %v776
  %v910 = vpack.c.b16 %v779, %v778
  %v911 = vpack.c.b16 %v781, %v780
  %v912 = vpack.c.b16 %v783, %v782
  %v913 = vpack.c.b16 %v785, %v784
  %v920 = vunpack.c.l.b16 %v268
  %v921 = vunpack.c.l.b16 %v269
  %v922 = vunpack.c.l.b16 %v270
  %v923 = vunpack.c.l.b16 %v271
  %v924 = vunpack.c.l.b16 %v272
  %v925 = vunpack.c.l.b16 %v273
  %v926 = vpack.c.b16 %v921, %v920
  %v927 = vpack.c.b16 %v923, %v922
  %v928 = vpack.c.b16 %v925, %v924
  %vm932 = vcmask 392192
  %v934 = vsel %vm932, %v786, 0
  %v937 = vsel %vm932, %v787, 0
  %v940 = vsel %vm932, %v788, 0
  %v943 = vsel %vm932, %v789, 0
  %v946 = vsel %vm932, %v790, 0
  %v949 = vsel %vm932, %v791, 0
  %v952 = vsel %vm932, %v792, 0
  %v955 = vsel %vm932, %v793, 0
  %v958 = vsel %vm932, %v794, 0
  %v961 = vsel %vm932, %v795, 0
  %v964 = vsel %vm932, %v796, 0
  %v967 = vsel %vm932, %v797, 0
  %v970 = vsel %vm932, %v798, 0
  %v973 = vsel %vm932, %v799, 0
  %v976 = vsel %vm932, %v800, 0
  %v979 = vsel %vm932, %v801, 0
  %v982 = vsel %vm932, %v802, 0
  %v985 = vsel %vm932, %v803, 0
  %v988 = vsel %vm932, %v804, 0
  %v991 = vsel %vm932, %v805, 0
  %v994 = vsel %vm932, %v806, 0
  %v997 = vsel %vm932, %v807, 0
  %v1000 = vsel %vm932, %v808, 0
  %v1003 = vsel %vm932, %v809, 0
  %v1006 = vsel %vm932, %v810, 0
  %v1009 = vsel %vm932, %v811, 0
  %v1012 = vsel %vm932, %v812, 0
  %v1015 = vsel %vm932, %v813, 0
  %v1018 = vsel %vm932, %v814, 0
  %v1021 = vsel %vm932, %v815, 0
  %v1024 = vsel %vm932, %v816, 0
  %v1027 = vsel %vm932, %v817, 0
  %v1030 = vsel %vm932, %v818, 0
  %v1033 = vsel %vm932, %v819, 0
  %v1036 = vsel %vm932, %v820, 0
  %v1039 = vsel %vm932, %v821, 0
  %v1042 = vsel %vm932, %v822, 0
  %v1045 = vsel %vm932, %v823, 0
  %v1048 = vsel %vm932, %v824, 0
  %v1051 = vsel %vm932, %v825, 0
  %v1054 = vsel %vm932, %v826, 0
  %v1057 = vsel %vm932, %v827, 0
  %v1060 = vsel %vm932, %v828, 0
  %v1063 = vsel %vm932, %v829, 0
  %v1066 = vsel %vm932, %v830, 0
  %v1069 = vsel %vm932, %v831, 0
  %v1072 = vsel %vm932, %v832, 0
  %v1075 = vsel %vm932, %v833, 0
  %v1078 = vsel %vm932, %v834, 0
  %v1081 = vsel %vm932, %v835, 0
  %v1084 = vsel %vm932, %v836, 0
  %v1087 = vsel %vm932, %v837, 0
  %v1090 = vsel %vm932, %v838, 0
  %v1093 = vsel %vm932, %v839, 0
  %v1096 = vsel %vm932, %v840, 0
  %v1099 = vsel %vm932, %v841, 0
  %v1102 = vsel %vm932, %v842, 0
  %v1105 = vsel %vm932, %v843, 0
  %v1108 = vsel %vm932, %v844, 0
  %v1111 = vsel %vm932, %v845, 0
  %v1114 = vsel %vm932, %v846, 0
  %v1117 = vsel %vm932, %v847, 0
  %v1120 = vsel %vm932, %v848, 0
  %v1123 = vsel %vm932, %v849, 0
  %v1126 = vsel %vm932, %v850, 0
  %v1129 = vsel %vm932, %v851, 0
  %v1132 = vsel %vm932, %v852, 0
  %v1135 = vsel %vm932, %v853, 0
  %v1138 = vsel %vm932, %v854, 0
  %v1141 = vsel %vm932, %v855, 0
  %v1144 = vsel %vm932, %v856, 0
  %v1147 = vsel %vm932, %v857, 0
  %v1150 = vsel %vm932, %v858, 0
  %v1153 = vsel %vm932, %v859, 0
  %v1156 = vsel %vm932, %v860, 0
  %v1159 = vsel %vm932, %v861, 0
  %v1162 = vsel %vm932, %v862, 0
  %v1165 = vsel %vm932, %v863, 0
  %v1168 = vsel %vm932, %v864, 0
  %v1171 = vsel %vm932, %v865, 0
  %v1174 = vsel %vm932, %v866, 0
  %v1177 = vsel %vm932, %v867, 0
  %v1180 = vsel %vm932, %v868, 0
  %v1183 = vsel %vm932, %v869, 0
  %v1186 = vsel %vm932, %v870, 0
  %v1189 = vsel %vm932, %v871, 0
  %v1192 = vsel %vm932, %v872, 0
  %v1195 = vsel %vm932, %v873, 0
  %v1198 = vsel %vm932, %v874, 0
  %v1201 = vsel %vm932, %v875, 0
  %v1204 = vsel %vm932, %v876, 0
  %v1207 = vsel %vm932, %v877, 0
  %v1210 = vsel %vm932, %v878, 0
  %v1213 = vsel %vm932, %v879, 0
  %v1216 = vsel %vm932, %v880, 0
  %v1219 = vsel %vm932, %v881, 0
  %v1222 = vsel %vm932, %v882, 0
  %v1225 = vsel %vm932, %v883, 0
  %v1228 = vsel %vm932, %v884, 0
  %v1231 = vsel %vm932, %v885, 0
  %v1234 = vsel %vm932, %v886, 0
  %v1237 = vsel %vm932, %v887, 0
  %v1240 = vsel %vm932, %v888, 0
  %v1243 = vsel %vm932, %v889, 0
  %v1246 = vsel %vm932, %v890, 0
  %v1249 = vsel %vm932, %v891, 0
  %v1252 = vsel %vm932, %v892, 0
  %v1255 = vsel %vm932, %v893, 0
  %v1258 = vsel %vm932, %v894, 0
  %v1261 = vsel %vm932, %v895, 0
  %v1264 = vsel %vm932, %v896, 0
  %v1267 = vsel %vm932, %v897, 0
  %v1270 = vsel %vm932, %v898, 0
  %v1273 = vsel %vm932, %v899, 0
  %v1276 = vsel %vm932, %v900, 0
  %v1279 = vsel %vm932, %v901, 0
  %v1282 = vsel %vm932, %v902, 0
  %v1285 = vsel %vm932, %v903, 0
  %v1288 = vsel %vm932, %v904, 0
  %v1291 = vsel %vm932, %v905, 0
  %v1294 = vsel %vm932, %v906, 0
  %v1297 = vsel %vm932, %v907, 0
  %v1300 = vsel %vm932, %v908, 0
  %v1303 = vsel %vm932, %v909, 0
  %v1306 = vsel %vm932, %v910, 0
  %v1309 = vsel %vm932, %v911, 0
  %v1312 = vsel %vm932, %v912, 0
  %v1315 = vsel %vm932, %v913, 0
  %1317 = vmatpush.bf16.msra.mxu0 0
  %1318 = vmatpush.bf16.msra.mxu0 0
  %1319 = vmatpush.bf16.msra.mxu0 0
  %1320 = vmatpush.bf16.msra.mxu0 0
  %1321 = vmatpush.bf16.msra.mxu0 0
  %1322 = vmatpush.bf16.msra.mxu0 %v928
  %1323 = vmatpush.bf16.msra.mxu0 %v927
  %1324 = vmatpush.bf16.msra.mxu0 %v926
  %1325 = vmatmul.bf16.gmra.mxu0 %v934
  %v1326 = vpop.f32.mrf.mxu0
  %v1327 = vadd.f32 0.0, %v1326
  %v1328 = vpop.f32.mrf.mxu0
  %v1329 = vadd.f32 0.0, %v1328
  %1330 = vmatmul.bf16.gmra.mxu0 %v937
  %v1331 = vpop.f32.mrf.mxu0
  %v1332 = vadd.f32 0.0, %v1331
  %v1333 = vpop.f32.mrf.mxu0
  %v1334 = vadd.f32 0.0, %v1333
  %1335 = vmatmul.bf16.gmra.mxu0 %v940
  %v1336 = vpop.f32.mrf.mxu0
  %v1337 = vadd.f32 0.0, %v1336
  %v1338 = vpop.f32.mrf.mxu0
  %v1339 = vadd.f32 0.0, %v1338
  %1340 = vmatmul.bf16.gmra.mxu0 %v943
  %v1341 = vpop.f32.mrf.mxu0
  %v1342 = vadd.f32 0.0, %v1341
  %v1343 = vpop.f32.mrf.mxu0
  %v1344 = vadd.f32 0.0, %v1343
  %1345 = vmatmul.bf16.gmra.mxu0 %v946
  %v1346 = vpop.f32.mrf.mxu0
  %v1347 = vadd.f32 0.0, %v1346
  %v1348 = vpop.f32.mrf.mxu0
  %v1349 = vadd.f32 0.0, %v1348
  %1350 = vmatmul.bf16.gmra.mxu0 %v949
  %v1351 = vpop.f32.mrf.mxu0
  %v1352 = vadd.f32 0.0, %v1351
  %v1353 = vpop.f32.mrf.mxu0
  %v1354 = vadd.f32 0.0, %v1353
  %1355 = vmatmul.bf16.gmra.mxu0 %v952
  %v1356 = vpop.f32.mrf.mxu0
  %v1357 = vadd.f32 0.0, %v1356
  %v1358 = vpop.f32.mrf.mxu0
  %v1359 = vadd.f32 0.0, %v1358
  %1360 = vmatmul.bf16.gmra.mxu0 %v955
  %v1361 = vpop.f32.mrf.mxu0
  %v1362 = vadd.f32 0.0, %v1361
  %v1363 = vpop.f32.mrf.mxu0
  %v1364 = vadd.f32 0.0, %v1363
  %1365 = vmatmul.bf16.gmra.mxu0 %v958
  %v1366 = vpop.f32.mrf.mxu0
  %v1367 = vadd.f32 0.0, %v1366
  %v1368 = vpop.f32.mrf.mxu0
  %v1369 = vadd.f32 0.0, %v1368
  %1370 = vmatmul.bf16.gmra.mxu0 %v961
  %v1371 = vpop.f32.mrf.mxu0
  %v1372 = vadd.f32 0.0, %v1371
  %v1373 = vpop.f32.mrf.mxu0
  %v1374 = vadd.f32 0.0, %v1373
  %1375 = vmatmul.bf16.gmra.mxu0 %v964
  %v1376 = vpop.f32.mrf.mxu0
  %v1377 = vadd.f32 0.0, %v1376
  %v1378 = vpop.f32.mrf.mxu0
  %v1379 = vadd.f32 0.0, %v1378
  %1380 = vmatmul.bf16.gmra.mxu0 %v967
  %v1381 = vpop.f32.mrf.mxu0
  %v1382 = vadd.f32 0.0, %v1381
  %v1383 = vpop.f32.mrf.mxu0
  %v1384 = vadd.f32 0.0, %v1383
  %1385 = vmatmul.bf16.gmra.mxu0 %v970
  %v1386 = vpop.f32.mrf.mxu0
  %v1387 = vadd.f32 0.0, %v1386
  %v1388 = vpop.f32.mrf.mxu0
  %v1389 = vadd.f32 0.0, %v1388
  %1390 = vmatmul.bf16.gmra.mxu0 %v973
  %v1391 = vpop.f32.mrf.mxu0
  %v1392 = vadd.f32 0.0, %v1391
  %v1393 = vpop.f32.mrf.mxu0
  %v1394 = vadd.f32 0.0, %v1393
  %1395 = vmatmul.bf16.gmra.mxu0 %v976
  %v1396 = vpop.f32.mrf.mxu0
  %v1397 = vadd.f32 0.0, %v1396
  %v1398 = vpop.f32.mrf.mxu0
  %v1399 = vadd.f32 0.0, %v1398
  %1400 = vmatmul.bf16.gmra.mxu0 %v979
  %v1401 = vpop.f32.mrf.mxu0
  %v1402 = vadd.f32 0.0, %v1401
  %v1403 = vpop.f32.mrf.mxu0
  %v1404 = vadd.f32 0.0, %v1403
  %1405 = vmatmul.bf16.gmra.mxu0 %v982
  %v1406 = vpop.f32.mrf.mxu0
  %v1407 = vadd.f32 0.0, %v1406
  %v1408 = vpop.f32.mrf.mxu0
  %v1409 = vadd.f32 0.0, %v1408
  %1410 = vmatmul.bf16.gmra.mxu0 %v985
  %v1411 = vpop.f32.mrf.mxu0
  %v1412 = vadd.f32 0.0, %v1411
  %v1413 = vpop.f32.mrf.mxu0
  %v1414 = vadd.f32 0.0, %v1413
  %1415 = vmatmul.bf16.gmra.mxu0 %v988
  %v1416 = vpop.f32.mrf.mxu0
  %v1417 = vadd.f32 0.0, %v1416
  %v1418 = vpop.f32.mrf.mxu0
  %v1419 = vadd.f32 0.0, %v1418
  %1420 = vmatmul.bf16.gmra.mxu0 %v991
  %v1421 = vpop.f32.mrf.mxu0
  %v1422 = vadd.f32 0.0, %v1421
  %v1423 = vpop.f32.mrf.mxu0
  %v1424 = vadd.f32 0.0, %v1423
  %1425 = vmatmul.bf16.gmra.mxu0 %v994
  %v1426 = vpop.f32.mrf.mxu0
  %v1427 = vadd.f32 0.0, %v1426
  %v1428 = vpop.f32.mrf.mxu0
  %v1429 = vadd.f32 0.0, %v1428
  %1430 = vmatmul.bf16.gmra.mxu0 %v997
  %v1431 = vpop.f32.mrf.mxu0
  %v1432 = vadd.f32 0.0, %v1431
  %v1433 = vpop.f32.mrf.mxu0
  %v1434 = vadd.f32 0.0, %v1433
  %1435 = vmatmul.bf16.gmra.mxu0 %v1000
  %v1436 = vpop.f32.mrf.mxu0
  %v1437 = vadd.f32 0.0, %v1436
  %v1438 = vpop.f32.mrf.mxu0
  %v1439 = vadd.f32 0.0, %v1438
  %1440 = vmatmul.bf16.gmra.mxu0 %v1003
  %v1441 = vpop.f32.mrf.mxu0
  %v1442 = vadd.f32 0.0, %v1441
  %v1443 = vpop.f32.mrf.mxu0
  %v1444 = vadd.f32 0.0, %v1443
  %1445 = vmatmul.bf16.gmra.mxu0 %v1006
  %v1446 = vpop.f32.mrf.mxu0
  %v1447 = vadd.f32 0.0, %v1446
  %v1448 = vpop.f32.mrf.mxu0
  %v1449 = vadd.f32 0.0, %v1448
  %1450 = vmatmul.bf16.gmra.mxu0 %v1009
  %v1451 = vpop.f32.mrf.mxu0
  %v1452 = vadd.f32 0.0, %v1451
  %v1453 = vpop.f32.mrf.mxu0
  %v1454 = vadd.f32 0.0, %v1453
  %1455 = vmatmul.bf16.gmra.mxu0 %v1012
  %v1456 = vpop.f32.mrf.mxu0
  %v1457 = vadd.f32 0.0, %v1456
  %v1458 = vpop.f32.mrf.mxu0
  %v1459 = vadd.f32 0.0, %v1458
  %1460 = vmatmul.bf16.gmra.mxu0 %v1015
  %v1461 = vpop.f32.mrf.mxu0
  %v1462 = vadd.f32 0.0, %v1461
  %v1463 = vpop.f32.mrf.mxu0
  %v1464 = vadd.f32 0.0, %v1463
  %1465 = vmatmul.bf16.gmra.mxu0 %v1018
  %v1466 = vpop.f32.mrf.mxu0
  %v1467 = vadd.f32 0.0, %v1466
  %v1468 = vpop.f32.mrf.mxu0
  %v1469 = vadd.f32 0.0, %v1468
  %1470 = vmatmul.bf16.gmra.mxu0 %v1021
  %v1471 = vpop.f32.mrf.mxu0
  %v1472 = vadd.f32 0.0, %v1471
  %v1473 = vpop.f32.mrf.mxu0
  %v1474 = vadd.f32 0.0, %v1473
  %1475 = vmatmul.bf16.gmra.mxu0 %v1024
  %v1476 = vpop.f32.mrf.mxu0
  %v1477 = vadd.f32 0.0, %v1476
  %v1478 = vpop.f32.mrf.mxu0
  %v1479 = vadd.f32 0.0, %v1478
  %1480 = vmatmul.bf16.gmra.mxu0 %v1027
  %v1481 = vpop.f32.mrf.mxu0
  %v1482 = vadd.f32 0.0, %v1481
  %v1483 = vpop.f32.mrf.mxu0
  %v1484 = vadd.f32 0.0, %v1483
  %1485 = vmatmul.bf16.gmra.mxu0 %v1030
  %v1486 = vpop.f32.mrf.mxu0
  %v1487 = vadd.f32 0.0, %v1486
  %v1488 = vpop.f32.mrf.mxu0
  %v1489 = vadd.f32 0.0, %v1488
  %1490 = vmatmul.bf16.gmra.mxu0 %v1033
  %v1491 = vpop.f32.mrf.mxu0
  %v1492 = vadd.f32 0.0, %v1491
  %v1493 = vpop.f32.mrf.mxu0
  %v1494 = vadd.f32 0.0, %v1493
  %1495 = vmatmul.bf16.gmra.mxu0 %v1036
  %v1496 = vpop.f32.mrf.mxu0
  %v1497 = vadd.f32 0.0, %v1496
  %v1498 = vpop.f32.mrf.mxu0
  %v1499 = vadd.f32 0.0, %v1498
  %1500 = vmatmul.bf16.gmra.mxu0 %v1039
  %v1501 = vpop.f32.mrf.mxu0
  %v1502 = vadd.f32 0.0, %v1501
  %v1503 = vpop.f32.mrf.mxu0
  %v1504 = vadd.f32 0.0, %v1503
  %1505 = vmatmul.bf16.gmra.mxu0 %v1042
  %v1506 = vpop.f32.mrf.mxu0
  %v1507 = vadd.f32 0.0, %v1506
  %v1508 = vpop.f32.mrf.mxu0
  %v1509 = vadd.f32 0.0, %v1508
  %1510 = vmatmul.bf16.gmra.mxu0 %v1045
  %v1511 = vpop.f32.mrf.mxu0
  %v1512 = vadd.f32 0.0, %v1511
  %v1513 = vpop.f32.mrf.mxu0
  %v1514 = vadd.f32 0.0, %v1513
  %1515 = vmatmul.bf16.gmra.mxu0 %v1048
  %v1516 = vpop.f32.mrf.mxu0
  %v1517 = vadd.f32 0.0, %v1516
  %v1518 = vpop.f32.mrf.mxu0
  %v1519 = vadd.f32 0.0, %v1518
  %1520 = vmatmul.bf16.gmra.mxu0 %v1051
  %v1521 = vpop.f32.mrf.mxu0
  %v1522 = vadd.f32 0.0, %v1521
  %v1523 = vpop.f32.mrf.mxu0
  %v1524 = vadd.f32 0.0, %v1523
  %1525 = vmatmul.bf16.gmra.mxu0 %v1054
  %v1526 = vpop.f32.mrf.mxu0
  %v1527 = vadd.f32 0.0, %v1526
  %v1528 = vpop.f32.mrf.mxu0
  %v1529 = vadd.f32 0.0, %v1528
  %1530 = vmatmul.bf16.gmra.mxu0 %v1057
  %v1531 = vpop.f32.mrf.mxu0
  %v1532 = vadd.f32 0.0, %v1531
  %v1533 = vpop.f32.mrf.mxu0
  %v1534 = vadd.f32 0.0, %v1533
  %1535 = vmatmul.bf16.gmra.mxu0 %v1060
  %v1536 = vpop.f32.mrf.mxu0
  %v1537 = vadd.f32 0.0, %v1536
  %v1538 = vpop.f32.mrf.mxu0
  %v1539 = vadd.f32 0.0, %v1538
  %1540 = vmatmul.bf16.gmra.mxu0 %v1063
  %v1541 = vpop.f32.mrf.mxu0
  %v1542 = vadd.f32 0.0, %v1541
  %v1543 = vpop.f32.mrf.mxu0
  %v1544 = vadd.f32 0.0, %v1543
  %1545 = vmatmul.bf16.gmra.mxu0 %v1066
  %v1546 = vpop.f32.mrf.mxu0
  %v1547 = vadd.f32 0.0, %v1546
  %v1548 = vpop.f32.mrf.mxu0
  %v1549 = vadd.f32 0.0, %v1548
  %1550 = vmatmul.bf16.gmra.mxu0 %v1069
  %v1551 = vpop.f32.mrf.mxu0
  %v1552 = vadd.f32 0.0, %v1551
  %v1553 = vpop.f32.mrf.mxu0
  %v1554 = vadd.f32 0.0, %v1553
  %1555 = vmatmul.bf16.gmra.mxu0 %v1072
  %v1556 = vpop.f32.mrf.mxu0
  %v1557 = vadd.f32 0.0, %v1556
  %v1558 = vpop.f32.mrf.mxu0
  %v1559 = vadd.f32 0.0, %v1558
  %1560 = vmatmul.bf16.gmra.mxu0 %v1075
  %v1561 = vpop.f32.mrf.mxu0
  %v1562 = vadd.f32 0.0, %v1561
  %v1563 = vpop.f32.mrf.mxu0
  %v1564 = vadd.f32 0.0, %v1563
  %1565 = vmatmul.bf16.gmra.mxu0 %v1078
  %v1566 = vpop.f32.mrf.mxu0
  %v1567 = vadd.f32 0.0, %v1566
  %v1568 = vpop.f32.mrf.mxu0
  %v1569 = vadd.f32 0.0, %v1568
  %1570 = vmatmul.bf16.gmra.mxu0 %v1081
  %v1571 = vpop.f32.mrf.mxu0
  %v1572 = vadd.f32 0.0, %v1571
  %v1573 = vpop.f32.mrf.mxu0
  %v1574 = vadd.f32 0.0, %v1573
  %1575 = vmatmul.bf16.gmra.mxu0 %v1084
  %v1576 = vpop.f32.mrf.mxu0
  %v1577 = vadd.f32 0.0, %v1576
  %v1578 = vpop.f32.mrf.mxu0
  %v1579 = vadd.f32 0.0, %v1578
  %1580 = vmatmul.bf16.gmra.mxu0 %v1087
  %v1581 = vpop.f32.mrf.mxu0
  %v1582 = vadd.f32 0.0, %v1581
  %v1583 = vpop.f32.mrf.mxu0
  %v1584 = vadd.f32 0.0, %v1583
  %1585 = vmatmul.bf16.gmra.mxu0 %v1090
  %v1586 = vpop.f32.mrf.mxu0
  %v1587 = vadd.f32 0.0, %v1586
  %v1588 = vpop.f32.mrf.mxu0
  %v1589 = vadd.f32 0.0, %v1588
  %1590 = vmatmul.bf16.gmra.mxu0 %v1093
  %v1591 = vpop.f32.mrf.mxu0
  %v1592 = vadd.f32 0.0, %v1591
  %v1593 = vpop.f32.mrf.mxu0
  %v1594 = vadd.f32 0.0, %v1593
  %1595 = vmatmul.bf16.gmra.mxu0 %v1096
  %v1596 = vpop.f32.mrf.mxu0
  %v1597 = vadd.f32 0.0, %v1596
  %v1598 = vpop.f32.mrf.mxu0
  %v1599 = vadd.f32 0.0, %v1598
  %1600 = vmatmul.bf16.gmra.mxu0 %v1099
  %v1601 = vpop.f32.mrf.mxu0
  %v1602 = vadd.f32 0.0, %v1601
  %v1603 = vpop.f32.mrf.mxu0
  %v1604 = vadd.f32 0.0, %v1603
  %1605 = vmatmul.bf16.gmra.mxu0 %v1102
  %v1606 = vpop.f32.mrf.mxu0
  %v1607 = vadd.f32 0.0, %v1606
  %v1608 = vpop.f32.mrf.mxu0
  %v1609 = vadd.f32 0.0, %v1608
  %1610 = vmatmul.bf16.gmra.mxu0 %v1105
  %v1611 = vpop.f32.mrf.mxu0
  %v1612 = vadd.f32 0.0, %v1611
  %v1613 = vpop.f32.mrf.mxu0
  %v1614 = vadd.f32 0.0, %v1613
  %1615 = vmatmul.bf16.gmra.mxu0 %v1108
  %v1616 = vpop.f32.mrf.mxu0
  %v1617 = vadd.f32 0.0, %v1616
  %v1618 = vpop.f32.mrf.mxu0
  %v1619 = vadd.f32 0.0, %v1618
  %1620 = vmatmul.bf16.gmra.mxu0 %v1111
  %v1621 = vpop.f32.mrf.mxu0
  %v1622 = vadd.f32 0.0, %v1621
  %v1623 = vpop.f32.mrf.mxu0
  %v1624 = vadd.f32 0.0, %v1623
  %1625 = vmatmul.bf16.gmra.mxu0 %v1114
  %v1626 = vpop.f32.mrf.mxu0
  %v1627 = vadd.f32 0.0, %v1626
  %v1628 = vpop.f32.mrf.mxu0
  %v1629 = vadd.f32 0.0, %v1628
  %1630 = vmatmul.bf16.gmra.mxu0 %v1117
  %v1631 = vpop.f32.mrf.mxu0
  %v1632 = vadd.f32 0.0, %v1631
  %v1633 = vpop.f32.mrf.mxu0
  %v1634 = vadd.f32 0.0, %v1633
  %1635 = vmatmul.bf16.gmra.mxu0 %v1120
  %v1636 = vpop.f32.mrf.mxu0
  %v1637 = vadd.f32 0.0, %v1636
  %v1638 = vpop.f32.mrf.mxu0
  %v1639 = vadd.f32 0.0, %v1638
  %1640 = vmatmul.bf16.gmra.mxu0 %v1123
  %v1641 = vpop.f32.mrf.mxu0
  %v1642 = vadd.f32 0.0, %v1641
  %v1643 = vpop.f32.mrf.mxu0
  %v1644 = vadd.f32 0.0, %v1643
  %1645 = vmatmul.bf16.gmra.mxu0 %v1126
  %v1646 = vpop.f32.mrf.mxu0
  %v1647 = vadd.f32 0.0, %v1646
  %v1648 = vpop.f32.mrf.mxu0
  %v1649 = vadd.f32 0.0, %v1648
  %1650 = vmatmul.bf16.gmra.mxu0 %v1129
  %v1651 = vpop.f32.mrf.mxu0
  %v1652 = vadd.f32 0.0, %v1651
  %v1653 = vpop.f32.mrf.mxu0
  %v1654 = vadd.f32 0.0, %v1653
  %1655 = vmatmul.bf16.gmra.mxu0 %v1132
  %v1656 = vpop.f32.mrf.mxu0
  %v1657 = vadd.f32 0.0, %v1656
  %v1658 = vpop.f32.mrf.mxu0
  %v1659 = vadd.f32 0.0, %v1658
  %1660 = vmatmul.bf16.gmra.mxu0 %v1135
  %v1661 = vpop.f32.mrf.mxu0
  %v1662 = vadd.f32 0.0, %v1661
  %v1663 = vpop.f32.mrf.mxu0
  %v1664 = vadd.f32 0.0, %v1663
  %1665 = vmatmul.bf16.gmra.mxu0 %v1138
  %v1666 = vpop.f32.mrf.mxu0
  %v1667 = vadd.f32 0.0, %v1666
  %v1668 = vpop.f32.mrf.mxu0
  %v1669 = vadd.f32 0.0, %v1668
  %1670 = vmatmul.bf16.gmra.mxu0 %v1141
  %v1671 = vpop.f32.mrf.mxu0
  %v1672 = vadd.f32 0.0, %v1671
  %v1673 = vpop.f32.mrf.mxu0
  %v1674 = vadd.f32 0.0, %v1673
  %1675 = vmatmul.bf16.gmra.mxu0 %v1144
  %v1676 = vpop.f32.mrf.mxu0
  %v1677 = vadd.f32 0.0, %v1676
  %v1678 = vpop.f32.mrf.mxu0
  %v1679 = vadd.f32 0.0, %v1678
  %1680 = vmatmul.bf16.gmra.mxu0 %v1147
  %v1681 = vpop.f32.mrf.mxu0
  %v1682 = vadd.f32 0.0, %v1681
  %v1683 = vpop.f32.mrf.mxu0
  %v1684 = vadd.f32 0.0, %v1683
  %1685 = vmatmul.bf16.gmra.mxu0 %v1150
  %v1686 = vpop.f32.mrf.mxu0
  %v1687 = vadd.f32 0.0, %v1686
  %v1688 = vpop.f32.mrf.mxu0
  %v1689 = vadd.f32 0.0, %v1688
  %1690 = vmatmul.bf16.gmra.mxu0 %v1153
  %v1691 = vpop.f32.mrf.mxu0
  %v1692 = vadd.f32 0.0, %v1691
  %v1693 = vpop.f32.mrf.mxu0
  %v1694 = vadd.f32 0.0, %v1693
  %1695 = vmatmul.bf16.gmra.mxu0 %v1156
  %v1696 = vpop.f32.mrf.mxu0
  %v1697 = vadd.f32 0.0, %v1696
  %v1698 = vpop.f32.mrf.mxu0
  %v1699 = vadd.f32 0.0, %v1698
  %1700 = vmatmul.bf16.gmra.mxu0 %v1159
  %v1701 = vpop.f32.mrf.mxu0
  %v1702 = vadd.f32 0.0, %v1701
  %v1703 = vpop.f32.mrf.mxu0
  %v1704 = vadd.f32 0.0, %v1703
  %1705 = vmatmul.bf16.gmra.mxu0 %v1162
  %v1706 = vpop.f32.mrf.mxu0
  %v1707 = vadd.f32 0.0, %v1706
  %v1708 = vpop.f32.mrf.mxu0
  %v1709 = vadd.f32 0.0, %v1708
  %1710 = vmatmul.bf16.gmra.mxu0 %v1165
  %v1711 = vpop.f32.mrf.mxu0
  %v1712 = vadd.f32 0.0, %v1711
  %v1713 = vpop.f32.mrf.mxu0
  %v1714 = vadd.f32 0.0, %v1713
  %1715 = vmatmul.bf16.gmra.mxu0 %v1168
  %v1716 = vpop.f32.mrf.mxu0
  %v1717 = vadd.f32 0.0, %v1716
  %v1718 = vpop.f32.mrf.mxu0
  %v1719 = vadd.f32 0.0, %v1718
  %1720 = vmatmul.bf16.gmra.mxu0 %v1171
  %v1721 = vpop.f32.mrf.mxu0
  %v1722 = vadd.f32 0.0, %v1721
  %v1723 = vpop.f32.mrf.mxu0
  %v1724 = vadd.f32 0.0, %v1723
  %1725 = vmatmul.bf16.gmra.mxu0 %v1174
  %v1726 = vpop.f32.mrf.mxu0
  %v1727 = vadd.f32 0.0, %v1726
  %v1728 = vpop.f32.mrf.mxu0
  %v1729 = vadd.f32 0.0, %v1728
  %1730 = vmatmul.bf16.gmra.mxu0 %v1177
  %v1731 = vpop.f32.mrf.mxu0
  %v1732 = vadd.f32 0.0, %v1731
  %v1733 = vpop.f32.mrf.mxu0
  %v1734 = vadd.f32 0.0, %v1733
  %1735 = vmatmul.bf16.gmra.mxu0 %v1180
  %v1736 = vpop.f32.mrf.mxu0
  %v1737 = vadd.f32 0.0, %v1736
  %v1738 = vpop.f32.mrf.mxu0
  %v1739 = vadd.f32 0.0, %v1738
  %1740 = vmatmul.bf16.gmra.mxu0 %v1183
  %v1741 = vpop.f32.mrf.mxu0
  %v1742 = vadd.f32 0.0, %v1741
  %v1743 = vpop.f32.mrf.mxu0
  %v1744 = vadd.f32 0.0, %v1743
  %1745 = vmatmul.bf16.gmra.mxu0 %v1186
  %v1746 = vpop.f32.mrf.mxu0
  %v1747 = vadd.f32 0.0, %v1746
  %v1748 = vpop.f32.mrf.mxu0
  %v1749 = vadd.f32 0.0, %v1748
  %1750 = vmatmul.bf16.gmra.mxu0 %v1189
  %v1751 = vpop.f32.mrf.mxu0
  %v1752 = vadd.f32 0.0, %v1751
  %v1753 = vpop.f32.mrf.mxu0
  %v1754 = vadd.f32 0.0, %v1753
  %1755 = vmatmul.bf16.gmra.mxu0 %v1192
  %v1756 = vpop.f32.mrf.mxu0
  %v1757 = vadd.f32 0.0, %v1756
  %v1758 = vpop.f32.mrf.mxu0
  %v1759 = vadd.f32 0.0, %v1758
  %1760 = vmatmul.bf16.gmra.mxu0 %v1195
  %v1761 = vpop.f32.mrf.mxu0
  %v1762 = vadd.f32 0.0, %v1761
  %v1763 = vpop.f32.mrf.mxu0
  %v1764 = vadd.f32 0.0, %v1763
  %1765 = vmatmul.bf16.gmra.mxu0 %v1198
  %v1766 = vpop.f32.mrf.mxu0
  %v1767 = vadd.f32 0.0, %v1766
  %v1768 = vpop.f32.mrf.mxu0
  %v1769 = vadd.f32 0.0, %v1768
  %1770 = vmatmul.bf16.gmra.mxu0 %v1201
  %v1771 = vpop.f32.mrf.mxu0
  %v1772 = vadd.f32 0.0, %v1771
  %v1773 = vpop.f32.mrf.mxu0
  %v1774 = vadd.f32 0.0, %v1773
  %1775 = vmatmul.bf16.gmra.mxu0 %v1204
  %v1776 = vpop.f32.mrf.mxu0
  %v1777 = vadd.f32 0.0, %v1776
  %v1778 = vpop.f32.mrf.mxu0
  %v1779 = vadd.f32 0.0, %v1778
  %1780 = vmatmul.bf16.gmra.mxu0 %v1207
  %v1781 = vpop.f32.mrf.mxu0
  %v1782 = vadd.f32 0.0, %v1781
  %v1783 = vpop.f32.mrf.mxu0
  %v1784 = vadd.f32 0.0, %v1783
  %1785 = vmatmul.bf16.gmra.mxu0 %v1210
  %v1786 = vpop.f32.mrf.mxu0
  %v1787 = vadd.f32 0.0, %v1786
  %v1788 = vpop.f32.mrf.mxu0
  %v1789 = vadd.f32 0.0, %v1788
  %1790 = vmatmul.bf16.gmra.mxu0 %v1213
  %v1791 = vpop.f32.mrf.mxu0
  %v1792 = vadd.f32 0.0, %v1791
  %v1793 = vpop.f32.mrf.mxu0
  %v1794 = vadd.f32 0.0, %v1793
  %1795 = vmatmul.bf16.gmra.mxu0 %v1216
  %v1796 = vpop.f32.mrf.mxu0
  %v1797 = vadd.f32 0.0, %v1796
  %v1798 = vpop.f32.mrf.mxu0
  %v1799 = vadd.f32 0.0, %v1798
  %1800 = vmatmul.bf16.gmra.mxu0 %v1219
  %v1801 = vpop.f32.mrf.mxu0
  %v1802 = vadd.f32 0.0, %v1801
  %v1803 = vpop.f32.mrf.mxu0
  %v1804 = vadd.f32 0.0, %v1803
  %1805 = vmatmul.bf16.gmra.mxu0 %v1222
  %v1806 = vpop.f32.mrf.mxu0
  %v1807 = vadd.f32 0.0, %v1806
  %v1808 = vpop.f32.mrf.mxu0
  %v1809 = vadd.f32 0.0, %v1808
  %1810 = vmatmul.bf16.gmra.mxu0 %v1225
  %v1811 = vpop.f32.mrf.mxu0
  %v1812 = vadd.f32 0.0, %v1811
  %v1813 = vpop.f32.mrf.mxu0
  %v1814 = vadd.f32 0.0, %v1813
  %1815 = vmatmul.bf16.gmra.mxu0 %v1228
  %v1816 = vpop.f32.mrf.mxu0
  %v1817 = vadd.f32 0.0, %v1816
  %v1818 = vpop.f32.mrf.mxu0
  %v1819 = vadd.f32 0.0, %v1818
  %1820 = vmatmul.bf16.gmra.mxu0 %v1231
  %v1821 = vpop.f32.mrf.mxu0
  %v1822 = vadd.f32 0.0, %v1821
  %v1823 = vpop.f32.mrf.mxu0
  %v1824 = vadd.f32 0.0, %v1823
  %1825 = vmatmul.bf16.gmra.mxu0 %v1234
  %v1826 = vpop.f32.mrf.mxu0
  %v1827 = vadd.f32 0.0, %v1826
  %v1828 = vpop.f32.mrf.mxu0
  %v1829 = vadd.f32 0.0, %v1828
  %1830 = vmatmul.bf16.gmra.mxu0 %v1237
  %v1831 = vpop.f32.mrf.mxu0
  %v1832 = vadd.f32 0.0, %v1831
  %v1833 = vpop.f32.mrf.mxu0
  %v1834 = vadd.f32 0.0, %v1833
  %1835 = vmatmul.bf16.gmra.mxu0 %v1240
  %v1836 = vpop.f32.mrf.mxu0
  %v1837 = vadd.f32 0.0, %v1836
  %v1838 = vpop.f32.mrf.mxu0
  %v1839 = vadd.f32 0.0, %v1838
  %1840 = vmatmul.bf16.gmra.mxu0 %v1243
  %v1841 = vpop.f32.mrf.mxu0
  %v1842 = vadd.f32 0.0, %v1841
  %v1843 = vpop.f32.mrf.mxu0
  %v1844 = vadd.f32 0.0, %v1843
  %1845 = vmatmul.bf16.gmra.mxu0 %v1246
  %v1846 = vpop.f32.mrf.mxu0
  %v1847 = vadd.f32 0.0, %v1846
  %v1848 = vpop.f32.mrf.mxu0
  %v1849 = vadd.f32 0.0, %v1848
  %1850 = vmatmul.bf16.gmra.mxu0 %v1249
  %v1851 = vpop.f32.mrf.mxu0
  %v1852 = vadd.f32 0.0, %v1851
  %v1853 = vpop.f32.mrf.mxu0
  %v1854 = vadd.f32 0.0, %v1853
  %1855 = vmatmul.bf16.gmra.mxu0 %v1252
  %v1856 = vpop.f32.mrf.mxu0
  %v1857 = vadd.f32 0.0, %v1856
  %v1858 = vpop.f32.mrf.mxu0
  %v1859 = vadd.f32 0.0, %v1858
  %1860 = vmatmul.bf16.gmra.mxu0 %v1255
  %v1861 = vpop.f32.mrf.mxu0
  %v1862 = vadd.f32 0.0, %v1861
  %v1863 = vpop.f32.mrf.mxu0
  %v1864 = vadd.f32 0.0, %v1863
  %1865 = vmatmul.bf16.gmra.mxu0 %v1258
  %v1866 = vpop.f32.mrf.mxu0
  %v1867 = vadd.f32 0.0, %v1866
  %v1868 = vpop.f32.mrf.mxu0
  %v1869 = vadd.f32 0.0, %v1868
  %1870 = vmatmul.bf16.gmra.mxu0 %v1261
  %v1871 = vpop.f32.mrf.mxu0
  %v1872 = vadd.f32 0.0, %v1871
  %v1873 = vpop.f32.mrf.mxu0
  %v1874 = vadd.f32 0.0, %v1873
  %1875 = vmatmul.bf16.gmra.mxu0 %v1264
  %v1876 = vpop.f32.mrf.mxu0
  %v1877 = vadd.f32 0.0, %v1876
  %v1878 = vpop.f32.mrf.mxu0
  %v1879 = vadd.f32 0.0, %v1878
  %1880 = vmatmul.bf16.gmra.mxu0 %v1267
  %v1881 = vpop.f32.mrf.mxu0
  %v1882 = vadd.f32 0.0, %v1881
  %v1883 = vpop.f32.mrf.mxu0
  %v1884 = vadd.f32 0.0, %v1883
  %1885 = vmatmul.bf16.gmra.mxu0 %v1270
  %v1886 = vpop.f32.mrf.mxu0
  %v1887 = vadd.f32 0.0, %v1886
  %v1888 = vpop.f32.mrf.mxu0
  %v1889 = vadd.f32 0.0, %v1888
  %1890 = vmatmul.bf16.gmra.mxu0 %v1273
  %v1891 = vpop.f32.mrf.mxu0
  %v1892 = vadd.f32 0.0, %v1891
  %v1893 = vpop.f32.mrf.mxu0
  %v1894 = vadd.f32 0.0, %v1893
  %1895 = vmatmul.bf16.gmra.mxu0 %v1276
  %v1896 = vpop.f32.mrf.mxu0
  %v1897 = vadd.f32 0.0, %v1896
  %v1898 = vpop.f32.mrf.mxu0
  %v1899 = vadd.f32 0.0, %v1898
  %1900 = vmatmul.bf16.gmra.mxu0 %v1279
  %v1901 = vpop.f32.mrf.mxu0
  %v1902 = vadd.f32 0.0, %v1901
  %v1903 = vpop.f32.mrf.mxu0
  %v1904 = vadd.f32 0.0, %v1903
  %1905 = vmatmul.bf16.gmra.mxu0 %v1282
  %v1906 = vpop.f32.mrf.mxu0
  %v1907 = vadd.f32 0.0, %v1906
  %v1908 = vpop.f32.mrf.mxu0
  %v1909 = vadd.f32 0.0, %v1908
  %1910 = vmatmul.bf16.gmra.mxu0 %v1285
  %v1911 = vpop.f32.mrf.mxu0
  %v1912 = vadd.f32 0.0, %v1911
  %v1913 = vpop.f32.mrf.mxu0
  %v1914 = vadd.f32 0.0, %v1913
  %1915 = vmatmul.bf16.gmra.mxu0 %v1288
  %v1916 = vpop.f32.mrf.mxu0
  %v1917 = vadd.f32 0.0, %v1916
  %v1918 = vpop.f32.mrf.mxu0
  %v1919 = vadd.f32 0.0, %v1918
  %1920 = vmatmul.bf16.gmra.mxu0 %v1291
  %v1921 = vpop.f32.mrf.mxu0
  %v1922 = vadd.f32 0.0, %v1921
  %v1923 = vpop.f32.mrf.mxu0
  %v1924 = vadd.f32 0.0, %v1923
  %1925 = vmatmul.bf16.gmra.mxu0 %v1294
  %v1926 = vpop.f32.mrf.mxu0
  %v1927 = vadd.f32 0.0, %v1926
  %v1928 = vpop.f32.mrf.mxu0
  %v1929 = vadd.f32 0.0, %v1928
  %1930 = vmatmul.bf16.gmra.mxu0 %v1297
  %v1931 = vpop.f32.mrf.mxu0
  %v1932 = vadd.f32 0.0, %v1931
  %v1933 = vpop.f32.mrf.mxu0
  %v1934 = vadd.f32 0.0, %v1933
  %1935 = vmatmul.bf16.gmra.mxu0 %v1300
  %v1936 = vpop.f32.mrf.mxu0
  %v1937 = vadd.f32 0.0, %v1936
  %v1938 = vpop.f32.mrf.mxu0
  %v1939 = vadd.f32 0.0, %v1938
  %1940 = vmatmul.bf16.gmra.mxu0 %v1303
  %v1941 = vpop.f32.mrf.mxu0
  %v1942 = vadd.f32 0.0, %v1941
  %v1943 = vpop.f32.mrf.mxu0
  %v1944 = vadd.f32 0.0, %v1943
  %1945 = vmatmul.bf16.gmra.mxu0 %v1306
  %v1946 = vpop.f32.mrf.mxu0
  %v1947 = vadd.f32 0.0, %v1946
  %v1948 = vpop.f32.mrf.mxu0
  %v1949 = vadd.f32 0.0, %v1948
  %1950 = vmatmul.bf16.gmra.mxu0 %v1309
  %v1951 = vpop.f32.mrf.mxu0
  %v1952 = vadd.f32 0.0, %v1951
  %v1953 = vpop.f32.mrf.mxu0
  %v1954 = vadd.f32 0.0, %v1953
  %1955 = vmatmul.bf16.gmra.mxu0 %v1312
  %v1956 = vpop.f32.mrf.mxu0
  %v1957 = vadd.f32 0.0, %v1956
  %v1958 = vpop.f32.mrf.mxu0
  %v1959 = vadd.f32 0.0, %v1958
  %1960 = vmatmul.bf16.gmra.mxu0 %v1315
  %v1961 = vpop.f32.mrf.mxu0
  %v1962 = vadd.f32 0.0, %v1961
  %v1963 = vpop.f32.mrf.mxu0
  %v1964 = vadd.f32 0.0, %v1963
  %1965 = vdwg.mxu0
  %vm1966 = vcmp.ge.f32.partialorder %v1327, 0.0
  %vm1967 = vcmp.ge.f32.partialorder %v1329, 0.0
  %vm1968 = vcmp.ge.f32.partialorder %v1332, 0.0
  %vm1969 = vcmp.ge.f32.partialorder %v1334, 0.0
  %vm1970 = vcmp.ge.f32.partialorder %v1337, 0.0
  %vm1971 = vcmp.ge.f32.partialorder %v1339, 0.0
  %vm1972 = vcmp.ge.f32.partialorder %v1342, 0.0
  %vm1973 = vcmp.ge.f32.partialorder %v1344, 0.0
  %vm1974 = vcmp.ge.f32.partialorder %v1347, 0.0
  %vm1975 = vcmp.ge.f32.partialorder %v1349, 0.0
  %vm1976 = vcmp.ge.f32.partialorder %v1352, 0.0
  %vm1977 = vcmp.ge.f32.partialorder %v1354, 0.0
  %vm1978 = vcmp.ge.f32.partialorder %v1357, 0.0
  %vm1979 = vcmp.ge.f32.partialorder %v1359, 0.0
  %vm1980 = vcmp.ge.f32.partialorder %v1362, 0.0
  %vm1981 = vcmp.ge.f32.partialorder %v1364, 0.0
  %vm1982 = vcmp.ge.f32.partialorder %v1367, 0.0
  %vm1983 = vcmp.ge.f32.partialorder %v1369, 0.0
  %vm1984 = vcmp.ge.f32.partialorder %v1372, 0.0
  %vm1985 = vcmp.ge.f32.partialorder %v1374, 0.0
  %vm1986 = vcmp.ge.f32.partialorder %v1377, 0.0
  %vm1987 = vcmp.ge.f32.partialorder %v1379, 0.0
  %vm1988 = vcmp.ge.f32.partialorder %v1382, 0.0
  %vm1989 = vcmp.ge.f32.partialorder %v1384, 0.0
  %vm1990 = vcmp.ge.f32.partialorder %v1387, 0.0
  %vm1991 = vcmp.ge.f32.partialorder %v1389, 0.0
  %vm1992 = vcmp.ge.f32.partialorder %v1392, 0.0
  %vm1993 = vcmp.ge.f32.partialorder %v1394, 0.0
  %vm1994 = vcmp.ge.f32.partialorder %v1397, 0.0
  %vm1995 = vcmp.ge.f32.partialorder %v1399, 0.0
  %vm1996 = vcmp.ge.f32.partialorder %v1402, 0.0
  %vm1997 = vcmp.ge.f32.partialorder %v1404, 0.0
  %vm1998 = vcmp.ge.f32.partialorder %v1407, 0.0
  %vm1999 = vcmp.ge.f32.partialorder %v1409, 0.0
  %vm2000 = vcmp.ge.f32.partialorder %v1412, 0.0
  %vm2001 = vcmp.ge.f32.partialorder %v1414, 0.0
  %vm2002 = vcmp.ge.f32.partialorder %v1417, 0.0
  %vm2003 = vcmp.ge.f32.partialorder %v1419, 0.0
  %vm2004 = vcmp.ge.f32.partialorder %v1422, 0.0
  %vm2005 = vcmp.ge.f32.partialorder %v1424, 0.0
  %vm2006 = vcmp.ge.f32.partialorder %v1427, 0.0
  %vm2007 = vcmp.ge.f32.partialorder %v1429, 0.0
  %vm2008 = vcmp.ge.f32.partialorder %v1432, 0.0
  %vm2009 = vcmp.ge.f32.partialorder %v1434, 0.0
  %vm2010 = vcmp.ge.f32.partialorder %v1437, 0.0
  %vm2011 = vcmp.ge.f32.partialorder %v1439, 0.0
  %vm2012 = vcmp.ge.f32.partialorder %v1442, 0.0
  %vm2013 = vcmp.ge.f32.partialorder %v1444, 0.0
  %vm2014 = vcmp.ge.f32.partialorder %v1447, 0.0
  %vm2015 = vcmp.ge.f32.partialorder %v1449, 0.0
  %vm2016 = vcmp.ge.f32.partialorder %v1452, 0.0
  %vm2017 = vcmp.ge.f32.partialorder %v1454, 0.0
  %vm2018 = vcmp.ge.f32.partialorder %v1457, 0.0
  %vm2019 = vcmp.ge.f32.partialorder %v1459, 0.0
  %vm2020 = vcmp.ge.f32.partialorder %v1462, 0.0
  %vm2021 = vcmp.ge.f32.partialorder %v1464, 0.0
  %vm2022 = vcmp.ge.f32.partialorder %v1467, 0.0
  %vm2023 = vcmp.ge.f32.partialorder %v1469, 0.0
  %vm2024 = vcmp.ge.f32.partialorder %v1472, 0.0
  %vm2025 = vcmp.ge.f32.partialorder %v1474, 0.0
  %vm2026 = vcmp.ge.f32.partialorder %v1477, 0.0
  %vm2027 = vcmp.ge.f32.partialorder %v1479, 0.0
  %vm2028 = vcmp.ge.f32.partialorder %v1482, 0.0
  %vm2029 = vcmp.ge.f32.partialorder %v1484, 0.0
  %vm2030 = vcmp.ge.f32.partialorder %v1487, 0.0
  %vm2031 = vcmp.ge.f32.partialorder %v1489, 0.0
  %vm2032 = vcmp.ge.f32.partialorder %v1492, 0.0
  %vm2033 = vcmp.ge.f32.partialorder %v1494, 0.0
  %vm2034 = vcmp.ge.f32.partialorder %v1497, 0.0
  %vm2035 = vcmp.ge.f32.partialorder %v1499, 0.0
  %vm2036 = vcmp.ge.f32.partialorder %v1502, 0.0
  %vm2037 = vcmp.ge.f32.partialorder %v1504, 0.0
  %vm2038 = vcmp.ge.f32.partialorder %v1507, 0.0
  %vm2039 = vcmp.ge.f32.partialorder %v1509, 0.0
  %vm2040 = vcmp.ge.f32.partialorder %v1512, 0.0
  %vm2041 = vcmp.ge.f32.partialorder %v1514, 0.0
  %vm2042 = vcmp.ge.f32.partialorder %v1517, 0.0
  %vm2043 = vcmp.ge.f32.partialorder %v1519, 0.0
  %vm2044 = vcmp.ge.f32.partialorder %v1522, 0.0
  %vm2045 = vcmp.ge.f32.partialorder %v1524, 0.0
  %vm2046 = vcmp.ge.f32.partialorder %v1527, 0.0
  %vm2047 = vcmp.ge.f32.partialorder %v1529, 0.0
  %vm2048 = vcmp.ge.f32.partialorder %v1532, 0.0
  %vm2049 = vcmp.ge.f32.partialorder %v1534, 0.0
  %vm2050 = vcmp.ge.f32.partialorder %v1537, 0.0
  %vm2051 = vcmp.ge.f32.partialorder %v1539, 0.0
  %vm2052 = vcmp.ge.f32.partialorder %v1542, 0.0
  %vm2053 = vcmp.ge.f32.partialorder %v1544, 0.0
  %vm2054 = vcmp.ge.f32.partialorder %v1547, 0.0
  %vm2055 = vcmp.ge.f32.partialorder %v1549, 0.0
  %vm2056 = vcmp.ge.f32.partialorder %v1552, 0.0
  %vm2057 = vcmp.ge.f32.partialorder %v1554, 0.0
  %vm2058 = vcmp.ge.f32.partialorder %v1557, 0.0
  %vm2059 = vcmp.ge.f32.partialorder %v1559, 0.0
  %vm2060 = vcmp.ge.f32.partialorder %v1562, 0.0
  %vm2061 = vcmp.ge.f32.partialorder %v1564, 0.0
  %vm2062 = vcmp.ge.f32.partialorder %v1567, 0.0
  %vm2063 = vcmp.ge.f32.partialorder %v1569, 0.0
  %vm2064 = vcmp.ge.f32.partialorder %v1572, 0.0
  %vm2065 = vcmp.ge.f32.partialorder %v1574, 0.0
  %vm2066 = vcmp.ge.f32.partialorder %v1577, 0.0
  %vm2067 = vcmp.ge.f32.partialorder %v1579, 0.0
  %vm2068 = vcmp.ge.f32.partialorder %v1582, 0.0
  %vm2069 = vcmp.ge.f32.partialorder %v1584, 0.0
  %vm2070 = vcmp.ge.f32.partialorder %v1587, 0.0
  %vm2071 = vcmp.ge.f32.partialorder %v1589, 0.0
  %vm2072 = vcmp.ge.f32.partialorder %v1592, 0.0
  %vm2073 = vcmp.ge.f32.partialorder %v1594, 0.0
  %vm2074 = vcmp.ge.f32.partialorder %v1597, 0.0
  %vm2075 = vcmp.ge.f32.partialorder %v1599, 0.0
  %vm2076 = vcmp.ge.f32.partialorder %v1602, 0.0
  %vm2077 = vcmp.ge.f32.partialorder %v1604, 0.0
  %vm2078 = vcmp.ge.f32.partialorder %v1607, 0.0
  %vm2079 = vcmp.ge.f32.partialorder %v1609, 0.0
  %vm2080 = vcmp.ge.f32.partialorder %v1612, 0.0
  %vm2081 = vcmp.ge.f32.partialorder %v1614, 0.0
  %vm2082 = vcmp.ge.f32.partialorder %v1617, 0.0
  %vm2083 = vcmp.ge.f32.partialorder %v1619, 0.0
  %vm2084 = vcmp.ge.f32.partialorder %v1622, 0.0
  %vm2085 = vcmp.ge.f32.partialorder %v1624, 0.0
  %vm2086 = vcmp.ge.f32.partialorder %v1627, 0.0
  %vm2087 = vcmp.ge.f32.partialorder %v1629, 0.0
  %vm2088 = vcmp.ge.f32.partialorder %v1632, 0.0
  %vm2089 = vcmp.ge.f32.partialorder %v1634, 0.0
  %vm2090 = vcmp.ge.f32.partialorder %v1637, 0.0
  %vm2091 = vcmp.ge.f32.partialorder %v1639, 0.0
  %vm2092 = vcmp.ge.f32.partialorder %v1642, 0.0
  %vm2093 = vcmp.ge.f32.partialorder %v1644, 0.0
  %vm2094 = vcmp.ge.f32.partialorder %v1647, 0.0
  %vm2095 = vcmp.ge.f32.partialorder %v1649, 0.0
  %vm2096 = vcmp.ge.f32.partialorder %v1652, 0.0
  %vm2097 = vcmp.ge.f32.partialorder %v1654, 0.0
  %vm2098 = vcmp.ge.f32.partialorder %v1657, 0.0
  %vm2099 = vcmp.ge.f32.partialorder %v1659, 0.0
  %vm2100 = vcmp.ge.f32.partialorder %v1662, 0.0
  %vm2101 = vcmp.ge.f32.partialorder %v1664, 0.0
  %vm2102 = vcmp.ge.f32.partialorder %v1667, 0.0
  %vm2103 = vcmp.ge.f32.partialorder %v1669, 0.0
  %vm2104 = vcmp.ge.f32.partialorder %v1672, 0.0
  %vm2105 = vcmp.ge.f32.partialorder %v1674, 0.0
  %vm2106 = vcmp.ge.f32.partialorder %v1677, 0.0
  %vm2107 = vcmp.ge.f32.partialorder %v1679, 0.0
  %vm2108 = vcmp.ge.f32.partialorder %v1682, 0.0
  %vm2109 = vcmp.ge.f32.partialorder %v1684, 0.0
  %vm2110 = vcmp.ge.f32.partialorder %v1687, 0.0
  %vm2111 = vcmp.ge.f32.partialorder %v1689, 0.0
  %vm2112 = vcmp.ge.f32.partialorder %v1692, 0.0
  %vm2113 = vcmp.ge.f32.partialorder %v1694, 0.0
  %vm2114 = vcmp.ge.f32.partialorder %v1697, 0.0
  %vm2115 = vcmp.ge.f32.partialorder %v1699, 0.0
  %vm2116 = vcmp.ge.f32.partialorder %v1702, 0.0
  %vm2117 = vcmp.ge.f32.partialorder %v1704, 0.0
  %vm2118 = vcmp.ge.f32.partialorder %v1707, 0.0
  %vm2119 = vcmp.ge.f32.partialorder %v1709, 0.0
  %vm2120 = vcmp.ge.f32.partialorder %v1712, 0.0
  %vm2121 = vcmp.ge.f32.partialorder %v1714, 0.0
  %vm2122 = vcmp.ge.f32.partialorder %v1717, 0.0
  %vm2123 = vcmp.ge.f32.partialorder %v1719, 0.0
  %vm2124 = vcmp.ge.f32.partialorder %v1722, 0.0
  %vm2125 = vcmp.ge.f32.partialorder %v1724, 0.0
  %vm2126 = vcmp.ge.f32.partialorder %v1727, 0.0
  %vm2127 = vcmp.ge.f32.partialorder %v1729, 0.0
  %vm2128 = vcmp.ge.f32.partialorder %v1732, 0.0
  %vm2129 = vcmp.ge.f32.partialorder %v1734, 0.0
  %vm2130 = vcmp.ge.f32.partialorder %v1737, 0.0
  %vm2131 = vcmp.ge.f32.partialorder %v1739, 0.0
  %vm2132 = vcmp.ge.f32.partialorder %v1742, 0.0
  %vm2133 = vcmp.ge.f32.partialorder %v1744, 0.0
  %vm2134 = vcmp.ge.f32.partialorder %v1747, 0.0
  %vm2135 = vcmp.ge.f32.partialorder %v1749, 0.0
  %vm2136 = vcmp.ge.f32.partialorder %v1752, 0.0
  %vm2137 = vcmp.ge.f32.partialorder %v1754, 0.0
  %vm2138 = vcmp.ge.f32.partialorder %v1757, 0.0
  %vm2139 = vcmp.ge.f32.partialorder %v1759, 0.0
  %vm2140 = vcmp.ge.f32.partialorder %v1762, 0.0
  %vm2141 = vcmp.ge.f32.partialorder %v1764, 0.0
  %vm2142 = vcmp.ge.f32.partialorder %v1767, 0.0
  %vm2143 = vcmp.ge.f32.partialorder %v1769, 0.0
  %vm2144 = vcmp.ge.f32.partialorder %v1772, 0.0
  %vm2145 = vcmp.ge.f32.partialorder %v1774, 0.0
  %vm2146 = vcmp.ge.f32.partialorder %v1777, 0.0
  %vm2147 = vcmp.ge.f32.partialorder %v1779, 0.0
  %vm2148 = vcmp.ge.f32.partialorder %v1782, 0.0
  %vm2149 = vcmp.ge.f32.partialorder %v1784, 0.0
  %vm2150 = vcmp.ge.f32.partialorder %v1787, 0.0
  %vm2151 = vcmp.ge.f32.partialorder %v1789, 0.0
  %vm2152 = vcmp.ge.f32.partialorder %v1792, 0.0
  %vm2153 = vcmp.ge.f32.partialorder %v1794, 0.0
  %vm2154 = vcmp.ge.f32.partialorder %v1797, 0.0
  %vm2155 = vcmp.ge.f32.partialorder %v1799, 0.0
  %vm2156 = vcmp.ge.f32.partialorder %v1802, 0.0
  %vm2157 = vcmp.ge.f32.partialorder %v1804, 0.0
  %vm2158 = vcmp.ge.f32.partialorder %v1807, 0.0
  %vm2159 = vcmp.ge.f32.partialorder %v1809, 0.0
  %vm2160 = vcmp.ge.f32.partialorder %v1812, 0.0
  %vm2161 = vcmp.ge.f32.partialorder %v1814, 0.0
  %vm2162 = vcmp.ge.f32.partialorder %v1817, 0.0
  %vm2163 = vcmp.ge.f32.partialorder %v1819, 0.0
  %vm2164 = vcmp.ge.f32.partialorder %v1822, 0.0
  %vm2165 = vcmp.ge.f32.partialorder %v1824, 0.0
  %vm2166 = vcmp.ge.f32.partialorder %v1827, 0.0
  %vm2167 = vcmp.ge.f32.partialorder %v1829, 0.0
  %vm2168 = vcmp.ge.f32.partialorder %v1832, 0.0
  %vm2169 = vcmp.ge.f32.partialorder %v1834, 0.0
  %vm2170 = vcmp.ge.f32.partialorder %v1837, 0.0
  %vm2171 = vcmp.ge.f32.partialorder %v1839, 0.0
  %vm2172 = vcmp.ge.f32.partialorder %v1842, 0.0
  %vm2173 = vcmp.ge.f32.partialorder %v1844, 0.0
  %vm2174 = vcmp.ge.f32.partialorder %v1847, 0.0
  %vm2175 = vcmp.ge.f32.partialorder %v1849, 0.0
  %vm2176 = vcmp.ge.f32.partialorder %v1852, 0.0
  %vm2177 = vcmp.ge.f32.partialorder %v1854, 0.0
  %vm2178 = vcmp.ge.f32.partialorder %v1857, 0.0
  %vm2179 = vcmp.ge.f32.partialorder %v1859, 0.0
  %vm2180 = vcmp.ge.f32.partialorder %v1862, 0.0
  %vm2181 = vcmp.ge.f32.partialorder %v1864, 0.0
  %vm2182 = vcmp.ge.f32.partialorder %v1867, 0.0
  %vm2183 = vcmp.ge.f32.partialorder %v1869, 0.0
  %vm2184 = vcmp.ge.f32.partialorder %v1872, 0.0
  %vm2185 = vcmp.ge.f32.partialorder %v1874, 0.0
  %vm2186 = vcmp.ge.f32.partialorder %v1877, 0.0
  %vm2187 = vcmp.ge.f32.partialorder %v1879, 0.0
  %vm2188 = vcmp.ge.f32.partialorder %v1882, 0.0
  %vm2189 = vcmp.ge.f32.partialorder %v1884, 0.0
  %vm2190 = vcmp.ge.f32.partialorder %v1887, 0.0
  %vm2191 = vcmp.ge.f32.partialorder %v1889, 0.0
  %vm2192 = vcmp.ge.f32.partialorder %v1892, 0.0
  %vm2193 = vcmp.ge.f32.partialorder %v1894, 0.0
  %vm2194 = vcmp.ge.f32.partialorder %v1897, 0.0
  %vm2195 = vcmp.ge.f32.partialorder %v1899, 0.0
  %vm2196 = vcmp.ge.f32.partialorder %v1902, 0.0
  %vm2197 = vcmp.ge.f32.partialorder %v1904, 0.0
  %vm2198 = vcmp.ge.f32.partialorder %v1907, 0.0
  %vm2199 = vcmp.ge.f32.partialorder %v1909, 0.0
  %vm2200 = vcmp.ge.f32.partialorder %v1912, 0.0
  %vm2201 = vcmp.ge.f32.partialorder %v1914, 0.0
  %vm2202 = vcmp.ge.f32.partialorder %v1917, 0.0
  %vm2203 = vcmp.ge.f32.partialorder %v1919, 0.0
  %vm2204 = vcmp.ge.f32.partialorder %v1922, 0.0
  %vm2205 = vcmp.ge.f32.partialorder %v1924, 0.0
  %vm2206 = vcmp.ge.f32.partialorder %v1927, 0.0
  %vm2207 = vcmp.ge.f32.partialorder %v1929, 0.0
  %vm2208 = vcmp.ge.f32.partialorder %v1932, 0.0
  %vm2209 = vcmp.ge.f32.partialorder %v1934, 0.0
  %vm2210 = vcmp.ge.f32.partialorder %v1937, 0.0
  %vm2211 = vcmp.ge.f32.partialorder %v1939, 0.0
  %vm2212 = vcmp.ge.f32.partialorder %v1942, 0.0
  %vm2213 = vcmp.ge.f32.partialorder %v1944, 0.0
  %vm2214 = vcmp.ge.f32.partialorder %v1947, 0.0
  %vm2215 = vcmp.ge.f32.partialorder %v1949, 0.0
  %vm2216 = vcmp.ge.f32.partialorder %v1952, 0.0
  %vm2217 = vcmp.ge.f32.partialorder %v1954, 0.0
  %vm2218 = vcmp.ge.f32.partialorder %v1957, 0.0
  %vm2219 = vcmp.ge.f32.partialorder %v1959, 0.0
  %vm2220 = vcmp.ge.f32.partialorder %v1962, 0.0
  %vm2221 = vcmp.ge.f32.partialorder %v1964, 0.0
  %v2222 = vmul.f32 %v1327, 0.2
  %v2223 = vmul.f32 %v1329, 0.2
  %v2224 = vmul.f32 %v1332, 0.2
  %v2225 = vmul.f32 %v1334, 0.2
  %v2226 = vmul.f32 %v1337, 0.2
  %v2227 = vmul.f32 %v1339, 0.2
  %v2228 = vmul.f32 %v1342, 0.2
  %v2229 = vmul.f32 %v1344, 0.2
  %v2230 = vmul.f32 %v1347, 0.2
  %v2231 = vmul.f32 %v1349, 0.2
  %v2232 = vmul.f32 %v1352, 0.2
  %v2233 = vmul.f32 %v1354, 0.2
  %v2234 = vmul.f32 %v1357, 0.2
  %v2235 = vmul.f32 %v1359, 0.2
  %v2236 = vmul.f32 %v1362, 0.2
  %v2237 = vmul.f32 %v1364, 0.2
  %v2238 = vmul.f32 %v1367, 0.2
  %v2239 = vmul.f32 %v1369, 0.2
  %v2240 = vmul.f32 %v1372, 0.2
  %v2241 = vmul.f32 %v1374, 0.2
  %v2242 = vmul.f32 %v1377, 0.2
  %v2243 = vmul.f32 %v1379, 0.2
  %v2244 = vmul.f32 %v1382, 0.2
  %v2245 = vmul.f32 %v1384, 0.2
  %v2246 = vmul.f32 %v1387, 0.2
  %v2247 = vmul.f32 %v1389, 0.2
  %v2248 = vmul.f32 %v1392, 0.2
  %v2249 = vmul.f32 %v1394, 0.2
  %v2250 = vmul.f32 %v1397, 0.2
  %v2251 = vmul.f32 %v1399, 0.2
  %v2252 = vmul.f32 %v1402, 0.2
  %v2253 = vmul.f32 %v1404, 0.2
  %v2254 = vmul.f32 %v1407, 0.2
  %v2255 = vmul.f32 %v1409, 0.2
  %v2256 = vmul.f32 %v1412, 0.2
  %v2257 = vmul.f32 %v1414, 0.2
  %v2258 = vmul.f32 %v1417, 0.2
  %v2259 = vmul.f32 %v1419, 0.2
  %v2260 = vmul.f32 %v1422, 0.2
  %v2261 = vmul.f32 %v1424, 0.2
  %v2262 = vmul.f32 %v1427, 0.2
  %v2263 = vmul.f32 %v1429, 0.2
  %v2264 = vmul.f32 %v1432, 0.2
  %v2265 = vmul.f32 %v1434, 0.2
  %v2266 = vmul.f32 %v1437, 0.2
  %v2267 = vmul.f32 %v1439, 0.2
  %v2268 = vmul.f32 %v1442, 0.2
  %v2269 = vmul.f32 %v1444, 0.2
  %v2270 = vmul.f32 %v1447, 0.2
  %v2271 = vmul.f32 %v1449, 0.2
  %v2272 = vmul.f32 %v1452, 0.2
  %v2273 = vmul.f32 %v1454, 0.2
  %v2274 = vmul.f32 %v1457, 0.2
  %v2275 = vmul.f32 %v1459, 0.2
  %v2276 = vmul.f32 %v1462, 0.2
  %v2277 = vmul.f32 %v1464, 0.2
  %v2278 = vmul.f32 %v1467, 0.2
  %v2279 = vmul.f32 %v1469, 0.2
  %v2280 = vmul.f32 %v1472, 0.2
  %v2281 = vmul.f32 %v1474, 0.2
  %v2282 = vmul.f32 %v1477, 0.2
  %v2283 = vmul.f32 %v1479, 0.2
  %v2284 = vmul.f32 %v1482, 0.2
  %v2285 = vmul.f32 %v1484, 0.2
  %v2286 = vmul.f32 %v1487, 0.2
  %v2287 = vmul.f32 %v1489, 0.2
  %v2288 = vmul.f32 %v1492, 0.2
  %v2289 = vmul.f32 %v1494, 0.2
  %v2290 = vmul.f32 %v1497, 0.2
  %v2291 = vmul.f32 %v1499, 0.2
  %v2292 = vmul.f32 %v1502, 0.2
  %v2293 = vmul.f32 %v1504, 0.2
  %v2294 = vmul.f32 %v1507, 0.2
  %v2295 = vmul.f32 %v1509, 0.2
  %v2296 = vmul.f32 %v1512, 0.2
  %v2297 = vmul.f32 %v1514, 0.2
  %v2298 = vmul.f32 %v1517, 0.2
  %v2299 = vmul.f32 %v1519, 0.2
  %v2300 = vmul.f32 %v1522, 0.2
  %v2301 = vmul.f32 %v1524, 0.2
  %v2302 = vmul.f32 %v1527, 0.2
  %v2303 = vmul.f32 %v1529, 0.2
  %v2304 = vmul.f32 %v1532, 0.2
  %v2305 = vmul.f32 %v1534, 0.2
  %v2306 = vmul.f32 %v1537, 0.2
  %v2307 = vmul.f32 %v1539, 0.2
  %v2308 = vmul.f32 %v1542, 0.2
  %v2309 = vmul.f32 %v1544, 0.2
  %v2310 = vmul.f32 %v1547, 0.2
  %v2311 = vmul.f32 %v1549, 0.2
  %v2312 = vmul.f32 %v1552, 0.2
  %v2313 = vmul.f32 %v1554, 0.2
  %v2314 = vmul.f32 %v1557, 0.2
  %v2315 = vmul.f32 %v1559, 0.2
  %v2316 = vmul.f32 %v1562, 0.2
  %v2317 = vmul.f32 %v1564, 0.2
  %v2318 = vmul.f32 %v1567, 0.2
  %v2319 = vmul.f32 %v1569, 0.2
  %v2320 = vmul.f32 %v1572, 0.2
  %v2321 = vmul.f32 %v1574, 0.2
  %v2322 = vmul.f32 %v1577, 0.2
  %v2323 = vmul.f32 %v1579, 0.2
  %v2324 = vmul.f32 %v1582, 0.2
  %v2325 = vmul.f32 %v1584, 0.2
  %v2326 = vmul.f32 %v1587, 0.2
  %v2327 = vmul.f32 %v1589, 0.2
  %v2328 = vmul.f32 %v1592, 0.2
  %v2329 = vmul.f32 %v1594, 0.2
  %v2330 = vmul.f32 %v1597, 0.2
  %v2331 = vmul.f32 %v1599, 0.2
  %v2332 = vmul.f32 %v1602, 0.2
  %v2333 = vmul.f32 %v1604, 0.2
  %v2334 = vmul.f32 %v1607, 0.2
  %v2335 = vmul.f32 %v1609, 0.2
  %v2336 = vmul.f32 %v1612, 0.2
  %v2337 = vmul.f32 %v1614, 0.2
  %v2338 = vmul.f32 %v1617, 0.2
  %v2339 = vmul.f32 %v1619, 0.2
  %v2340 = vmul.f32 %v1622, 0.2
  %v2341 = vmul.f32 %v1624, 0.2
  %v2342 = vmul.f32 %v1627, 0.2
  %v2343 = vmul.f32 %v1629, 0.2
  %v2344 = vmul.f32 %v1632, 0.2
  %v2345 = vmul.f32 %v1634, 0.2
  %v2346 = vmul.f32 %v1637, 0.2
  %v2347 = vmul.f32 %v1639, 0.2
  %v2348 = vmul.f32 %v1642, 0.2
  %v2349 = vmul.f32 %v1644, 0.2
  %v2350 = vmul.f32 %v1647, 0.2
  %v2351 = vmul.f32 %v1649, 0.2
  %v2352 = vmul.f32 %v1652, 0.2
  %v2353 = vmul.f32 %v1654, 0.2
  %v2354 = vmul.f32 %v1657, 0.2
  %v2355 = vmul.f32 %v1659, 0.2
  %v2356 = vmul.f32 %v1662, 0.2
  %v2357 = vmul.f32 %v1664, 0.2
  %v2358 = vmul.f32 %v1667, 0.2
  %v2359 = vmul.f32 %v1669, 0.2
  %v2360 = vmul.f32 %v1672, 0.2
  %v2361 = vmul.f32 %v1674, 0.2
  %v2362 = vmul.f32 %v1677, 0.2
  %v2363 = vmul.f32 %v1679, 0.2
  %v2364 = vmul.f32 %v1682, 0.2
  %v2365 = vmul.f32 %v1684, 0.2
  %v2366 = vmul.f32 %v1687, 0.2
  %v2367 = vmul.f32 %v1689, 0.2
  %v2368 = vmul.f32 %v1692, 0.2
  %v2369 = vmul.f32 %v1694, 0.2
  %v2370 = vmul.f32 %v1697, 0.2
  %v2371 = vmul.f32 %v1699, 0.2
  %v2372 = vmul.f32 %v1702, 0.2
  %v2373 = vmul.f32 %v1704, 0.2
  %v2374 = vmul.f32 %v1707, 0.2
  %v2375 = vmul.f32 %v1709, 0.2
  %v2376 = vmul.f32 %v1712, 0.2
  %v2377 = vmul.f32 %v1714, 0.2
  %v2378 = vmul.f32 %v1717, 0.2
  %v2379 = vmul.f32 %v1719, 0.2
  %v2380 = vmul.f32 %v1722, 0.2
  %v2381 = vmul.f32 %v1724, 0.2
  %v2382 = vmul.f32 %v1727, 0.2
  %v2383 = vmul.f32 %v1729, 0.2
  %v2384 = vmul.f32 %v1732, 0.2
  %v2385 = vmul.f32 %v1734, 0.2
  %v2386 = vmul.f32 %v1737, 0.2
  %v2387 = vmul.f32 %v1739, 0.2
  %v2388 = vmul.f32 %v1742, 0.2
  %v2389 = vmul.f32 %v1744, 0.2
  %v2390 = vmul.f32 %v1747, 0.2
  %v2391 = vmul.f32 %v1749, 0.2
  %v2392 = vmul.f32 %v1752, 0.2
  %v2393 = vmul.f32 %v1754, 0.2
  %v2394 = vmul.f32 %v1757, 0.2
  %v2395 = vmul.f32 %v1759, 0.2
  %v2396 = vmul.f32 %v1762, 0.2
  %v2397 = vmul.f32 %v1764, 0.2
  %v2398 = vmul.f32 %v1767, 0.2
  %v2399 = vmul.f32 %v1769, 0.2
  %v2400 = vmul.f32 %v1772, 0.2
  %v2401 = vmul.f32 %v1774, 0.2
  %v2402 = vmul.f32 %v1777, 0.2
  %v2403 = vmul.f32 %v1779, 0.2
  %v2404 = vmul.f32 %v1782, 0.2
  %v2405 = vmul.f32 %v1784, 0.2
  %v2406 = vmul.f32 %v1787, 0.2
  %v2407 = vmul.f32 %v1789, 0.2
  %v2408 = vmul.f32 %v1792, 0.2
  %v2409 = vmul.f32 %v1794, 0.2
  %v2410 = vmul.f32 %v1797, 0.2
  %v2411 = vmul.f32 %v1799, 0.2
  %v2412 = vmul.f32 %v1802, 0.2
  %v2413 = vmul.f32 %v1804, 0.2
  %v2414 = vmul.f32 %v1807, 0.2
  %v2415 = vmul.f32 %v1809, 0.2
  %v2416 = vmul.f32 %v1812, 0.2
  %v2417 = vmul.f32 %v1814, 0.2
  %v2418 = vmul.f32 %v1817, 0.2
  %v2419 = vmul.f32 %v1819, 0.2
  %v2420 = vmul.f32 %v1822, 0.2
  %v2421 = vmul.f32 %v1824, 0.2
  %v2422 = vmul.f32 %v1827, 0.2
  %v2423 = vmul.f32 %v1829, 0.2
  %v2424 = vmul.f32 %v1832, 0.2
  %v2425 = vmul.f32 %v1834, 0.2
  %v2426 = vmul.f32 %v1837, 0.2
  %v2427 = vmul.f32 %v1839, 0.2
  %v2428 = vmul.f32 %v1842, 0.2
  %v2429 = vmul.f32 %v1844, 0.2
  %v2430 = vmul.f32 %v1847, 0.2
  %v2431 = vmul.f32 %v1849, 0.2
  %v2432 = vmul.f32 %v1852, 0.2
  %v2433 = vmul.f32 %v1854, 0.2
  %v2434 = vmul.f32 %v1857, 0.2
  %v2435 = vmul.f32 %v1859, 0.2
  %v2436 = vmul.f32 %v1862, 0.2
  %v2437 = vmul.f32 %v1864, 0.2
  %v2438 = vmul.f32 %v1867, 0.2
  %v2439 = vmul.f32 %v1869, 0.2
  %v2440 = vmul.f32 %v1872, 0.2
  %v2441 = vmul.f32 %v1874, 0.2
  %v2442 = vmul.f32 %v1877, 0.2
  %v2443 = vmul.f32 %v1879, 0.2
  %v2444 = vmul.f32 %v1882, 0.2
  %v2445 = vmul.f32 %v1884, 0.2
  %v2446 = vmul.f32 %v1887, 0.2
  %v2447 = vmul.f32 %v1889, 0.2
  %v2448 = vmul.f32 %v1892, 0.2
  %v2449 = vmul.f32 %v1894, 0.2
  %v2450 = vmul.f32 %v1897, 0.2
  %v2451 = vmul.f32 %v1899, 0.2
  %v2452 = vmul.f32 %v1902, 0.2
  %v2453 = vmul.f32 %v1904, 0.2
  %v2454 = vmul.f32 %v1907, 0.2
  %v2455 = vmul.f32 %v1909, 0.2
  %v2456 = vmul.f32 %v1912, 0.2
  %v2457 = vmul.f32 %v1914, 0.2
  %v2458 = vmul.f32 %v1917, 0.2
  %v2459 = vmul.f32 %v1919, 0.2
  %v2460 = vmul.f32 %v1922, 0.2
  %v2461 = vmul.f32 %v1924, 0.2
  %v2462 = vmul.f32 %v1927, 0.2
  %v2463 = vmul.f32 %v1929, 0.2
  %v2464 = vmul.f32 %v1932, 0.2
  %v2465 = vmul.f32 %v1934, 0.2
  %v2466 = vmul.f32 %v1937, 0.2
  %v2467 = vmul.f32 %v1939, 0.2
  %v2468 = vmul.f32 %v1942, 0.2
  %v2469 = vmul.f32 %v1944, 0.2
  %v2470 = vmul.f32 %v1947, 0.2
  %v2471 = vmul.f32 %v1949, 0.2
  %v2472 = vmul.f32 %v1952, 0.2
  %v2473 = vmul.f32 %v1954, 0.2
  %v2474 = vmul.f32 %v1957, 0.2
  %v2475 = vmul.f32 %v1959, 0.2
  %v2476 = vmul.f32 %v1962, 0.2
  %v2477 = vmul.f32 %v1964, 0.2
  %v2478 = vsel %vm1966, %v1327, %v2222
  %v2479 = vsel %vm1967, %v1329, %v2223
  %v2480 = vsel %vm1968, %v1332, %v2224
  %v2481 = vsel %vm1969, %v1334, %v2225
  %v2482 = vsel %vm1970, %v1337, %v2226
  %v2483 = vsel %vm1971, %v1339, %v2227
  %v2484 = vsel %vm1972, %v1342, %v2228
  %v2485 = vsel %vm1973, %v1344, %v2229
  %v2486 = vsel %vm1974, %v1347, %v2230
  %v2487 = vsel %vm1975, %v1349, %v2231
  %v2488 = vsel %vm1976, %v1352, %v2232
  %v2489 = vsel %vm1977, %v1354, %v2233
  %v2490 = vsel %vm1978, %v1357, %v2234
  %v2491 = vsel %vm1979, %v1359, %v2235
  %v2492 = vsel %vm1980, %v1362, %v2236
  %v2493 = vsel %vm1981, %v1364, %v2237
  %v2494 = vsel %vm1982, %v1367, %v2238
  %v2495 = vsel %vm1983, %v1369, %v2239
  %v2496 = vsel %vm1984, %v1372, %v2240
  %v2497 = vsel %vm1985, %v1374, %v2241
  %v2498 = vsel %vm1986, %v1377, %v2242
  %v2499 = vsel %vm1987, %v1379, %v2243
  %v2500 = vsel %vm1988, %v1382, %v2244
  %v2501 = vsel %vm1989, %v1384, %v2245
  %v2502 = vsel %vm1990, %v1387, %v2246
  %v2503 = vsel %vm1991, %v1389, %v2247
  %v2504 = vsel %vm1992, %v1392, %v2248
  %v2505 = vsel %vm1993, %v1394, %v2249
  %v2506 = vsel %vm1994, %v1397, %v2250
  %v2507 = vsel %vm1995, %v1399, %v2251
  %v2508 = vsel %vm1996, %v1402, %v2252
  %v2509 = vsel %vm1997, %v1404, %v2253
  %v2510 = vsel %vm1998, %v1407, %v2254
  %v2511 = vsel %vm1999, %v1409, %v2255
  %v2512 = vsel %vm2000, %v1412, %v2256
  %v2513 = vsel %vm2001, %v1414, %v2257
  %v2514 = vsel %vm2002, %v1417, %v2258
  %v2515 = vsel %vm2003, %v1419, %v2259
  %v2516 = vsel %vm2004, %v1422, %v2260
  %v2517 = vsel %vm2005, %v1424, %v2261
  %v2518 = vsel %vm2006, %v1427, %v2262
  %v2519 = vsel %vm2007, %v1429, %v2263
  %v2520 = vsel %vm2008, %v1432, %v2264
  %v2521 = vsel %vm2009, %v1434, %v2265
  %v2522 = vsel %vm2010, %v1437, %v2266
  %v2523 = vsel %vm2011, %v1439, %v2267
  %v2524 = vsel %vm2012, %v1442, %v2268
  %v2525 = vsel %vm2013, %v1444, %v2269
  %v2526 = vsel %vm2014, %v1447, %v2270
  %v2527 = vsel %vm2015, %v1449, %v2271
  %v2528 = vsel %vm2016, %v1452, %v2272
  %v2529 = vsel %vm2017, %v1454, %v2273
  %v2530 = vsel %vm2018, %v1457, %v2274
  %v2531 = vsel %vm2019, %v1459, %v2275
  %v2532 = vsel %vm2020, %v1462, %v2276
  %v2533 = vsel %vm2021, %v1464, %v2277
  %v2534 = vsel %vm2022, %v1467, %v2278
  %v2535 = vsel %vm2023, %v1469, %v2279
  %v2536 = vsel %vm2024, %v1472, %v2280
  %v2537 = vsel %vm2025, %v1474, %v2281
  %v2538 = vsel %vm2026, %v1477, %v2282
  %v2539 = vsel %vm2027, %v1479, %v2283
  %v2540 = vsel %vm2028, %v1482, %v2284
  %v2541 = vsel %vm2029, %v1484, %v2285
  %v2542 = vsel %vm2030, %v1487, %v2286
  %v2543 = vsel %vm2031, %v1489, %v2287
  %v2544 = vsel %vm2032, %v1492, %v2288
  %v2545 = vsel %vm2033, %v1494, %v2289
  %v2546 = vsel %vm2034, %v1497, %v2290
  %v2547 = vsel %vm2035, %v1499, %v2291
  %v2548 = vsel %vm2036, %v1502, %v2292
  %v2549 = vsel %vm2037, %v1504, %v2293
  %v2550 = vsel %vm2038, %v1507, %v2294
  %v2551 = vsel %vm2039, %v1509, %v2295
  %v2552 = vsel %vm2040, %v1512, %v2296
  %v2553 = vsel %vm2041, %v1514, %v2297
  %v2554 = vsel %vm2042, %v1517, %v2298
  %v2555 = vsel %vm2043, %v1519, %v2299
  %v2556 = vsel %vm2044, %v1522, %v2300
  %v2557 = vsel %vm2045, %v1524, %v2301
  %v2558 = vsel %vm2046, %v1527, %v2302
  %v2559 = vsel %vm2047, %v1529, %v2303
  %v2560 = vsel %vm2048, %v1532, %v2304
  %v2561 = vsel %vm2049, %v1534, %v2305
  %v2562 = vsel %vm2050, %v1537, %v2306
  %v2563 = vsel %vm2051, %v1539, %v2307
  %v2564 = vsel %vm2052, %v1542, %v2308
  %v2565 = vsel %vm2053, %v1544, %v2309
  %v2566 = vsel %vm2054, %v1547, %v2310
  %v2567 = vsel %vm2055, %v1549, %v2311
  %v2568 = vsel %vm2056, %v1552, %v2312
  %v2569 = vsel %vm2057, %v1554, %v2313
  %v2570 = vsel %vm2058, %v1557, %v2314
  %v2571 = vsel %vm2059, %v1559, %v2315
  %v2572 = vsel %vm2060, %v1562, %v2316
  %v2573 = vsel %vm2061, %v1564, %v2317
  %v2574 = vsel %vm2062, %v1567, %v2318
  %v2575 = vsel %vm2063, %v1569, %v2319
  %v2576 = vsel %vm2064, %v1572, %v2320
  %v2577 = vsel %vm2065, %v1574, %v2321
  %v2578 = vsel %vm2066, %v1577, %v2322
  %v2579 = vsel %vm2067, %v1579, %v2323
  %v2580 = vsel %vm2068, %v1582, %v2324
  %v2581 = vsel %vm2069, %v1584, %v2325
  %v2582 = vsel %vm2070, %v1587, %v2326
  %v2583 = vsel %vm2071, %v1589, %v2327
  %v2584 = vsel %vm2072, %v1592, %v2328
  %v2585 = vsel %vm2073, %v1594, %v2329
  %v2586 = vsel %vm2074, %v1597, %v2330
  %v2587 = vsel %vm2075, %v1599, %v2331
  %v2588 = vsel %vm2076, %v1602, %v2332
  %v2589 = vsel %vm2077, %v1604, %v2333
  %v2590 = vsel %vm2078, %v1607, %v2334
  %v2591 = vsel %vm2079, %v1609, %v2335
  %v2592 = vsel %vm2080, %v1612, %v2336
  %v2593 = vsel %vm2081, %v1614, %v2337
  %v2594 = vsel %vm2082, %v1617, %v2338
  %v2595 = vsel %vm2083, %v1619, %v2339
  %v2596 = vsel %vm2084, %v1622, %v2340
  %v2597 = vsel %vm2085, %v1624, %v2341
  %v2598 = vsel %vm2086, %v1627, %v2342
  %v2599 = vsel %vm2087, %v1629, %v2343
  %v2600 = vsel %vm2088, %v1632, %v2344
  %v2601 = vsel %vm2089, %v1634, %v2345
  %v2602 = vsel %vm2090, %v1637, %v2346
  %v2603 = vsel %vm2091, %v1639, %v2347
  %v2604 = vsel %vm2092, %v1642, %v2348
  %v2605 = vsel %vm2093, %v1644, %v2349
  %v2606 = vsel %vm2094, %v1647, %v2350
  %v2607 = vsel %vm2095, %v1649, %v2351
  %v2608 = vsel %vm2096, %v1652, %v2352
  %v2609 = vsel %vm2097, %v1654, %v2353
  %v2610 = vsel %vm2098, %v1657, %v2354
  %v2611 = vsel %vm2099, %v1659, %v2355
  %v2612 = vsel %vm2100, %v1662, %v2356
  %v2613 = vsel %vm2101, %v1664, %v2357
  %v2614 = vsel %vm2102, %v1667, %v2358
  %v2615 = vsel %vm2103, %v1669, %v2359
  %v2616 = vsel %vm2104, %v1672, %v2360
  %v2617 = vsel %vm2105, %v1674, %v2361
  %v2618 = vsel %vm2106, %v1677, %v2362
  %v2619 = vsel %vm2107, %v1679, %v2363
  %v2620 = vsel %vm2108, %v1682, %v2364
  %v2621 = vsel %vm2109, %v1684, %v2365
  %v2622 = vsel %vm2110, %v1687, %v2366
  %v2623 = vsel %vm2111, %v1689, %v2367
  %v2624 = vsel %vm2112, %v1692, %v2368
  %v2625 = vsel %vm2113, %v1694, %v2369
  %v2626 = vsel %vm2114, %v1697, %v2370
  %v2627 = vsel %vm2115, %v1699, %v2371
  %v2628 = vsel %vm2116, %v1702, %v2372
  %v2629 = vsel %vm2117, %v1704, %v2373
  %v2630 = vsel %vm2118, %v1707, %v2374
  %v2631 = vsel %vm2119, %v1709, %v2375
  %v2632 = vsel %vm2120, %v1712, %v2376
  %v2633 = vsel %vm2121, %v1714, %v2377
  %v2634 = vsel %vm2122, %v1717, %v2378
  %v2635 = vsel %vm2123, %v1719, %v2379
  %v2636 = vsel %vm2124, %v1722, %v2380
  %v2637 = vsel %vm2125, %v1724, %v2381
  %v2638 = vsel %vm2126, %v1727, %v2382
  %v2639 = vsel %vm2127, %v1729, %v2383
  %v2640 = vsel %vm2128, %v1732, %v2384
  %v2641 = vsel %vm2129, %v1734, %v2385
  %v2642 = vsel %vm2130, %v1737, %v2386
  %v2643 = vsel %vm2131, %v1739, %v2387
  %v2644 = vsel %vm2132, %v1742, %v2388
  %v2645 = vsel %vm2133, %v1744, %v2389
  %v2646 = vsel %vm2134, %v1747, %v2390
  %v2647 = vsel %vm2135, %v1749, %v2391
  %v2648 = vsel %vm2136, %v1752, %v2392
  %v2649 = vsel %vm2137, %v1754, %v2393
  %v2650 = vsel %vm2138, %v1757, %v2394
  %v2651 = vsel %vm2139, %v1759, %v2395
  %v2652 = vsel %vm2140, %v1762, %v2396
  %v2653 = vsel %vm2141, %v1764, %v2397
  %v2654 = vsel %vm2142, %v1767, %v2398
  %v2655 = vsel %vm2143, %v1769, %v2399
  %v2656 = vsel %vm2144, %v1772, %v2400
  %v2657 = vsel %vm2145, %v1774, %v2401
  %v2658 = vsel %vm2146, %v1777, %v2402
  %v2659 = vsel %vm2147, %v1779, %v2403
  %v2660 = vsel %vm2148, %v1782, %v2404
  %v2661 = vsel %vm2149, %v1784, %v2405
  %v2662 = vsel %vm2150, %v1787, %v2406
  %v2663 = vsel %vm2151, %v1789, %v2407
  %v2664 = vsel %vm2152, %v1792, %v2408
  %v2665 = vsel %vm2153, %v1794, %v2409
  %v2666 = vsel %vm2154, %v1797, %v2410
  %v2667 = vsel %vm2155, %v1799, %v2411
  %v2668 = vsel %vm2156, %v1802, %v2412
  %v2669 = vsel %vm2157, %v1804, %v2413
  %v2670 = vsel %vm2158, %v1807, %v2414
  %v2671 = vsel %vm2159, %v1809, %v2415
  %v2672 = vsel %vm2160, %v1812, %v2416
  %v2673 = vsel %vm2161, %v1814, %v2417
  %v2674 = vsel %vm2162, %v1817, %v2418
  %v2675 = vsel %vm2163, %v1819, %v2419
  %v2676 = vsel %vm2164, %v1822, %v2420
  %v2677 = vsel %vm2165, %v1824, %v2421
  %v2678 = vsel %vm2166, %v1827, %v2422
  %v2679 = vsel %vm2167, %v1829, %v2423
  %v2680 = vsel %vm2168, %v1832, %v2424
  %v2681 = vsel %vm2169, %v1834, %v2425
  %v2682 = vsel %vm2170, %v1837, %v2426
  %v2683 = vsel %vm2171, %v1839, %v2427
  %v2684 = vsel %vm2172, %v1842, %v2428
  %v2685 = vsel %vm2173, %v1844, %v2429
  %v2686 = vsel %vm2174, %v1847, %v2430
  %v2687 = vsel %vm2175, %v1849, %v2431
  %v2688 = vsel %vm2176, %v1852, %v2432
  %v2689 = vsel %vm2177, %v1854, %v2433
  %v2690 = vsel %vm2178, %v1857, %v2434
  %v2691 = vsel %vm2179, %v1859, %v2435
  %v2692 = vsel %vm2180, %v1862, %v2436
  %v2693 = vsel %vm2181, %v1864, %v2437
  %v2694 = vsel %vm2182, %v1867, %v2438
  %v2695 = vsel %vm2183, %v1869, %v2439
  %v2696 = vsel %vm2184, %v1872, %v2440
  %v2697 = vsel %vm2185, %v1874, %v2441
  %v2698 = vsel %vm2186, %v1877, %v2442
  %v2699 = vsel %vm2187, %v1879, %v2443
  %v2700 = vsel %vm2188, %v1882, %v2444
  %v2701 = vsel %vm2189, %v1884, %v2445
  %v2702 = vsel %vm2190, %v1887, %v2446
  %v2703 = vsel %vm2191, %v1889, %v2447
  %v2704 = vsel %vm2192, %v1892, %v2448
  %v2705 = vsel %vm2193, %v1894, %v2449
  %v2706 = vsel %vm2194, %v1897, %v2450
  %v2707 = vsel %vm2195, %v1899, %v2451
  %v2708 = vsel %vm2196, %v1902, %v2452
  %v2709 = vsel %vm2197, %v1904, %v2453
  %v2710 = vsel %vm2198, %v1907, %v2454
  %v2711 = vsel %vm2199, %v1909, %v2455
  %v2712 = vsel %vm2200, %v1912, %v2456
  %v2713 = vsel %vm2201, %v1914, %v2457
  %v2714 = vsel %vm2202, %v1917, %v2458
  %v2715 = vsel %vm2203, %v1919, %v2459
  %v2716 = vsel %vm2204, %v1922, %v2460
  %v2717 = vsel %vm2205, %v1924, %v2461
  %v2718 = vsel %vm2206, %v1927, %v2462
  %v2719 = vsel %vm2207, %v1929, %v2463
  %v2720 = vsel %vm2208, %v1932, %v2464
  %v2721 = vsel %vm2209, %v1934, %v2465
  %v2722 = vsel %vm2210, %v1937, %v2466
  %v2723 = vsel %vm2211, %v1939, %v2467
  %v2724 = vsel %vm2212, %v1942, %v2468
  %v2725 = vsel %vm2213, %v1944, %v2469
  %v2726 = vsel %vm2214, %v1947, %v2470
  %v2727 = vsel %vm2215, %v1949, %v2471
  %v2728 = vsel %vm2216, %v1952, %v2472
  %v2729 = vsel %vm2217, %v1954, %v2473
  %v2730 = vsel %vm2218, %v1957, %v2474
  %v2731 = vsel %vm2219, %v1959, %v2475
  %v2732 = vsel %vm2220, %v1962, %v2476
  %v2733 = vsel %vm2221, %v1964, %v2477
  %v2734 = vpack.c.bf16 %v2478, %v2478
  %v2735 = vpack.c.bf16 %v2479, %v2479
  %v2736 = vpack.c.bf16 %v2480, %v2480
  %v2737 = vpack.c.bf16 %v2481, %v2481
  %v2738 = vpack.c.bf16 %v2482, %v2482
  %v2739 = vpack.c.bf16 %v2483, %v2483
  %v2740 = vpack.c.bf16 %v2484, %v2484
  %v2741 = vpack.c.bf16 %v2485, %v2485
  %v2742 = vpack.c.bf16 %v2486, %v2486
  %v2743 = vpack.c.bf16 %v2487, %v2487
  %v2744 = vpack.c.bf16 %v2488, %v2488
  %v2745 = vpack.c.bf16 %v2489, %v2489
  %v2746 = vpack.c.bf16 %v2490, %v2490
  %v2747 = vpack.c.bf16 %v2491, %v2491
  %v2748 = vpack.c.bf16 %v2492, %v2492
  %v2749 = vpack.c.bf16 %v2493, %v2493
  %v2750 = vpack.c.bf16 %v2494, %v2494
  %v2751 = vpack.c.bf16 %v2495, %v2495
  %v2752 = vpack.c.bf16 %v2496, %v2496
  %v2753 = vpack.c.bf16 %v2497, %v2497
  %v2754 = vpack.c.bf16 %v2498, %v2498
  %v2755 = vpack.c.bf16 %v2499, %v2499
  %v2756 = vpack.c.bf16 %v2500, %v2500
  %v2757 = vpack.c.bf16 %v2501, %v2501
  %v2758 = vpack.c.bf16 %v2502, %v2502
  %v2759 = vpack.c.bf16 %v2503, %v2503
  %v2760 = vpack.c.bf16 %v2504, %v2504
  %v2761 = vpack.c.bf16 %v2505, %v2505
  %v2762 = vpack.c.bf16 %v2506, %v2506
  %v2763 = vpack.c.bf16 %v2507, %v2507
  %v2764 = vpack.c.bf16 %v2508, %v2508
  %v2765 = vpack.c.bf16 %v2509, %v2509
  %v2766 = vpack.c.bf16 %v2510, %v2510
  %v2767 = vpack.c.bf16 %v2511, %v2511
  %v2768 = vpack.c.bf16 %v2512, %v2512
  %v2769 = vpack.c.bf16 %v2513, %v2513
  %v2770 = vpack.c.bf16 %v2514, %v2514
  %v2771 = vpack.c.bf16 %v2515, %v2515
  %v2772 = vpack.c.bf16 %v2516, %v2516
  %v2773 = vpack.c.bf16 %v2517, %v2517
  %v2774 = vpack.c.bf16 %v2518, %v2518
  %v2775 = vpack.c.bf16 %v2519, %v2519
  %v2776 = vpack.c.bf16 %v2520, %v2520
  %v2777 = vpack.c.bf16 %v2521, %v2521
  %v2778 = vpack.c.bf16 %v2522, %v2522
  %v2779 = vpack.c.bf16 %v2523, %v2523
  %v2780 = vpack.c.bf16 %v2524, %v2524
  %v2781 = vpack.c.bf16 %v2525, %v2525
  %v2782 = vpack.c.bf16 %v2526, %v2526
  %v2783 = vpack.c.bf16 %v2527, %v2527
  %v2784 = vpack.c.bf16 %v2528, %v2528
  %v2785 = vpack.c.bf16 %v2529, %v2529
  %v2786 = vpack.c.bf16 %v2530, %v2530
  %v2787 = vpack.c.bf16 %v2531, %v2531
  %v2788 = vpack.c.bf16 %v2532, %v2532
  %v2789 = vpack.c.bf16 %v2533, %v2533
  %v2790 = vpack.c.bf16 %v2534, %v2534
  %v2791 = vpack.c.bf16 %v2535, %v2535
  %v2792 = vpack.c.bf16 %v2536, %v2536
  %v2793 = vpack.c.bf16 %v2537, %v2537
  %v2794 = vpack.c.bf16 %v2538, %v2538
  %v2795 = vpack.c.bf16 %v2539, %v2539
  %v2796 = vpack.c.bf16 %v2540, %v2540
  %v2797 = vpack.c.bf16 %v2541, %v2541
  %v2798 = vpack.c.bf16 %v2542, %v2542
  %v2799 = vpack.c.bf16 %v2543, %v2543
  %v2800 = vpack.c.bf16 %v2544, %v2544
  %v2801 = vpack.c.bf16 %v2545, %v2545
  %v2802 = vpack.c.bf16 %v2546, %v2546
  %v2803 = vpack.c.bf16 %v2547, %v2547
  %v2804 = vpack.c.bf16 %v2548, %v2548
  %v2805 = vpack.c.bf16 %v2549, %v2549
  %v2806 = vpack.c.bf16 %v2550, %v2550
  %v2807 = vpack.c.bf16 %v2551, %v2551
  %v2808 = vpack.c.bf16 %v2552, %v2552
  %v2809 = vpack.c.bf16 %v2553, %v2553
  %v2810 = vpack.c.bf16 %v2554, %v2554
  %v2811 = vpack.c.bf16 %v2555, %v2555
  %v2812 = vpack.c.bf16 %v2556, %v2556
  %v2813 = vpack.c.bf16 %v2557, %v2557
  %v2814 = vpack.c.bf16 %v2558, %v2558
  %v2815 = vpack.c.bf16 %v2559, %v2559
  %v2816 = vpack.c.bf16 %v2560, %v2560
  %v2817 = vpack.c.bf16 %v2561, %v2561
  %v2818 = vpack.c.bf16 %v2562, %v2562
  %v2819 = vpack.c.bf16 %v2563, %v2563
  %v2820 = vpack.c.bf16 %v2564, %v2564
  %v2821 = vpack.c.bf16 %v2565, %v2565
  %v2822 = vpack.c.bf16 %v2566, %v2566
  %v2823 = vpack.c.bf16 %v2567, %v2567
  %v2824 = vpack.c.bf16 %v2568, %v2568
  %v2825 = vpack.c.bf16 %v2569, %v2569
  %v2826 = vpack.c.bf16 %v2570, %v2570
  %v2827 = vpack.c.bf16 %v2571, %v2571
  %v2828 = vpack.c.bf16 %v2572, %v2572
  %v2829 = vpack.c.bf16 %v2573, %v2573
  %v2830 = vpack.c.bf16 %v2574, %v2574
  %v2831 = vpack.c.bf16 %v2575, %v2575
  %v2832 = vpack.c.bf16 %v2576, %v2576
  %v2833 = vpack.c.bf16 %v2577, %v2577
  %v2834 = vpack.c.bf16 %v2578, %v2578
  %v2835 = vpack.c.bf16 %v2579, %v2579
  %v2836 = vpack.c.bf16 %v2580, %v2580
  %v2837 = vpack.c.bf16 %v2581, %v2581
  %v2838 = vpack.c.bf16 %v2582, %v2582
  %v2839 = vpack.c.bf16 %v2583, %v2583
  %v2840 = vpack.c.bf16 %v2584, %v2584
  %v2841 = vpack.c.bf16 %v2585, %v2585
  %v2842 = vpack.c.bf16 %v2586, %v2586
  %v2843 = vpack.c.bf16 %v2587, %v2587
  %v2844 = vpack.c.bf16 %v2588, %v2588
  %v2845 = vpack.c.bf16 %v2589, %v2589
  %v2846 = vpack.c.bf16 %v2590, %v2590
  %v2847 = vpack.c.bf16 %v2591, %v2591
  %v2848 = vpack.c.bf16 %v2592, %v2592
  %v2849 = vpack.c.bf16 %v2593, %v2593
  %v2850 = vpack.c.bf16 %v2594, %v2594
  %v2851 = vpack.c.bf16 %v2595, %v2595
  %v2852 = vpack.c.bf16 %v2596, %v2596
  %v2853 = vpack.c.bf16 %v2597, %v2597
  %v2854 = vpack.c.bf16 %v2598, %v2598
  %v2855 = vpack.c.bf16 %v2599, %v2599
  %v2856 = vpack.c.bf16 %v2600, %v2600
  %v2857 = vpack.c.bf16 %v2601, %v2601
  %v2858 = vpack.c.bf16 %v2602, %v2602
  %v2859 = vpack.c.bf16 %v2603, %v2603
  %v2860 = vpack.c.bf16 %v2604, %v2604
  %v2861 = vpack.c.bf16 %v2605, %v2605
  %v2862 = vpack.c.bf16 %v2606, %v2606
  %v2863 = vpack.c.bf16 %v2607, %v2607
  %v2864 = vpack.c.bf16 %v2608, %v2608
  %v2865 = vpack.c.bf16 %v2609, %v2609
  %v2866 = vpack.c.bf16 %v2610, %v2610
  %v2867 = vpack.c.bf16 %v2611, %v2611
  %v2868 = vpack.c.bf16 %v2612, %v2612
  %v2869 = vpack.c.bf16 %v2613, %v2613
  %v2870 = vpack.c.bf16 %v2614, %v2614
  %v2871 = vpack.c.bf16 %v2615, %v2615
  %v2872 = vpack.c.bf16 %v2616, %v2616
  %v2873 = vpack.c.bf16 %v2617, %v2617
  %v2874 = vpack.c.bf16 %v2618, %v2618
  %v2875 = vpack.c.bf16 %v2619, %v2619
  %v2876 = vpack.c.bf16 %v2620, %v2620
  %v2877 = vpack.c.bf16 %v2621, %v2621
  %v2878 = vpack.c.bf16 %v2622, %v2622
  %v2879 = vpack.c.bf16 %v2623, %v2623
  %v2880 = vpack.c.bf16 %v2624, %v2624
  %v2881 = vpack.c.bf16 %v2625, %v2625
  %v2882 = vpack.c.bf16 %v2626, %v2626
  %v2883 = vpack.c.bf16 %v2627, %v2627
  %v2884 = vpack.c.bf16 %v2628, %v2628
  %v2885 = vpack.c.bf16 %v2629, %v2629
  %v2886 = vpack.c.bf16 %v2630, %v2630
  %v2887 = vpack.c.bf16 %v2631, %v2631
  %v2888 = vpack.c.bf16 %v2632, %v2632
  %v2889 = vpack.c.bf16 %v2633, %v2633
  %v2890 = vpack.c.bf16 %v2634, %v2634
  %v2891 = vpack.c.bf16 %v2635, %v2635
  %v2892 = vpack.c.bf16 %v2636, %v2636
  %v2893 = vpack.c.bf16 %v2637, %v2637
  %v2894 = vpack.c.bf16 %v2638, %v2638
  %v2895 = vpack.c.bf16 %v2639, %v2639
  %v2896 = vpack.c.bf16 %v2640, %v2640
  %v2897 = vpack.c.bf16 %v2641, %v2641
  %v2898 = vpack.c.bf16 %v2642, %v2642
  %v2899 = vpack.c.bf16 %v2643, %v2643
  %v2900 = vpack.c.bf16 %v2644, %v2644
  %v2901 = vpack.c.bf16 %v2645, %v2645
  %v2902 = vpack.c.bf16 %v2646, %v2646
  %v2903 = vpack.c.bf16 %v2647, %v2647
  %v2904 = vpack.c.bf16 %v2648, %v2648
  %v2905 = vpack.c.bf16 %v2649, %v2649
  %v2906 = vpack.c.bf16 %v2650, %v2650
  %v2907 = vpack.c.bf16 %v2651, %v2651
  %v2908 = vpack.c.bf16 %v2652, %v2652
  %v2909 = vpack.c.bf16 %v2653, %v2653
  %v2910 = vpack.c.bf16 %v2654, %v2654
  %v2911 = vpack.c.bf16 %v2655, %v2655
  %v2912 = vpack.c.bf16 %v2656, %v2656
  %v2913 = vpack.c.bf16 %v2657, %v2657
  %v2914 = vpack.c.bf16 %v2658, %v2658
  %v2915 = vpack.c.bf16 %v2659, %v2659
  %v2916 = vpack.c.bf16 %v2660, %v2660
  %v2917 = vpack.c.bf16 %v2661, %v2661
  %v2918 = vpack.c.bf16 %v2662, %v2662
  %v2919 = vpack.c.bf16 %v2663, %v2663
  %v2920 = vpack.c.bf16 %v2664, %v2664
  %v2921 = vpack.c.bf16 %v2665, %v2665
  %v2922 = vpack.c.bf16 %v2666, %v2666
  %v2923 = vpack.c.bf16 %v2667, %v2667
  %v2924 = vpack.c.bf16 %v2668, %v2668
  %v2925 = vpack.c.bf16 %v2669, %v2669
  %v2926 = vpack.c.bf16 %v2670, %v2670
  %v2927 = vpack.c.bf16 %v2671, %v2671
  %v2928 = vpack.c.bf16 %v2672, %v2672
  %v2929 = vpack.c.bf16 %v2673, %v2673
  %v2930 = vpack.c.bf16 %v2674, %v2674
  %v2931 = vpack.c.bf16 %v2675, %v2675
  %v2932 = vpack.c.bf16 %v2676, %v2676
  %v2933 = vpack.c.bf16 %v2677, %v2677
  %v2934 = vpack.c.bf16 %v2678, %v2678
  %v2935 = vpack.c.bf16 %v2679, %v2679
  %v2936 = vpack.c.bf16 %v2680, %v2680
  %v2937 = vpack.c.bf16 %v2681, %v2681
  %v2938 = vpack.c.bf16 %v2682, %v2682
  %v2939 = vpack.c.bf16 %v2683, %v2683
  %v2940 = vpack.c.bf16 %v2684, %v2684
  %v2941 = vpack.c.bf16 %v2685, %v2685
  %v2942 = vpack.c.bf16 %v2686, %v2686
  %v2943 = vpack.c.bf16 %v2687, %v2687
  %v2944 = vpack.c.bf16 %v2688, %v2688
  %v2945 = vpack.c.bf16 %v2689, %v2689
  %v2946 = vpack.c.bf16 %v2690, %v2690
  %v2947 = vpack.c.bf16 %v2691, %v2691
  %v2948 = vpack.c.bf16 %v2692, %v2692
  %v2949 = vpack.c.bf16 %v2693, %v2693
  %v2950 = vpack.c.bf16 %v2694, %v2694
  %v2951 = vpack.c.bf16 %v2695, %v2695
  %v2952 = vpack.c.bf16 %v2696, %v2696
  %v2953 = vpack.c.bf16 %v2697, %v2697
  %v2954 = vpack.c.bf16 %v2698, %v2698
  %v2955 = vpack.c.bf16 %v2699, %v2699
  %v2956 = vpack.c.bf16 %v2700, %v2700
  %v2957 = vpack.c.bf16 %v2701, %v2701
  %v2958 = vpack.c.bf16 %v2702, %v2702
  %v2959 = vpack.c.bf16 %v2703, %v2703
  %v2960 = vpack.c.bf16 %v2704, %v2704
  %v2961 = vpack.c.bf16 %v2705, %v2705
  %v2962 = vpack.c.bf16 %v2706, %v2706
  %v2963 = vpack.c.bf16 %v2707, %v2707
  %v2964 = vpack.c.bf16 %v2708, %v2708
  %v2965 = vpack.c.bf16 %v2709, %v2709
  %v2966 = vpack.c.bf16 %v2710, %v2710
  %v2967 = vpack.c.bf16 %v2711, %v2711
  %v2968 = vpack.c.bf16 %v2712, %v2712
  %v2969 = vpack.c.bf16 %v2713, %v2713
  %v2970 = vpack.c.bf16 %v2714, %v2714
  %v2971 = vpack.c.bf16 %v2715, %v2715
  %v2972 = vpack.c.bf16 %v2716, %v2716
  %v2973 = vpack.c.bf16 %v2717, %v2717
  %v2974 = vpack.c.bf16 %v2718, %v2718
  %v2975 = vpack.c.bf16 %v2719, %v2719
  %v2976 = vpack.c.bf16 %v2720, %v2720
  %v2977 = vpack.c.bf16 %v2721, %v2721
  %v2978 = vpack.c.bf16 %v2722, %v2722
  %v2979 = vpack.c.bf16 %v2723, %v2723
  %v2980 = vpack.c.bf16 %v2724, %v2724
  %v2981 = vpack.c.bf16 %v2725, %v2725
  %v2982 = vpack.c.bf16 %v2726, %v2726
  %v2983 = vpack.c.bf16 %v2727, %v2727
  %v2984 = vpack.c.bf16 %v2728, %v2728
  %v2985 = vpack.c.bf16 %v2729, %v2729
  %v2986 = vpack.c.bf16 %v2730, %v2730
  %v2987 = vpack.c.bf16 %v2731, %v2731
  %v2988 = vpack.c.bf16 %v2732, %v2732
  %v2989 = vpack.c.bf16 %v2733, %v2733
  %2990 = vst [vmem:[%s2] sm:$0xf] %v2734
  %2991 = vst [vmem:[%s2 + $0x4] sm:$0xf] %v2735
  %2992 = vst [vmem:[%s2 + $0x8] sm:$0xf] %v2736
  %2993 = vst [vmem:[%s2 + $0xc] sm:$0xf] %v2737
  %2994 = vst [vmem:[%s2 + $0x10] sm:$0xf] %v2738
  %2995 = vst [vmem:[%s2 + $0x14] sm:$0xf] %v2739
  %2996 = vst [vmem:[%s2 + $0x18] sm:$0xf] %v2740
  %2997 = vst [vmem:[%s2 + $0x1c] sm:$0xf] %v2741
  %2998 = vst [vmem:[%s2 + $0x20] sm:$0xf] %v2742
  %2999 = vst [vmem:[%s2 + $0x24] sm:$0xf] %v2743
  %3000 = vst [vmem:[%s2 + $0x28] sm:$0xf] %v2744
  %3001 = vst [vmem:[%s2 + $0x2c] sm:$0xf] %v2745
  %3002 = vst [vmem:[%s2 + $0x30] sm:$0xf] %v2746
  %3003 = vst [vmem:[%s2 + $0x34] sm:$0xf] %v2747
  %3004 = vst [vmem:[%s2 + $0x38] sm:$0xf] %v2748
  %3005 = vst [vmem:[%s2 + $0x3c] sm:$0xf] %v2749
  %3006 = vst [vmem:[%s2 + $0x40] sm:$0xf] %v2750
  %3007 = vst [vmem:[%s2 + $0x44] sm:$0xf] %v2751
  %3008 = vst [vmem:[%s2 + $0x48] sm:$0xf] %v2752
  %3009 = vst [vmem:[%s2 + $0x4c] sm:$0xf] %v2753
  %3010 = vst [vmem:[%s2 + $0x50] sm:$0xf] %v2754
  %3011 = vst [vmem:[%s2 + $0x54] sm:$0xf] %v2755
  %3012 = vst [vmem:[%s2 + $0x58] sm:$0xf] %v2756
  %3013 = vst [vmem:[%s2 + $0x5c] sm:$0xf] %v2757
  %3014 = vst [vmem:[%s2 + $0x60] sm:$0xf] %v2758
  %3015 = vst [vmem:[%s2 + $0x64] sm:$0xf] %v2759
  %3016 = vst [vmem:[%s2 + $0x68] sm:$0xf] %v2760
  %3017 = vst [vmem:[%s2 + $0x6c] sm:$0xf] %v2761
  %3018 = vst [vmem:[%s2 + $0x70] sm:$0xf] %v2762
  %3019 = vst [vmem:[%s2 + $0x74] sm:$0xf] %v2763
  %3020 = vst [vmem:[%s2 + $0x78] sm:$0xf] %v2764
  %3021 = vst [vmem:[%s2 + $0x7c] sm:$0xf] %v2765
  %3022 = vst [vmem:[%s2 + $0x80] sm:$0xf] %v2766
  %3023 = vst [vmem:[%s2 + $0x84] sm:$0xf] %v2767
  %3024 = vst [vmem:[%s2 + $0x88] sm:$0xf] %v2768
  %3025 = vst [vmem:[%s2 + $0x8c] sm:$0xf] %v2769
  %3026 = vst [vmem:[%s2 + $0x90] sm:$0xf] %v2770
  %3027 = vst [vmem:[%s2 + $0x94] sm:$0xf] %v2771
  %3028 = vst [vmem:[%s2 + $0x98] sm:$0xf] %v2772
  %3029 = vst [vmem:[%s2 + $0x9c] sm:$0xf] %v2773
  %3030 = vst [vmem:[%s2 + $0xa0] sm:$0xf] %v2774
  %3031 = vst [vmem:[%s2 + $0xa4] sm:$0xf] %v2775
  %3032 = vst [vmem:[%s2 + $0xa8] sm:$0xf] %v2776
  %3033 = vst [vmem:[%s2 + $0xac] sm:$0xf] %v2777
  %3034 = vst [vmem:[%s2 + $0xb0] sm:$0xf] %v2778
  %3035 = vst [vmem:[%s2 + $0xb4] sm:$0xf] %v2779
  %3036 = vst [vmem:[%s2 + $0xb8] sm:$0xf] %v2780
  %3037 = vst [vmem:[%s2 + $0xbc] sm:$0xf] %v2781
  %3038 = vst [vmem:[%s2 + $0xc0] sm:$0xf] %v2782
  %3039 = vst [vmem:[%s2 + $0xc4] sm:$0xf] %v2783
  %3040 = vst [vmem:[%s2 + $0xc8] sm:$0xf] %v2784
  %3041 = vst [vmem:[%s2 + $0xcc] sm:$0xf] %v2785
  %3042 = vst [vmem:[%s2 + $0xd0] sm:$0xf] %v2786
  %3043 = vst [vmem:[%s2 + $0xd4] sm:$0xf] %v2787
  %3044 = vst [vmem:[%s2 + $0xd8] sm:$0xf] %v2788
  %3045 = vst [vmem:[%s2 + $0xdc] sm:$0xf] %v2789
  %3046 = vst [vmem:[%s2 + $0xe0] sm:$0xf] %v2790
  %3047 = vst [vmem:[%s2 + $0xe4] sm:$0xf] %v2791
  %3048 = vst [vmem:[%s2 + $0xe8] sm:$0xf] %v2792
  %3049 = vst [vmem:[%s2 + $0xec] sm:$0xf] %v2793
  %3050 = vst [vmem:[%s2 + $0xf0] sm:$0xf] %v2794
  %3051 = vst [vmem:[%s2 + $0xf4] sm:$0xf] %v2795
  %3052 = vst [vmem:[%s2 + $0xf8] sm:$0xf] %v2796
  %3053 = vst [vmem:[%s2 + $0xfc] sm:$0xf] %v2797
  %3054 = vst [vmem:[%s2 + $0x100] sm:$0xf] %v2798
  %3055 = vst [vmem:[%s2 + $0x104] sm:$0xf] %v2799
  %3056 = vst [vmem:[%s2 + $0x108] sm:$0xf] %v2800
  %3057 = vst [vmem:[%s2 + $0x10c] sm:$0xf] %v2801
  %3058 = vst [vmem:[%s2 + $0x110] sm:$0xf] %v2802
  %3059 = vst [vmem:[%s2 + $0x114] sm:$0xf] %v2803
  %3060 = vst [vmem:[%s2 + $0x118] sm:$0xf] %v2804
  %3061 = vst [vmem:[%s2 + $0x11c] sm:$0xf] %v2805
  %3062 = vst [vmem:[%s2 + $0x120] sm:$0xf] %v2806
  %3063 = vst [vmem:[%s2 + $0x124] sm:$0xf] %v2807
  %3064 = vst [vmem:[%s2 + $0x128] sm:$0xf] %v2808
  %3065 = vst [vmem:[%s2 + $0x12c] sm:$0xf] %v2809
  %3066 = vst [vmem:[%s2 + $0x130] sm:$0xf] %v2810
  %3067 = vst [vmem:[%s2 + $0x134] sm:$0xf] %v2811
  %3068 = vst [vmem:[%s2 + $0x138] sm:$0xf] %v2812
  %3069 = vst [vmem:[%s2 + $0x13c] sm:$0xf] %v2813
  %3070 = vst [vmem:[%s2 + $0x140] sm:$0xf] %v2814
  %3071 = vst [vmem:[%s2 + $0x144] sm:$0xf] %v2815
  %3072 = vst [vmem:[%s2 + $0x148] sm:$0xf] %v2816
  %3073 = vst [vmem:[%s2 + $0x14c] sm:$0xf] %v2817
  %3074 = vst [vmem:[%s2 + $0x150] sm:$0xf] %v2818
  %3075 = vst [vmem:[%s2 + $0x154] sm:$0xf] %v2819
  %3076 = vst [vmem:[%s2 + $0x158] sm:$0xf] %v2820
  %3077 = vst [vmem:[%s2 + $0x15c] sm:$0xf] %v2821
  %3078 = vst [vmem:[%s2 + $0x160] sm:$0xf] %v2822
  %3079 = vst [vmem:[%s2 + $0x164] sm:$0xf] %v2823
  %3080 = vst [vmem:[%s2 + $0x168] sm:$0xf] %v2824
  %3081 = vst [vmem:[%s2 + $0x16c] sm:$0xf] %v2825
  %3082 = vst [vmem:[%s2 + $0x170] sm:$0xf] %v2826
  %3083 = vst [vmem:[%s2 + $0x174] sm:$0xf] %v2827
  %3084 = vst [vmem:[%s2 + $0x178] sm:$0xf] %v2828
  %3085 = vst [vmem:[%s2 + $0x17c] sm:$0xf] %v2829
  %3086 = vst [vmem:[%s2 + $0x180] sm:$0xf] %v2830
  %3087 = vst [vmem:[%s2 + $0x184] sm:$0xf] %v2831
  %3088 = vst [vmem:[%s2 + $0x188] sm:$0xf] %v2832
  %3089 = vst [vmem:[%s2 + $0x18c] sm:$0xf] %v2833
  %3090 = vst [vmem:[%s2 + $0x190] sm:$0xf] %v2834
  %3091 = vst [vmem:[%s2 + $0x194] sm:$0xf] %v2835
  %3092 = vst [vmem:[%s2 + $0x198] sm:$0xf] %v2836
  %3093 = vst [vmem:[%s2 + $0x19c] sm:$0xf] %v2837
  %3094 = vst [vmem:[%s2 + $0x1a0] sm:$0xf] %v2838
  %3095 = vst [vmem:[%s2 + $0x1a4] sm:$0xf] %v2839
  %3096 = vst [vmem:[%s2 + $0x1a8] sm:$0xf] %v2840
  %3097 = vst [vmem:[%s2 + $0x1ac] sm:$0xf] %v2841
  %3098 = vst [vmem:[%s2 + $0x1b0] sm:$0xf] %v2842
  %3099 = vst [vmem:[%s2 + $0x1b4] sm:$0xf] %v2843
  %3100 = vst [vmem:[%s2 + $0x1b8] sm:$0xf] %v2844
  %3101 = vst [vmem:[%s2 + $0x1bc] sm:$0xf] %v2845
  %3102 = vst [vmem:[%s2 + $0x1c0] sm:$0xf] %v2846
  %3103 = vst [vmem:[%s2 + $0x1c4] sm:$0xf] %v2847
  %3104 = vst [vmem:[%s2 + $0x1c8] sm:$0xf] %v2848
  %3105 = vst [vmem:[%s2 + $0x1cc] sm:$0xf] %v2849
  %3106 = vst [vmem:[%s2 + $0x1d0] sm:$0xf] %v2850
  %3107 = vst [vmem:[%s2 + $0x1d4] sm:$0xf] %v2851
  %3108 = vst [vmem:[%s2 + $0x1d8] sm:$0xf] %v2852
  %3109 = vst [vmem:[%s2 + $0x1dc] sm:$0xf] %v2853
  %3110 = vst [vmem:[%s2 + $0x1e0] sm:$0xf] %v2854
  %3111 = vst [vmem:[%s2 + $0x1e4] sm:$0xf] %v2855
  %3112 = vst [vmem:[%s2 + $0x1e8] sm:$0xf] %v2856
  %3113 = vst [vmem:[%s2 + $0x1ec] sm:$0xf] %v2857
  %3114 = vst [vmem:[%s2 + $0x1f0] sm:$0xf] %v2858
  %3115 = vst [vmem:[%s2 + $0x1f4] sm:$0xf] %v2859
  %3116 = vst [vmem:[%s2 + $0x1f8] sm:$0xf] %v2860
  %3117 = vst [vmem:[%s2 + $0x1fc] sm:$0xf] %v2861
  %3118 = vst [vmem:[%s2 + $0x200] sm:$0xf] %v2862
  %3119 = vst [vmem:[%s2 + $0x204] sm:$0xf] %v2863
  %3120 = vst [vmem:[%s2 + $0x208] sm:$0xf] %v2864
  %3121 = vst [vmem:[%s2 + $0x20c] sm:$0xf] %v2865
  %3122 = vst [vmem:[%s2 + $0x210] sm:$0xf] %v2866
  %3123 = vst [vmem:[%s2 + $0x214] sm:$0xf] %v2867
  %3124 = vst [vmem:[%s2 + $0x218] sm:$0xf] %v2868
  %3125 = vst [vmem:[%s2 + $0x21c] sm:$0xf] %v2869
  %3126 = vst [vmem:[%s2 + $0x220] sm:$0xf] %v2870
  %3127 = vst [vmem:[%s2 + $0x224] sm:$0xf] %v2871
  %3128 = vst [vmem:[%s2 + $0x228] sm:$0xf] %v2872
  %3129 = vst [vmem:[%s2 + $0x22c] sm:$0xf] %v2873
  %3130 = vst [vmem:[%s2 + $0x230] sm:$0xf] %v2874
  %3131 = vst [vmem:[%s2 + $0x234] sm:$0xf] %v2875
  %3132 = vst [vmem:[%s2 + $0x238] sm:$0xf] %v2876
  %3133 = vst [vmem:[%s2 + $0x23c] sm:$0xf] %v2877
  %3134 = vst [vmem:[%s2 + $0x240] sm:$0xf] %v2878
  %3135 = vst [vmem:[%s2 + $0x244] sm:$0xf] %v2879
  %3136 = vst [vmem:[%s2 + $0x248] sm:$0xf] %v2880
  %3137 = vst [vmem:[%s2 + $0x24c] sm:$0xf] %v2881
  %3138 = vst [vmem:[%s2 + $0x250] sm:$0xf] %v2882
  %3139 = vst [vmem:[%s2 + $0x254] sm:$0xf] %v2883
  %3140 = vst [vmem:[%s2 + $0x258] sm:$0xf] %v2884
  %3141 = vst [vmem:[%s2 + $0x25c] sm:$0xf] %v2885
  %3142 = vst [vmem:[%s2 + $0x260] sm:$0xf] %v2886
  %3143 = vst [vmem:[%s2 + $0x264] sm:$0xf] %v2887
  %3144 = vst [vmem:[%s2 + $0x268] sm:$0xf] %v2888
  %3145 = vst [vmem:[%s2 + $0x26c] sm:$0xf] %v2889
  %3146 = vst [vmem:[%s2 + $0x270] sm:$0xf] %v2890
  %3147 = vst [vmem:[%s2 + $0x274] sm:$0xf] %v2891
  %3148 = vst [vmem:[%s2 + $0x278] sm:$0xf] %v2892
  %3149 = vst [vmem:[%s2 + $0x27c] sm:$0xf] %v2893
  %3150 = vst [vmem:[%s2 + $0x280] sm:$0xf] %v2894
  %3151 = vst [vmem:[%s2 + $0x284] sm:$0xf] %v2895
  %3152 = vst [vmem:[%s2 + $0x288] sm:$0xf] %v2896
  %3153 = vst [vmem:[%s2 + $0x28c] sm:$0xf] %v2897
  %3154 = vst [vmem:[%s2 + $0x290] sm:$0xf] %v2898
  %3155 = vst [vmem:[%s2 + $0x294] sm:$0xf] %v2899
  %3156 = vst [vmem:[%s2 + $0x298] sm:$0xf] %v2900
  %3157 = vst [vmem:[%s2 + $0x29c] sm:$0xf] %v2901
  %3158 = vst [vmem:[%s2 + $0x2a0] sm:$0xf] %v2902
  %3159 = vst [vmem:[%s2 + $0x2a4] sm:$0xf] %v2903
  %3160 = vst [vmem:[%s2 + $0x2a8] sm:$0xf] %v2904
  %3161 = vst [vmem:[%s2 + $0x2ac] sm:$0xf] %v2905
  %3162 = vst [vmem:[%s2 + $0x2b0] sm:$0xf] %v2906
  %3163 = vst [vmem:[%s2 + $0x2b4] sm:$0xf] %v2907
  %3164 = vst [vmem:[%s2 + $0x2b8] sm:$0xf] %v2908
  %3165 = vst [vmem:[%s2 + $0x2bc] sm:$0xf] %v2909
  %3166 = vst [vmem:[%s2 + $0x2c0] sm:$0xf] %v2910
  %3167 = vst [vmem:[%s2 + $0x2c4] sm:$0xf] %v2911
  %3168 = vst [vmem:[%s2 + $0x2c8] sm:$0xf] %v2912
  %3169 = vst [vmem:[%s2 + $0x2cc] sm:$0xf] %v2913
  %3170 = vst [vmem:[%s2 + $0x2d0] sm:$0xf] %v2914
  %3171 = vst [vmem:[%s2 + $0x2d4] sm:$0xf] %v2915
  %3172 = vst [vmem:[%s2 + $0x2d8] sm:$0xf] %v2916
  %3173 = vst [vmem:[%s2 + $0x2dc] sm:$0xf] %v2917
  %3174 = vst [vmem:[%s2 + $0x2e0] sm:$0xf] %v2918
  %3175 = vst [vmem:[%s2 + $0x2e4] sm:$0xf] %v2919
  %3176 = vst [vmem:[%s2 + $0x2e8] sm:$0xf] %v2920
  %3177 = vst [vmem:[%s2 + $0x2ec] sm:$0xf] %v2921
  %3178 = vst [vmem:[%s2 + $0x2f0] sm:$0xf] %v2922
  %3179 = vst [vmem:[%s2 + $0x2f4] sm:$0xf] %v2923
  %3180 = vst [vmem:[%s2 + $0x2f8] sm:$0xf] %v2924
  %3181 = vst [vmem:[%s2 + $0x2fc] sm:$0xf] %v2925
  %3182 = vst [vmem:[%s2 + $0x300] sm:$0xf] %v2926
  %3183 = vst [vmem:[%s2 + $0x304] sm:$0xf] %v2927
  %3184 = vst [vmem:[%s2 + $0x308] sm:$0xf] %v2928
  %3185 = vst [vmem:[%s2 + $0x30c] sm:$0xf] %v2929
  %3186 = vst [vmem:[%s2 + $0x310] sm:$0xf] %v2930
  %3187 = vst [vmem:[%s2 + $0x314] sm:$0xf] %v2931
  %3188 = vst [vmem:[%s2 + $0x318] sm:$0xf] %v2932
  %3189 = vst [vmem:[%s2 + $0x31c] sm:$0xf] %v2933
  %3190 = vst [vmem:[%s2 + $0x320] sm:$0xf] %v2934
  %3191 = vst [vmem:[%s2 + $0x324] sm:$0xf] %v2935
  %3192 = vst [vmem:[%s2 + $0x328] sm:$0xf] %v2936
  %3193 = vst [vmem:[%s2 + $0x32c] sm:$0xf] %v2937
  %3194 = vst [vmem:[%s2 + $0x330] sm:$0xf] %v2938
  %3195 = vst [vmem:[%s2 + $0x334] sm:$0xf] %v2939
  %3196 = vst [vmem:[%s2 + $0x338] sm:$0xf] %v2940
  %3197 = vst [vmem:[%s2 + $0x33c] sm:$0xf] %v2941
  %3198 = vst [vmem:[%s2 + $0x340] sm:$0xf] %v2942
  %3199 = vst [vmem:[%s2 + $0x344] sm:$0xf] %v2943
  %3200 = vst [vmem:[%s2 + $0x348] sm:$0xf] %v2944
  %3201 = vst [vmem:[%s2 + $0x34c] sm:$0xf] %v2945
  %3202 = vst [vmem:[%s2 + $0x350] sm:$0xf] %v2946
  %3203 = vst [vmem:[%s2 + $0x354] sm:$0xf] %v2947
  %3204 = vst [vmem:[%s2 + $0x358] sm:$0xf] %v2948
  %3205 = vst [vmem:[%s2 + $0x35c] sm:$0xf] %v2949
  %3206 = vst [vmem:[%s2 + $0x360] sm:$0xf] %v2950
  %3207 = vst [vmem:[%s2 + $0x364] sm:$0xf] %v2951
  %3208 = vst [vmem:[%s2 + $0x368] sm:$0xf] %v2952
  %3209 = vst [vmem:[%s2 + $0x36c] sm:$0xf] %v2953
  %3210 = vst [vmem:[%s2 + $0x370] sm:$0xf] %v2954
  %3211 = vst [vmem:[%s2 + $0x374] sm:$0xf] %v2955
  %3212 = vst [vmem:[%s2 + $0x378] sm:$0xf] %v2956
  %3213 = vst [vmem:[%s2 + $0x37c] sm:$0xf] %v2957
  %3214 = vst [vmem:[%s2 + $0x380] sm:$0xf] %v2958
  %3215 = vst [vmem:[%s2 + $0x384] sm:$0xf] %v2959
  %3216 = vst [vmem:[%s2 + $0x388] sm:$0xf] %v2960
  %3217 = vst [vmem:[%s2 + $0x38c] sm:$0xf] %v2961
  %3218 = vst [vmem:[%s2 + $0x390] sm:$0xf] %v2962
  %3219 = vst [vmem:[%s2 + $0x394] sm:$0xf] %v2963
  %3220 = vst [vmem:[%s2 + $0x398] sm:$0xf] %v2964
  %3221 = vst [vmem:[%s2 + $0x39c] sm:$0xf] %v2965
  %3222 = vst [vmem:[%s2 + $0x3a0] sm:$0xf] %v2966
  %3223 = vst [vmem:[%s2 + $0x3a4] sm:$0xf] %v2967
  %3224 = vst [vmem:[%s2 + $0x3a8] sm:$0xf] %v2968
  %3225 = vst [vmem:[%s2 + $0x3ac] sm:$0xf] %v2969
  %3226 = vst [vmem:[%s2 + $0x3b0] sm:$0xf] %v2970
  %3227 = vst [vmem:[%s2 + $0x3b4] sm:$0xf] %v2971
  %3228 = vst [vmem:[%s2 + $0x3b8] sm:$0xf] %v2972
  %3229 = vst [vmem:[%s2 + $0x3bc] sm:$0xf] %v2973
  %3230 = vst [vmem:[%s2 + $0x3c0] sm:$0xf] %v2974
  %3231 = vst [vmem:[%s2 + $0x3c4] sm:$0xf] %v2975
  %3232 = vst [vmem:[%s2 + $0x3c8] sm:$0xf] %v2976
  %3233 = vst [vmem:[%s2 + $0x3cc] sm:$0xf] %v2977
  %3234 = vst [vmem:[%s2 + $0x3d0] sm:$0xf] %v2978
  %3235 = vst [vmem:[%s2 + $0x3d4] sm:$0xf] %v2979
  %3236 = vst [vmem:[%s2 + $0x3d8] sm:$0xf] %v2980
  %3237 = vst [vmem:[%s2 + $0x3dc] sm:$0xf] %v2981
  %3238 = vst [vmem:[%s2 + $0x3e0] sm:$0xf] %v2982
  %3239 = vst [vmem:[%s2 + $0x3e4] sm:$0xf] %v2983
  %3240 = vst [vmem:[%s2 + $0x3e8] sm:$0xf] %v2984
  %3241 = vst [vmem:[%s2 + $0x3ec] sm:$0xf] %v2985
  %3242 = vst [vmem:[%s2 + $0x3f0] sm:$0xf] %v2986
  %3243 = vst [vmem:[%s2 + $0x3f4] sm:$0xf] %v2987
  %3244 = vst [vmem:[%s2 + $0x3f8] sm:$0xf] %v2988
  %3245 = vst [vmem:[%s2 + $0x3fc] sm:$0xf] %v2989
  // Predicated region
  $region10: #{_lambda_.4} parent=0 // pred_check
    _
  $region11: #{_lambda_.4} parent=0 // pred_check_branch
    %3247 = sbr.rel (0) target = $region13
  $region12: #{_lambda_.4} parent=0 // pred_region
    _
  $region13: #{_lambda_.4} parent=0 // pred_fallthru
    _
  // Predicated region
  $region14: #{_lambda_.4} parent=0 // pred_check
    _
  $region15: #{_lambda_.4} parent=0 // pred_check_branch
    %3249 = sbr.rel (0) target = $region17
  $region16: #{_lambda_.4} parent=0 // pred_region
    _
  $region17: #{_lambda_.4} parent=0 // pred_fallthru
    _

// kernel: _lambda_.5
$region0: #{_lambda_.5}
  #allocation0 [shape = 'u32[]', space=smem, size = 0x4, offset = 0x4, fixed_abs, tag = 'smem constant byte address 0x4 - core index']
  #allocation1 [shape = 'u32[72,128]{1,0:T(1,128)}', space=vmem, size = 0x9000, scoped, tag = 'internal scratch']
  %s0 = inlined_call_operand.vmem [shape: bf16[512,128], index: 0, kind: input, shape index: {}]
  %s1 = inlined_call_operand.vmem [shape: bf16[128,128], index: 1, kind: input, shape index: {}]
  %s2 = inlined_call_operand.vmem [shape: f32[1,128], index: 2, kind: input, shape index: {}]
  %s3 = inlined_call_operand.vmem [shape: f32[1,128], index: 3, kind: input, shape index: {}]
  %s4 = inlined_call_operand.vmem [shape: bf16[512,128], index: 4, kind: output, shape index: {}]
  %s5 = sld [smem:[#allocation0]]
  $region26: #{_lambda_.5} parent=0
    _
  %s7 = ssub.s32 1, %s5
  %s8 = scalar_select 0, %s7, %s5
  // Predicated region
  $region2: #{_lambda_.5} parent=0 // pred_check
    _
  $region3: #{_lambda_.5} parent=0 // pred_check_branch
    %10 = sbr.rel (0) target = $region5
  $region4: #{_lambda_.5} parent=0 // pred_region
    _
  $region5: #{_lambda_.5} parent=0 // pred_fallthru
    _
  // Predicated region
  $region6: #{_lambda_.5} parent=0 // pred_check
    _
  $region7: #{_lambda_.5} parent=0 // pred_check_branch
    %12 = sbr.rel (0) target = $region9
  $region8: #{_lambda_.5} parent=0 // pred_region
    _
  $region9: #{_lambda_.5} parent=0 // pred_fallthru
    _
  // Predicated region
  $region10: #{_lambda_.5} parent=0 // pred_check
    _
  $region11: #{_lambda_.5} parent=0 // pred_check_branch
    %14 = sbr.rel (0) target = $region13
  $region12: #{_lambda_.5} parent=0 // pred_region
    _
  $region13: #{_lambda_.5} parent=0 // pred_fallthru
    _
  // Predicated region
  $region14: #{_lambda_.5} parent=0 // pred_check
    _
  $region15: #{_lambda_.5} parent=0 // pred_check_branch
    %16 = sbr.rel (0) target = $region17
  $region16: #{_lambda_.5} parent=0 // pred_region
    _
  $region17: #{_lambda_.5} parent=0 // pred_fallthru
    _
  %v17 = vld [vmem:[%s0] sm:$0xf]
  %v18 = vld [vmem:[%s0 + $0x4] sm:$0xf]
  %v19 = vld [vmem:[%s0 + $0x8] sm:$0xf]
  %v20 = vld [vmem:[%s0 + $0xc] sm:$0xf]
  %v21 = vld [vmem:[%s0 + $0x10] sm:$0xf]
  %v22 = vld [vmem:[%s0 + $0x14] sm:$0xf]
  %v23 = vld [vmem:[%s0 + $0x18] sm:$0xf]
  %v24 = vld [vmem:[%s0 + $0x1c] sm:$0xf]
  %v25 = vld [vmem:[%s0 + $0x20] sm:$0xf]
  %v26 = vld [vmem:[%s0 + $0x24] sm:$0xf]
  %v27 = vld [vmem:[%s0 + $0x28] sm:$0xf]
  %v28 = vld [vmem:[%s0 + $0x2c] sm:$0xf]
  %v29 = vld [vmem:[%s0 + $0x30] sm:$0xf]
  %v30 = vld [vmem:[%s0 + $0x34] sm:$0xf]
  %v31 = vld [vmem:[%s0 + $0x38] sm:$0xf]
  %v32 = vld [vmem:[%s0 + $0x3c] sm:$0xf]
  %v33 = vld [vmem:[%s0 + $0x40] sm:$0xf]
  %v34 = vld [vmem:[%s0 + $0x44] sm:$0xf]
  %v35 = vld [vmem:[%s0 + $0x48] sm:$0xf]
  %v36 = vld [vmem:[%s0 + $0x4c] sm:$0xf]
  %v37 = vld [vmem:[%s0 + $0x50] sm:$0xf]
  %v38 = vld [vmem:[%s0 + $0x54] sm:$0xf]
  %v39 = vld [vmem:[%s0 + $0x58] sm:$0xf]
  %v40 = vld [vmem:[%s0 + $0x5c] sm:$0xf]
  %v41 = vld [vmem:[%s0 + $0x60] sm:$0xf]
  %v42 = vld [vmem:[%s0 + $0x64] sm:$0xf]
  %v43 = vld [vmem:[%s0 + $0x68] sm:$0xf]
  %v44 = vld [vmem:[%s0 + $0x6c] sm:$0xf]
  %v45 = vld [vmem:[%s0 + $0x70] sm:$0xf]
  %v46 = vld [vmem:[%s0 + $0x74] sm:$0xf]
  %v47 = vld [vmem:[%s0 + $0x78] sm:$0xf]
  %v48 = vld [vmem:[%s0 + $0x7c] sm:$0xf]
  %v49 = vld [vmem:[%s0 + $0x80] sm:$0xf]
  %v50 = vld [vmem:[%s0 + $0x84] sm:$0xf]
  %v51 = vld [vmem:[%s0 + $0x88] sm:$0xf]
  %v52 = vld [vmem:[%s0 + $0x8c] sm:$0xf]
  %v53 = vld [vmem:[%s0 + $0x90] sm:$0xf]
  %v54 = vld [vmem:[%s0 + $0x94] sm:$0xf]
  %v55 = vld [vmem:[%s0 + $0x98] sm:$0xf]
  %v56 = vld [vmem:[%s0 + $0x9c] sm:$0xf]
  %v57 = vld [vmem:[%s0 + $0xa0] sm:$0xf]
  %v58 = vld [vmem:[%s0 + $0xa4] sm:$0xf]
  %v59 = vld [vmem:[%s0 + $0xa8] sm:$0xf]
  %v60 = vld [vmem:[%s0 + $0xac] sm:$0xf]
  %v61 = vld [vmem:[%s0 + $0xb0] sm:$0xf]
  %v62 = vld [vmem:[%s0 + $0xb4] sm:$0xf]
  %v63 = vld [vmem:[%s0 + $0xb8] sm:$0xf]
  %v64 = vld [vmem:[%s0 + $0xbc] sm:$0xf]
  %v65 = vld [vmem:[%s0 + $0xc0] sm:$0xf]
  %v66 = vld [vmem:[%s0 + $0xc4] sm:$0xf]
  %v67 = vld [vmem:[%s0 + $0xc8] sm:$0xf]
  %v68 = vld [vmem:[%s0 + $0xcc] sm:$0xf]
  %v69 = vld [vmem:[%s0 + $0xd0] sm:$0xf]
  %v70 = vld [vmem:[%s0 + $0xd4] sm:$0xf]
  %v71 = vld [vmem:[%s0 + $0xd8] sm:$0xf]
  %v72 = vld [vmem:[%s0 + $0xdc] sm:$0xf]
  %v73 = vld [vmem:[%s0 + $0xe0] sm:$0xf]
  %v74 = vld [vmem:[%s0 + $0xe4] sm:$0xf]
  %v75 = vld [vmem:[%s0 + $0xe8] sm:$0xf]
  %v76 = vld [vmem:[%s0 + $0xec] sm:$0xf]
  %v77 = vld [vmem:[%s0 + $0xf0] sm:$0xf]
  %v78 = vld [vmem:[%s0 + $0xf4] sm:$0xf]
  %v79 = vld [vmem:[%s0 + $0xf8] sm:$0xf]
  %v80 = vld [vmem:[%s0 + $0xfc] sm:$0xf]
  %v81 = vld [vmem:[%s1] sm:$0xf]
  %v82 = vld [vmem:[%s1 + $0x4] sm:$0xf]
  %v83 = vld [vmem:[%s1 + $0x8] sm:$0xf]
  %v84 = vld [vmem:[%s1 + $0xc] sm:$0xf]
  %v85 = vld [vmem:[%s1 + $0x10] sm:$0xf]
  %v86 = vld [vmem:[%s1 + $0x14] sm:$0xf]
  %v87 = vld [vmem:[%s1 + $0x18] sm:$0xf]
  %v88 = vld [vmem:[%s1 + $0x1c] sm:$0xf]
  %v89 = vld [vmem:[%s1 + $0x20] sm:$0xf]
  %v90 = vld [vmem:[%s1 + $0x24] sm:$0xf]
  %v91 = vld [vmem:[%s1 + $0x28] sm:$0xf]
  %v92 = vld [vmem:[%s1 + $0x2c] sm:$0xf]
  %v93 = vld [vmem:[%s1 + $0x30] sm:$0xf]
  %v94 = vld [vmem:[%s1 + $0x34] sm:$0xf]
  %v95 = vld [vmem:[%s1 + $0x38] sm:$0xf]
  %v96 = vld [vmem:[%s1 + $0x3c] sm:$0xf]
  %v161 = vunpack.c.l.b16 %v17
  %v162 = vunpack.c.l.b16 %v18
  %v163 = vunpack.c.l.b16 %v19
  %v164 = vunpack.c.l.b16 %v20
  %v165 = vunpack.c.l.b16 %v21
  %v166 = vunpack.c.l.b16 %v22
  %v167 = vunpack.c.l.b16 %v23
  %v168 = vunpack.c.l.b16 %v24
  %v169 = vunpack.c.l.b16 %v25
  %v170 = vunpack.c.l.b16 %v26
  %v171 = vunpack.c.l.b16 %v27
  %v172 = vunpack.c.l.b16 %v28
  %v173 = vunpack.c.l.b16 %v29
  %v174 = vunpack.c.l.b16 %v30
  %v175 = vunpack.c.l.b16 %v31
  %v176 = vunpack.c.l.b16 %v32
  %v177 = vunpack.c.l.b16 %v33
  %v178 = vunpack.c.l.b16 %v34
  %v179 = vunpack.c.l.b16 %v35
  %v180 = vunpack.c.l.b16 %v36
  %v181 = vunpack.c.l.b16 %v37
  %v182 = vunpack.c.l.b16 %v38
  %v183 = vunpack.c.l.b16 %v39
  %v184 = vunpack.c.l.b16 %v40
  %v185 = vunpack.c.l.b16 %v41
  %v186 = vunpack.c.l.b16 %v42
  %v187 = vunpack.c.l.b16 %v43
  %v188 = vunpack.c.l.b16 %v44
  %v189 = vunpack.c.l.b16 %v45
  %v190 = vunpack.c.l.b16 %v46
  %v191 = vunpack.c.l.b16 %v47
  %v192 = vunpack.c.l.b16 %v48
  %v193 = vunpack.c.l.b16 %v49
  %v194 = vunpack.c.l.b16 %v50
  %v195 = vunpack.c.l.b16 %v51
  %v196 = vunpack.c.l.b16 %v52
  %v197 = vunpack.c.l.b16 %v53
  %v198 = vunpack.c.l.b16 %v54
  %v199 = vunpack.c.l.b16 %v55
  %v200 = vunpack.c.l.b16 %v56
  %v201 = vunpack.c.l.b16 %v57
  %v202 = vunpack.c.l.b16 %v58
  %v203 = vunpack.c.l.b16 %v59
  %v204 = vunpack.c.l.b16 %v60
  %v205 = vunpack.c.l.b16 %v61
  %v206 = vunpack.c.l.b16 %v62
  %v207 = vunpack.c.l.b16 %v63
  %v208 = vunpack.c.l.b16 %v64
  %v209 = vunpack.c.l.b16 %v65
  %v210 = vunpack.c.l.b16 %v66
  %v211 = vunpack.c.l.b16 %v67
  %v212 = vunpack.c.l.b16 %v68
  %v213 = vunpack.c.l.b16 %v69
  %v214 = vunpack.c.l.b16 %v70
  %v215 = vunpack.c.l.b16 %v71
  %v216 = vunpack.c.l.b16 %v72
  %v217 = vunpack.c.l.b16 %v73
  %v218 = vunpack.c.l.b16 %v74
  %v219 = vunpack.c.l.b16 %v75
  %v220 = vunpack.c.l.b16 %v76
  %v221 = vunpack.c.l.b16 %v77
  %v222 = vunpack.c.l.b16 %v78
  %v223 = vunpack.c.l.b16 %v79
  %v224 = vunpack.c.l.b16 %v80
  %v225 = vpack.c.b16 %v162, %v161
  %v226 = vpack.c.b16 %v164, %v163
  %v227 = vpack.c.b16 %v166, %v165
  %v228 = vpack.c.b16 %v168, %v167
  %v229 = vpack.c.b16 %v170, %v169
  %v230 = vpack.c.b16 %v172, %v171
  %v231 = vpack.c.b16 %v174, %v173
  %v232 = vpack.c.b16 %v176, %v175
  %v233 = vpack.c.b16 %v178, %v177
  %v234 = vpack.c.b16 %v180, %v179
  %v235 = vpack.c.b16 %v182, %v181
  %v236 = vpack.c.b16 %v184, %v183
  %v237 = vpack.c.b16 %v186, %v185
  %v238 = vpack.c.b16 %v188, %v187
  %v239 = vpack.c.b16 %v190, %v189
  %v240 = vpack.c.b16 %v192, %v191
  %v241 = vpack.c.b16 %v194, %v193
  %v242 = vpack.c.b16 %v196, %v195
  %v243 = vpack.c.b16 %v198, %v197
  %v244 = vpack.c.b16 %v200, %v199
  %v245 = vpack.c.b16 %v202, %v201
  %v246 = vpack.c.b16 %v204, %v203
  %v247 = vpack.c.b16 %v206, %v205
  %v248 = vpack.c.b16 %v208, %v207
  %v249 = vpack.c.b16 %v210, %v209
  %v250 = vpack.c.b16 %v212, %v211
  %v251 = vpack.c.b16 %v214, %v213
  %v252 = vpack.c.b16 %v216, %v215
  %v253 = vpack.c.b16 %v218, %v217
  %v254 = vpack.c.b16 %v220, %v219
  %v255 = vpack.c.b16 %v222, %v221
  %v256 = vpack.c.b16 %v224, %v223
  %v305 = vunpack.c.l.b16 %v81
  %v306 = vunpack.c.l.b16 %v82
  %v307 = vunpack.c.l.b16 %v83
  %v308 = vunpack.c.l.b16 %v84
  %v309 = vunpack.c.l.b16 %v85
  %v310 = vunpack.c.l.b16 %v86
  %v311 = vunpack.c.l.b16 %v87
  %v312 = vunpack.c.l.b16 %v88
  %v313 = vunpack.c.l.b16 %v89
  %v314 = vunpack.c.l.b16 %v90
  %v315 = vunpack.c.l.b16 %v91
  %v316 = vunpack.c.l.b16 %v92
  %v317 = vunpack.c.l.b16 %v93
  %v318 = vunpack.c.l.b16 %v94
  %v319 = vunpack.c.l.b16 %v95
  %v320 = vunpack.c.l.b16 %v96
  %v321 = vpack.c.b16 %v306, %v305
  %v322 = vpack.c.b16 %v308, %v307
  %v323 = vpack.c.b16 %v310, %v309
  %v324 = vpack.c.b16 %v312, %v311
  %v325 = vpack.c.b16 %v314, %v313
  %v326 = vpack.c.b16 %v316, %v315
  %v327 = vpack.c.b16 %v318, %v317
  %v328 = vpack.c.b16 %v320, %v319
  %337 = vmatpush.bf16.msra.mxu0 %v328
  %338 = vmatpush.bf16.msra.mxu0 %v327
  %339 = vmatpush.bf16.msra.mxu0 %v326
  %340 = vmatpush.bf16.msra.mxu0 %v325
  %341 = vmatpush.bf16.msra.mxu0 %v324
  %342 = vmatpush.bf16.msra.mxu0 %v323
  %343 = vmatpush.bf16.msra.mxu0 %v322
  %344 = vmatpush.bf16.msra.mxu0 %v321
  %345 = vmatmul.bf16.gmra.mxu0 %v225
  %v346 = vpop.f32.mrf.mxu0
  %v347 = vadd.f32 0.0, %v346
  %v348 = vpop.f32.mrf.mxu0
  %v349 = vadd.f32 0.0, %v348
  %350 = vmatmul.bf16.gmra.mxu0 %v226
  %v351 = vpop.f32.mrf.mxu0
  %v352 = vadd.f32 0.0, %v351
  %v353 = vpop.f32.mrf.mxu0
  %v354 = vadd.f32 0.0, %v353
  %355 = vmatmul.bf16.gmra.mxu0 %v227
  %v356 = vpop.f32.mrf.mxu0
  %v357 = vadd.f32 0.0, %v356
  %v358 = vpop.f32.mrf.mxu0
  %v359 = vadd.f32 0.0, %v358
  %360 = vmatmul.bf16.gmra.mxu0 %v228
  %v361 = vpop.f32.mrf.mxu0
  %v362 = vadd.f32 0.0, %v361
  %v363 = vpop.f32.mrf.mxu0
  %v364 = vadd.f32 0.0, %v363
  %365 = vmatmul.bf16.gmra.mxu0 %v229
  %v366 = vpop.f32.mrf.mxu0
  %v367 = vadd.f32 0.0, %v366
  %v368 = vpop.f32.mrf.mxu0
  %v369 = vadd.f32 0.0, %v368
  %370 = vmatmul.bf16.gmra.mxu0 %v230
  %v371 = vpop.f32.mrf.mxu0
  %v372 = vadd.f32 0.0, %v371
  %v373 = vpop.f32.mrf.mxu0
  %v374 = vadd.f32 0.0, %v373
  %375 = vmatmul.bf16.gmra.mxu0 %v231
  %v376 = vpop.f32.mrf.mxu0
  %v377 = vadd.f32 0.0, %v376
  %v378 = vpop.f32.mrf.mxu0
  %v379 = vadd.f32 0.0, %v378
  %380 = vmatmul.bf16.gmra.mxu0 %v232
  %v381 = vpop.f32.mrf.mxu0
  %v382 = vadd.f32 0.0, %v381
  %v383 = vpop.f32.mrf.mxu0
  %v384 = vadd.f32 0.0, %v383
  %385 = vmatmul.bf16.gmra.mxu0 %v233
  %v386 = vpop.f32.mrf.mxu0
  %v387 = vadd.f32 0.0, %v386
  %v388 = vpop.f32.mrf.mxu0
  %v389 = vadd.f32 0.0, %v388
  %390 = vmatmul.bf16.gmra.mxu0 %v234
  %v391 = vpop.f32.mrf.mxu0
  %v392 = vadd.f32 0.0, %v391
  %v393 = vpop.f32.mrf.mxu0
  %v394 = vadd.f32 0.0, %v393
  %395 = vmatmul.bf16.gmra.mxu0 %v235
  %v396 = vpop.f32.mrf.mxu0
  %v397 = vadd.f32 0.0, %v396
  %v398 = vpop.f32.mrf.mxu0
  %v399 = vadd.f32 0.0, %v398
  %400 = vmatmul.bf16.gmra.mxu0 %v236
  %v401 = vpop.f32.mrf.mxu0
  %v402 = vadd.f32 0.0, %v401
  %v403 = vpop.f32.mrf.mxu0
  %v404 = vadd.f32 0.0, %v403
  %405 = vmatmul.bf16.gmra.mxu0 %v237
  %v406 = vpop.f32.mrf.mxu0
  %v407 = vadd.f32 0.0, %v406
  %v408 = vpop.f32.mrf.mxu0
  %v409 = vadd.f32 0.0, %v408
  %410 = vmatmul.bf16.gmra.mxu0 %v238
  %v411 = vpop.f32.mrf.mxu0
  %v412 = vadd.f32 0.0, %v411
  %v413 = vpop.f32.mrf.mxu0
  %v414 = vadd.f32 0.0, %v413
  %415 = vmatmul.bf16.gmra.mxu0 %v239
  %v416 = vpop.f32.mrf.mxu0
  %v417 = vadd.f32 0.0, %v416
  %v418 = vpop.f32.mrf.mxu0
  %v419 = vadd.f32 0.0, %v418
  %420 = vmatmul.bf16.gmra.mxu0 %v240
  %v421 = vpop.f32.mrf.mxu0
  %v422 = vadd.f32 0.0, %v421
  %v423 = vpop.f32.mrf.mxu0
  %v424 = vadd.f32 0.0, %v423
  %425 = vmatmul.bf16.gmra.mxu0 %v241
  %v426 = vpop.f32.mrf.mxu0
  %v427 = vadd.f32 0.0, %v426
  %v428 = vpop.f32.mrf.mxu0
  %v429 = vadd.f32 0.0, %v428
  %430 = vmatmul.bf16.gmra.mxu0 %v242
  %v431 = vpop.f32.mrf.mxu0
  %v432 = vadd.f32 0.0, %v431
  %v433 = vpop.f32.mrf.mxu0
  %v434 = vadd.f32 0.0, %v433
  %435 = vmatmul.bf16.gmra.mxu0 %v243
  %v436 = vpop.f32.mrf.mxu0
  %v437 = vadd.f32 0.0, %v436
  %v438 = vpop.f32.mrf.mxu0
  %v439 = vadd.f32 0.0, %v438
  %440 = vmatmul.bf16.gmra.mxu0 %v244
  %v441 = vpop.f32.mrf.mxu0
  %v442 = vadd.f32 0.0, %v441
  %v443 = vpop.f32.mrf.mxu0
  %v444 = vadd.f32 0.0, %v443
  %445 = vmatmul.bf16.gmra.mxu0 %v245
  %v446 = vpop.f32.mrf.mxu0
  %v447 = vadd.f32 0.0, %v446
  %v448 = vpop.f32.mrf.mxu0
  %v449 = vadd.f32 0.0, %v448
  %450 = vmatmul.bf16.gmra.mxu0 %v246
  %v451 = vpop.f32.mrf.mxu0
  %v452 = vadd.f32 0.0, %v451
  %v453 = vpop.f32.mrf.mxu0
  %v454 = vadd.f32 0.0, %v453
  %455 = vmatmul.bf16.gmra.mxu0 %v247
  %v456 = vpop.f32.mrf.mxu0
  %v457 = vadd.f32 0.0, %v456
  %v458 = vpop.f32.mrf.mxu0
  %v459 = vadd.f32 0.0, %v458
  %460 = vmatmul.bf16.gmra.mxu0 %v248
  %v461 = vpop.f32.mrf.mxu0
  %v462 = vadd.f32 0.0, %v461
  %v463 = vpop.f32.mrf.mxu0
  %v464 = vadd.f32 0.0, %v463
  %465 = vmatmul.bf16.gmra.mxu0 %v249
  %v466 = vpop.f32.mrf.mxu0
  %v467 = vadd.f32 0.0, %v466
  %v468 = vpop.f32.mrf.mxu0
  %v469 = vadd.f32 0.0, %v468
  %470 = vmatmul.bf16.gmra.mxu0 %v250
  %v471 = vpop.f32.mrf.mxu0
  %v472 = vadd.f32 0.0, %v471
  %v473 = vpop.f32.mrf.mxu0
  %v474 = vadd.f32 0.0, %v473
  %475 = vmatmul.bf16.gmra.mxu0 %v251
  %v476 = vpop.f32.mrf.mxu0
  %v477 = vadd.f32 0.0, %v476
  %v478 = vpop.f32.mrf.mxu0
  %v479 = vadd.f32 0.0, %v478
  %480 = vmatmul.bf16.gmra.mxu0 %v252
  %v481 = vpop.f32.mrf.mxu0
  %v482 = vadd.f32 0.0, %v481
  %v483 = vpop.f32.mrf.mxu0
  %v484 = vadd.f32 0.0, %v483
  %485 = vmatmul.bf16.gmra.mxu0 %v253
  %v486 = vpop.f32.mrf.mxu0
  %v487 = vadd.f32 0.0, %v486
  %v488 = vpop.f32.mrf.mxu0
  %v489 = vadd.f32 0.0, %v488
  %490 = vmatmul.bf16.gmra.mxu0 %v254
  %v491 = vpop.f32.mrf.mxu0
  %v492 = vadd.f32 0.0, %v491
  %v493 = vpop.f32.mrf.mxu0
  %v494 = vadd.f32 0.0, %v493
  %495 = vmatmul.bf16.gmra.mxu0 %v255
  %v496 = vpop.f32.mrf.mxu0
  %v497 = vadd.f32 0.0, %v496
  %v498 = vpop.f32.mrf.mxu0
  %v499 = vadd.f32 0.0, %v498
  %500 = vmatmul.bf16.gmra.mxu0 %v256
  %v501 = vpop.f32.mrf.mxu0
  %v502 = vadd.f32 0.0, %v501
  %v503 = vpop.f32.mrf.mxu0
  %v504 = vadd.f32 0.0, %v503
  %505 = vdwg.mxu0
  %v506 = vld [vmem:[%s2] sm:$0x1]
  %v507 = vld [vmem:[%s3] sm:$0x1]
  %v508 = vadd.f32 %v347, %v349
  %v509 = vadd.f32 %v508, %v352
  %v510 = vadd.f32 %v509, %v354
  %v511 = vadd.f32 %v510, %v357
  %v512 = vadd.f32 %v511, %v359
  %v513 = vadd.f32 %v512, %v362
  %v514 = vadd.f32 %v513, %v364
  %v515 = vadd.f32 %v514, %v367
  %v516 = vadd.f32 %v515, %v369
  %v517 = vadd.f32 %v516, %v372
  %v518 = vadd.f32 %v517, %v374
  %v519 = vadd.f32 %v518, %v377
  %v520 = vadd.f32 %v519, %v379
  %v521 = vadd.f32 %v520, %v382
  %v522 = vadd.f32 %v521, %v384
  %v523 = vadd.f32 %v522, %v387
  %v524 = vadd.f32 %v523, %v389
  %v525 = vadd.f32 %v524, %v392
  %v526 = vadd.f32 %v525, %v394
  %v527 = vadd.f32 %v526, %v397
  %v528 = vadd.f32 %v527, %v399
  %v529 = vadd.f32 %v528, %v402
  %v530 = vadd.f32 %v529, %v404
  %v531 = vadd.f32 %v530, %v407
  %v532 = vadd.f32 %v531, %v409
  %v533 = vadd.f32 %v532, %v412
  %v534 = vadd.f32 %v533, %v414
  %v535 = vadd.f32 %v534, %v417
  %v536 = vadd.f32 %v535, %v419
  %v537 = vadd.f32 %v536, %v422
  %v538 = vadd.f32 %v537, %v424
  %v539 = vadd.f32 %v538, %v427
  %v540 = vadd.f32 %v539, %v429
  %v541 = vadd.f32 %v540, %v432
  %v542 = vadd.f32 %v541, %v434
  %v543 = vadd.f32 %v542, %v437
  %v544 = vadd.f32 %v543, %v439
  %v545 = vadd.f32 %v544, %v442
  %v546 = vadd.f32 %v545, %v444
  %v547 = vadd.f32 %v546, %v447
  %v548 = vadd.f32 %v547, %v449
  %v549 = vadd.f32 %v548, %v452
  %v550 = vadd.f32 %v549, %v454
  %v551 = vadd.f32 %v550, %v457
  %v552 = vadd.f32 %v551, %v459
  %v553 = vadd.f32 %v552, %v462
  %v554 = vadd.f32 %v553, %v464
  %v555 = vadd.f32 %v554, %v467
  %v556 = vadd.f32 %v555, %v469
  %v557 = vadd.f32 %v556, %v472
  %v558 = vadd.f32 %v557, %v474
  %v559 = vadd.f32 %v558, %v477
  %v560 = vadd.f32 %v559, %v479
  %v561 = vadd.f32 %v560, %v482
  %v562 = vadd.f32 %v561, %v484
  %v563 = vadd.f32 %v562, %v487
  %v564 = vadd.f32 %v563, %v489
  %v565 = vadd.f32 %v564, %v492
  %v566 = vadd.f32 %v565, %v494
  %v567 = vadd.f32 %v566, %v497
  %v568 = vadd.f32 %v567, %v499
  %v569 = vadd.f32 %v568, %v502
  %v570 = vadd.f32 %v569, %v504
  %v571 = vrot.slane %v570, 4
  %v572 = vadd.f32 %v570, %v571
  %v573 = vrot.slane %v572, 2
  %v574 = vadd.f32 %v572, %v573
  %v575 = vrot.slane %v574, 1
  %v576 = vadd.f32 %v574, %v575
  %v577 = vmul.f32 %v576, 0.001953125
  %v578 = vmul.f32 %v347, %v347
  %v579 = vmul.f32 %v349, %v349
  %v580 = vmul.f32 %v352, %v352
  %v581 = vmul.f32 %v354, %v354
  %v582 = vmul.f32 %v357, %v357
  %v583 = vmul.f32 %v359, %v359
  %v584 = vmul.f32 %v362, %v362
  %v585 = vmul.f32 %v364, %v364
  %v586 = vmul.f32 %v367, %v367
  %v587 = vmul.f32 %v369, %v369
  %v588 = vmul.f32 %v372, %v372
  %v589 = vmul.f32 %v374, %v374
  %v590 = vmul.f32 %v377, %v377
  %v591 = vmul.f32 %v379, %v379
  %v592 = vmul.f32 %v382, %v382
  %v593 = vmul.f32 %v384, %v384
  %v594 = vmul.f32 %v387, %v387
  %v595 = vmul.f32 %v389, %v389
  %v596 = vmul.f32 %v392, %v392
  %v597 = vmul.f32 %v394, %v394
  %v598 = vmul.f32 %v397, %v397
  %v599 = vmul.f32 %v399, %v399
  %v600 = vmul.f32 %v402, %v402
  %v601 = vmul.f32 %v404, %v404
  %v602 = vmul.f32 %v407, %v407
  %v603 = vmul.f32 %v409, %v409
  %v604 = vmul.f32 %v412, %v412
  %v605 = vmul.f32 %v414, %v414
  %v606 = vmul.f32 %v417, %v417
  %v607 = vmul.f32 %v419, %v419
  %v608 = vmul.f32 %v422, %v422
  %v609 = vmul.f32 %v424, %v424
  %v610 = vmul.f32 %v427, %v427
  %v611 = vmul.f32 %v429, %v429
  %v612 = vmul.f32 %v432, %v432
  %v613 = vmul.f32 %v434, %v434
  %v614 = vmul.f32 %v437, %v437
  %v615 = vmul.f32 %v439, %v439
  %v616 = vmul.f32 %v442, %v442
  %v617 = vmul.f32 %v444, %v444
  %v618 = vmul.f32 %v447, %v447
  %v619 = vmul.f32 %v449, %v449
  %v620 = vmul.f32 %v452, %v452
  %v621 = vmul.f32 %v454, %v454
  %v622 = vmul.f32 %v457, %v457
  %v623 = vmul.f32 %v459, %v459
  %v624 = vmul.f32 %v462, %v462
  %v625 = vmul.f32 %v464, %v464
  %v626 = vmul.f32 %v467, %v467
  %v627 = vmul.f32 %v469, %v469
  %v628 = vmul.f32 %v472, %v472
  %v629 = vmul.f32 %v474, %v474
  %v630 = vmul.f32 %v477, %v477
  %v631 = vmul.f32 %v479, %v479
  %v632 = vmul.f32 %v482, %v482
  %v633 = vmul.f32 %v484, %v484
  %v634 = vmul.f32 %v487, %v487
  %v635 = vmul.f32 %v489, %v489
  %v636 = vmul.f32 %v492, %v492
  %v637 = vmul.f32 %v494, %v494
  %v638 = vmul.f32 %v497, %v497
  %v639 = vmul.f32 %v499, %v499
  %v640 = vmul.f32 %v502, %v502
  %v641 = vmul.f32 %v504, %v504
  %v642 = vadd.f32 %v578, %v579
  %v643 = vadd.f32 %v642, %v580
  %v644 = vadd.f32 %v643, %v581
  %v645 = vadd.f32 %v644, %v582
  %v646 = vadd.f32 %v645, %v583
  %v647 = vadd.f32 %v646, %v584
  %v648 = vadd.f32 %v647, %v585
  %v649 = vadd.f32 %v648, %v586
  %v650 = vadd.f32 %v649, %v587
  %v651 = vadd.f32 %v650, %v588
  %v652 = vadd.f32 %v651, %v589
  %v653 = vadd.f32 %v652, %v590
  %v654 = vadd.f32 %v653, %v591
  %v655 = vadd.f32 %v654, %v592
  %v656 = vadd.f32 %v655, %v593
  %v657 = vadd.f32 %v656, %v594
  %v658 = vadd.f32 %v657, %v595
  %v659 = vadd.f32 %v658, %v596
  %v660 = vadd.f32 %v659, %v597
  %v661 = vadd.f32 %v660, %v598
  %v662 = vadd.f32 %v661, %v599
  %v663 = vadd.f32 %v662, %v600
  %v664 = vadd.f32 %v663, %v601
  %v665 = vadd.f32 %v664, %v602
  %v666 = vadd.f32 %v665, %v603
  %v667 = vadd.f32 %v666, %v604
  %v668 = vadd.f32 %v667, %v605
  %v669 = vadd.f32 %v668, %v606
  %v670 = vadd.f32 %v669, %v607
  %v671 = vadd.f32 %v670, %v608
  %v672 = vadd.f32 %v671, %v609
  %v673 = vadd.f32 %v672, %v610
  %v674 = vadd.f32 %v673, %v611
  %v675 = vadd.f32 %v674, %v612
  %v676 = vadd.f32 %v675, %v613
  %v677 = vadd.f32 %v676, %v614
  %v678 = vadd.f32 %v677, %v615
  %v679 = vadd.f32 %v678, %v616
  %v680 = vadd.f32 %v679, %v617
  %v681 = vadd.f32 %v680, %v618
  %v682 = vadd.f32 %v681, %v619
  %v683 = vadd.f32 %v682, %v620
  %v684 = vadd.f32 %v683, %v621
  %v685 = vadd.f32 %v684, %v622
  %v686 = vadd.f32 %v685, %v623
  %v687 = vadd.f32 %v686, %v624
  %v688 = vadd.f32 %v687, %v625
  %v689 = vadd.f32 %v688, %v626
  %v690 = vadd.f32 %v689, %v627
  %v691 = vadd.f32 %v690, %v628
  %v692 = vadd.f32 %v691, %v629
  %v693 = vadd.f32 %v692, %v630
  %v694 = vadd.f32 %v693, %v631
  %v695 = vadd.f32 %v694, %v632
  %v696 = vadd.f32 %v695, %v633
  %v697 = vadd.f32 %v696, %v634
  %v698 = vadd.f32 %v697, %v635
  %v699 = vadd.f32 %v698, %v636
  %v700 = vadd.f32 %v699, %v637
  %v701 = vadd.f32 %v700, %v638
  %v702 = vadd.f32 %v701, %v639
  %v703 = vadd.f32 %v702, %v640
  %v704 = vadd.f32 %v703, %v641
  %v705 = vrot.slane %v704, 4
  %v706 = vadd.f32 %v704, %v705
  %v707 = vrot.slane %v706, 2
  %v708 = vadd.f32 %v706, %v707
  %v709 = vrot.slane %v708, 1
  %v710 = vadd.f32 %v708, %v709
  %v711 = vmul.f32 %v710, 0.001953125
  %v712 = vmul.f32 %v577, %v577
  %v713 = vsub.f32 %v711, %v712
  %v714 = vadd.f32 %v713, 1e-05
  %v715 = vrsqrt.pop %v714
  %v716 = vmul.f32 %v715, %v714
  %v717 = vmul.f32 %v716, %v715
  %v718 = vmul.f32 0.5, %v717
  %v719 = vsub.f32 1.5, %v718
  %v720 = vmul.f32 %v715, %v719
  %vm721 = vweird.f32 %v714
  %vm722 = vweird.f32 %v715
  %vm723 = vmor %vm721, %vm722
  %v724 = vsel %vm723, %v715, %v720
  %v725 = vmul.f32 %v506, %v724
  %v726 = vmul.f32 %v577, %v725
  %v727 = vsub.f32 %v507, %v726
  %v729 = vperm.slane %v725, 0
  %v731 = vmul.f32 %v347, %v729
  %v732 = vmul.f32 %v349, %v729
  %v733 = vmul.f32 %v352, %v729
  %v734 = vmul.f32 %v354, %v729
  %v735 = vmul.f32 %v357, %v729
  %v736 = vmul.f32 %v359, %v729
  %v737 = vmul.f32 %v362, %v729
  %v738 = vmul.f32 %v364, %v729
  %v739 = vmul.f32 %v367, %v729
  %v740 = vmul.f32 %v369, %v729
  %v741 = vmul.f32 %v372, %v729
  %v742 = vmul.f32 %v374, %v729
  %v743 = vmul.f32 %v377, %v729
  %v744 = vmul.f32 %v379, %v729
  %v745 = vmul.f32 %v382, %v729
  %v746 = vmul.f32 %v384, %v729
  %v747 = vmul.f32 %v387, %v729
  %v748 = vmul.f32 %v389, %v729
  %v749 = vmul.f32 %v392, %v729
  %v750 = vmul.f32 %v394, %v729
  %v751 = vmul.f32 %v397, %v729
  %v752 = vmul.f32 %v399, %v729
  %v753 = vmul.f32 %v402, %v729
  %v754 = vmul.f32 %v404, %v729
  %v755 = vmul.f32 %v407, %v729
  %v756 = vmul.f32 %v409, %v729
  %v757 = vmul.f32 %v412, %v729
  %v758 = vmul.f32 %v414, %v729
  %v759 = vmul.f32 %v417, %v729
  %v760 = vmul.f32 %v419, %v729
  %v761 = vmul.f32 %v422, %v729
  %v762 = vmul.f32 %v424, %v729
  %v763 = vmul.f32 %v427, %v729
  %v764 = vmul.f32 %v429, %v729
  %v765 = vmul.f32 %v432, %v729
  %v766 = vmul.f32 %v434, %v729
  %v767 = vmul.f32 %v437, %v729
  %v768 = vmul.f32 %v439, %v729
  %v769 = vmul.f32 %v442, %v729
  %v770 = vmul.f32 %v444, %v729
  %v771 = vmul.f32 %v447, %v729
  %v772 = vmul.f32 %v449, %v729
  %v773 = vmul.f32 %v452, %v729
  %v774 = vmul.f32 %v454, %v729
  %v775 = vmul.f32 %v457, %v729
  %v776 = vmul.f32 %v459, %v729
  %v777 = vmul.f32 %v462, %v729
  %v778 = vmul.f32 %v464, %v729
  %v779 = vmul.f32 %v467, %v729
  %v780 = vmul.f32 %v469, %v729
  %v781 = vmul.f32 %v472, %v729
  %v782 = vmul.f32 %v474, %v729
  %v783 = vmul.f32 %v477, %v729
  %v784 = vmul.f32 %v479, %v729
  %v785 = vmul.f32 %v482, %v729
  %v786 = vmul.f32 %v484, %v729
  %v787 = vmul.f32 %v487, %v729
  %v788 = vmul.f32 %v489, %v729
  %v789 = vmul.f32 %v492, %v729
  %v790 = vmul.f32 %v494, %v729
  %v791 = vmul.f32 %v497, %v729
  %v792 = vmul.f32 %v499, %v729
  %v793 = vmul.f32 %v502, %v729
  %v794 = vmul.f32 %v504, %v729
  %v796 = vperm.slane %v727, 0
  %v798 = vadd.f32 %v731, %v796
  %v799 = vadd.f32 %v732, %v796
  %v800 = vadd.f32 %v733, %v796
  %v801 = vadd.f32 %v734, %v796
  %v802 = vadd.f32 %v735, %v796
  %v803 = vadd.f32 %v736, %v796
  %v804 = vadd.f32 %v737, %v796
  %v805 = vadd.f32 %v738, %v796
  %v806 = vadd.f32 %v739, %v796
  %v807 = vadd.f32 %v740, %v796
  %v808 = vadd.f32 %v741, %v796
  %v809 = vadd.f32 %v742, %v796
  %v810 = vadd.f32 %v743, %v796
  %v811 = vadd.f32 %v744, %v796
  %v812 = vadd.f32 %v745, %v796
  %v813 = vadd.f32 %v746, %v796
  %v814 = vadd.f32 %v747, %v796
  %v815 = vadd.f32 %v748, %v796
  %v816 = vadd.f32 %v749, %v796
  %v817 = vadd.f32 %v750, %v796
  %v818 = vadd.f32 %v751, %v796
  %v819 = vadd.f32 %v752, %v796
  %v820 = vadd.f32 %v753, %v796
  %v821 = vadd.f32 %v754, %v796
  %v822 = vadd.f32 %v755, %v796
  %v823 = vadd.f32 %v756, %v796
  %v824 = vadd.f32 %v757, %v796
  %v825 = vadd.f32 %v758, %v796
  %v826 = vadd.f32 %v759, %v796
  %v827 = vadd.f32 %v760, %v796
  %v828 = vadd.f32 %v761, %v796
  %v829 = vadd.f32 %v762, %v796
  %v830 = vadd.f32 %v763, %v796
  %v831 = vadd.f32 %v764, %v796
  %v832 = vadd.f32 %v765, %v796
  %v833 = vadd.f32 %v766, %v796
  %v834 = vadd.f32 %v767, %v796
  %v835 = vadd.f32 %v768, %v796
  %v836 = vadd.f32 %v769, %v796
  %v837 = vadd.f32 %v770, %v796
  %v838 = vadd.f32 %v771, %v796
  %v839 = vadd.f32 %v772, %v796
  %v840 = vadd.f32 %v773, %v796
  %v841 = vadd.f32 %v774, %v796
  %v842 = vadd.f32 %v775, %v796
  %v843 = vadd.f32 %v776, %v796
  %v844 = vadd.f32 %v777, %v796
  %v845 = vadd.f32 %v778, %v796
  %v846 = vadd.f32 %v779, %v796
  %v847 = vadd.f32 %v780, %v796
  %v848 = vadd.f32 %v781, %v796
  %v849 = vadd.f32 %v782, %v796
  %v850 = vadd.f32 %v783, %v796
  %v851 = vadd.f32 %v784, %v796
  %v852 = vadd.f32 %v785, %v796
  %v853 = vadd.f32 %v786, %v796
  %v854 = vadd.f32 %v787, %v796
  %v855 = vadd.f32 %v788, %v796
  %v856 = vadd.f32 %v789, %v796
  %v857 = vadd.f32 %v790, %v796
  %v858 = vadd.f32 %v791, %v796
  %v859 = vadd.f32 %v792, %v796
  %v860 = vadd.f32 %v793, %v796
  %v861 = vadd.f32 %v794, %v796
  %vm862 = vcmp.ge.f32.partialorder %v798, 0.0
  %vm863 = vcmp.ge.f32.partialorder %v799, 0.0
  %vm864 = vcmp.ge.f32.partialorder %v800, 0.0
  %vm865 = vcmp.ge.f32.partialorder %v801, 0.0
  %vm866 = vcmp.ge.f32.partialorder %v802, 0.0
  %vm867 = vcmp.ge.f32.partialorder %v803, 0.0
  %vm868 = vcmp.ge.f32.partialorder %v804, 0.0
  %vm869 = vcmp.ge.f32.partialorder %v805, 0.0
  %vm870 = vcmp.ge.f32.partialorder %v806, 0.0
  %vm871 = vcmp.ge.f32.partialorder %v807, 0.0
  %vm872 = vcmp.ge.f32.partialorder %v808, 0.0
  %vm873 = vcmp.ge.f32.partialorder %v809, 0.0
  %vm874 = vcmp.ge.f32.partialorder %v810, 0.0
  %vm875 = vcmp.ge.f32.partialorder %v811, 0.0
  %vm876 = vcmp.ge.f32.partialorder %v812, 0.0
  %vm877 = vcmp.ge.f32.partialorder %v813, 0.0
  %vm878 = vcmp.ge.f32.partialorder %v814, 0.0
  %vm879 = vcmp.ge.f32.partialorder %v815, 0.0
  %vm880 = vcmp.ge.f32.partialorder %v816, 0.0
  %vm881 = vcmp.ge.f32.partialorder %v817, 0.0
  %vm882 = vcmp.ge.f32.partialorder %v818, 0.0
  %vm883 = vcmp.ge.f32.partialorder %v819, 0.0
  %vm884 = vcmp.ge.f32.partialorder %v820, 0.0
  %vm885 = vcmp.ge.f32.partialorder %v821, 0.0
  %vm886 = vcmp.ge.f32.partialorder %v822, 0.0
  %vm887 = vcmp.ge.f32.partialorder %v823, 0.0
  %vm888 = vcmp.ge.f32.partialorder %v824, 0.0
  %vm889 = vcmp.ge.f32.partialorder %v825, 0.0
  %vm890 = vcmp.ge.f32.partialorder %v826, 0.0
  %vm891 = vcmp.ge.f32.partialorder %v827, 0.0
  %vm892 = vcmp.ge.f32.partialorder %v828, 0.0
  %vm893 = vcmp.ge.f32.partialorder %v829, 0.0
  %vm894 = vcmp.ge.f32.partialorder %v830, 0.0
  %vm895 = vcmp.ge.f32.partialorder %v831, 0.0
  %vm896 = vcmp.ge.f32.partialorder %v832, 0.0
  %vm897 = vcmp.ge.f32.partialorder %v833, 0.0
  %vm898 = vcmp.ge.f32.partialorder %v834, 0.0
  %vm899 = vcmp.ge.f32.partialorder %v835, 0.0
  %vm900 = vcmp.ge.f32.partialorder %v836, 0.0
  %vm901 = vcmp.ge.f32.partialorder %v837, 0.0
  %vm902 = vcmp.ge.f32.partialorder %v838, 0.0
  %vm903 = vcmp.ge.f32.partialorder %v839, 0.0
  %vm904 = vcmp.ge.f32.partialorder %v840, 0.0
  %vm905 = vcmp.ge.f32.partialorder %v841, 0.0
  %vm906 = vcmp.ge.f32.partialorder %v842, 0.0
  %vm907 = vcmp.ge.f32.partialorder %v843, 0.0
  %vm908 = vcmp.ge.f32.partialorder %v844, 0.0
  %vm909 = vcmp.ge.f32.partialorder %v845, 0.0
  %vm910 = vcmp.ge.f32.partialorder %v846, 0.0
  %vm911 = vcmp.ge.f32.partialorder %v847, 0.0
  %vm912 = vcmp.ge.f32.partialorder %v848, 0.0
  %vm913 = vcmp.ge.f32.partialorder %v849, 0.0
  %vm914 = vcmp.ge.f32.partialorder %v850, 0.0
  %vm915 = vcmp.ge.f32.partialorder %v851, 0.0
  %vm916 = vcmp.ge.f32.partialorder %v852, 0.0
  %vm917 = vcmp.ge.f32.partialorder %v853, 0.0
  %vm918 = vcmp.ge.f32.partialorder %v854, 0.0
  %vm919 = vcmp.ge.f32.partialorder %v855, 0.0
  %vm920 = vcmp.ge.f32.partialorder %v856, 0.0
  %vm921 = vcmp.ge.f32.partialorder %v857, 0.0
  %vm922 = vcmp.ge.f32.partialorder %v858, 0.0
  %vm923 = vcmp.ge.f32.partialorder %v859, 0.0
  %vm924 = vcmp.ge.f32.partialorder %v860, 0.0
  %vm925 = vcmp.ge.f32.partialorder %v861, 0.0
  %v926 = vmul.f32 %v798, 0.2
  %v927 = vmul.f32 %v799, 0.2
  %v928 = vmul.f32 %v800, 0.2
  %v929 = vmul.f32 %v801, 0.2
  %v930 = vmul.f32 %v802, 0.2
  %v931 = vmul.f32 %v803, 0.2
  %v932 = vmul.f32 %v804, 0.2
  %v933 = vmul.f32 %v805, 0.2
  %v934 = vmul.f32 %v806, 0.2
  %v935 = vmul.f32 %v807, 0.2
  %v936 = vmul.f32 %v808, 0.2
  %v937 = vmul.f32 %v809, 0.2
  %v938 = vmul.f32 %v810, 0.2
  %v939 = vmul.f32 %v811, 0.2
  %v940 = vmul.f32 %v812, 0.2
  %v941 = vmul.f32 %v813, 0.2
  %v942 = vmul.f32 %v814, 0.2
  %v943 = vmul.f32 %v815, 0.2
  %v944 = vmul.f32 %v816, 0.2
  %v945 = vmul.f32 %v817, 0.2
  %v946 = vmul.f32 %v818, 0.2
  %v947 = vmul.f32 %v819, 0.2
  %v948 = vmul.f32 %v820, 0.2
  %v949 = vmul.f32 %v821, 0.2
  %v950 = vmul.f32 %v822, 0.2
  %v951 = vmul.f32 %v823, 0.2
  %v952 = vmul.f32 %v824, 0.2
  %v953 = vmul.f32 %v825, 0.2
  %v954 = vmul.f32 %v826, 0.2
  %v955 = vmul.f32 %v827, 0.2
  %v956 = vmul.f32 %v828, 0.2
  %v957 = vmul.f32 %v829, 0.2
  %v958 = vmul.f32 %v830, 0.2
  %v959 = vmul.f32 %v831, 0.2
  %v960 = vmul.f32 %v832, 0.2
  %v961 = vmul.f32 %v833, 0.2
  %v962 = vmul.f32 %v834, 0.2
  %v963 = vmul.f32 %v835, 0.2
  %v964 = vmul.f32 %v836, 0.2
  %v965 = vmul.f32 %v837, 0.2
  %v966 = vmul.f32 %v838, 0.2
  %v967 = vmul.f32 %v839, 0.2
  %v968 = vmul.f32 %v840, 0.2
  %v969 = vmul.f32 %v841, 0.2
  %v970 = vmul.f32 %v842, 0.2
  %v971 = vmul.f32 %v843, 0.2
  %v972 = vmul.f32 %v844, 0.2
  %v973 = vmul.f32 %v845, 0.2
  %v974 = vmul.f32 %v846, 0.2
  %v975 = vmul.f32 %v847, 0.2
  %v976 = vmul.f32 %v848, 0.2
  %v977 = vmul.f32 %v849, 0.2
  %v978 = vmul.f32 %v850, 0.2
  %v979 = vmul.f32 %v851, 0.2
  %v980 = vmul.f32 %v852, 0.2
  %v981 = vmul.f32 %v853, 0.2
  %v982 = vmul.f32 %v854, 0.2
  %v983 = vmul.f32 %v855, 0.2
  %v984 = vmul.f32 %v856, 0.2
  %v985 = vmul.f32 %v857, 0.2
  %v986 = vmul.f32 %v858, 0.2
  %v987 = vmul.f32 %v859, 0.2
  %v988 = vmul.f32 %v860, 0.2
  %v989 = vmul.f32 %v861, 0.2
  %v990 = vsel %vm862, %v798, %v926
  %v991 = vsel %vm863, %v799, %v927
  %v992 = vsel %vm864, %v800, %v928
  %v993 = vsel %vm865, %v801, %v929
  %v994 = vsel %vm866, %v802, %v930
  %v995 = vsel %vm867, %v803, %v931
  %v996 = vsel %vm868, %v804, %v932
  %v997 = vsel %vm869, %v805, %v933
  %v998 = vsel %vm870, %v806, %v934
  %v999 = vsel %vm871, %v807, %v935
  %v1000 = vsel %vm872, %v808, %v936
  %v1001 = vsel %vm873, %v809, %v937
  %v1002 = vsel %vm874, %v810, %v938
  %v1003 = vsel %vm875, %v811, %v939
  %v1004 = vsel %vm876, %v812, %v940
  %v1005 = vsel %vm877, %v813, %v941
  %v1006 = vsel %vm878, %v814, %v942
  %v1007 = vsel %vm879, %v815, %v943
  %v1008 = vsel %vm880, %v816, %v944
  %v1009 = vsel %vm881, %v817, %v945
  %v1010 = vsel %vm882, %v818, %v946
  %v1011 = vsel %vm883, %v819, %v947
  %v1012 = vsel %vm884, %v820, %v948
  %v1013 = vsel %vm885, %v821, %v949
  %v1014 = vsel %vm886, %v822, %v950
  %v1015 = vsel %vm887, %v823, %v951
  %v1016 = vsel %vm888, %v824, %v952
  %v1017 = vsel %vm889, %v825, %v953
  %v1018 = vsel %vm890, %v826, %v954
  %v1019 = vsel %vm891, %v827, %v955
  %v1020 = vsel %vm892, %v828, %v956
  %v1021 = vsel %vm893, %v829, %v957
  %v1022 = vsel %vm894, %v830, %v958
  %v1023 = vsel %vm895, %v831, %v959
  %v1024 = vsel %vm896, %v832, %v960
  %v1025 = vsel %vm897, %v833, %v961
  %v1026 = vsel %vm898, %v834, %v962
  %v1027 = vsel %vm899, %v835, %v963
  %v1028 = vsel %vm900, %v836, %v964
  %v1029 = vsel %vm901, %v837, %v965
  %v1030 = vsel %vm902, %v838, %v966
  %v1031 = vsel %vm903, %v839, %v967
  %v1032 = vsel %vm904, %v840, %v968
  %v1033 = vsel %vm905, %v841, %v969
  %v1034 = vsel %vm906, %v842, %v970
  %v1035 = vsel %vm907, %v843, %v971
  %v1036 = vsel %vm908, %v844, %v972
  %v1037 = vsel %vm909, %v845, %v973
  %v1038 = vsel %vm910, %v846, %v974
  %v1039 = vsel %vm911, %v847, %v975
  %v1040 = vsel %vm912, %v848, %v976
  %v1041 = vsel %vm913, %v849, %v977
  %v1042 = vsel %vm914, %v850, %v978
  %v1043 = vsel %vm915, %v851, %v979
  %v1044 = vsel %vm916, %v852, %v980
  %v1045 = vsel %vm917, %v853, %v981
  %v1046 = vsel %vm918, %v854, %v982
  %v1047 = vsel %vm919, %v855, %v983
  %v1048 = vsel %vm920, %v856, %v984
  %v1049 = vsel %vm921, %v857, %v985
  %v1050 = vsel %vm922, %v858, %v986
  %v1051 = vsel %vm923, %v859, %v987
  %v1052 = vsel %vm924, %v860, %v988
  %v1053 = vsel %vm925, %v861, %v989
  %v1054 = vpack.c.bf16 %v990, %v990
  %v1055 = vpack.c.bf16 %v991, %v991
  %v1056 = vpack.c.bf16 %v992, %v992
  %v1057 = vpack.c.bf16 %v993, %v993
  %v1058 = vpack.c.bf16 %v994, %v994
  %v1059 = vpack.c.bf16 %v995, %v995
  %v1060 = vpack.c.bf16 %v996, %v996
  %v1061 = vpack.c.bf16 %v997, %v997
  %v1062 = vpack.c.bf16 %v998, %v998
  %v1063 = vpack.c.bf16 %v999, %v999
  %v1064 = vpack.c.bf16 %v1000, %v1000
  %v1065 = vpack.c.bf16 %v1001, %v1001
  %v1066 = vpack.c.bf16 %v1002, %v1002
  %v1067 = vpack.c.bf16 %v1003, %v1003
  %v1068 = vpack.c.bf16 %v1004, %v1004
  %v1069 = vpack.c.bf16 %v1005, %v1005
  %v1070 = vpack.c.bf16 %v1006, %v1006
  %v1071 = vpack.c.bf16 %v1007, %v1007
  %v1072 = vpack.c.bf16 %v1008, %v1008
  %v1073 = vpack.c.bf16 %v1009, %v1009
  %v1074 = vpack.c.bf16 %v1010, %v1010
  %v1075 = vpack.c.bf16 %v1011, %v1011
  %v1076 = vpack.c.bf16 %v1012, %v1012
  %v1077 = vpack.c.bf16 %v1013, %v1013
  %v1078 = vpack.c.bf16 %v1014, %v1014
  %v1079 = vpack.c.bf16 %v1015, %v1015
  %v1080 = vpack.c.bf16 %v1016, %v1016
  %v1081 = vpack.c.bf16 %v1017, %v1017
  %v1082 = vpack.c.bf16 %v1018, %v1018
  %v1083 = vpack.c.bf16 %v1019, %v1019
  %v1084 = vpack.c.bf16 %v1020, %v1020
  %v1085 = vpack.c.bf16 %v1021, %v1021
  %v1086 = vpack.c.bf16 %v1022, %v1022
  %v1087 = vpack.c.bf16 %v1023, %v1023
  %v1088 = vpack.c.bf16 %v1024, %v1024
  %v1089 = vpack.c.bf16 %v1025, %v1025
  %v1090 = vpack.c.bf16 %v1026, %v1026
  %v1091 = vpack.c.bf16 %v1027, %v1027
  %v1092 = vpack.c.bf16 %v1028, %v1028
  %v1093 = vpack.c.bf16 %v1029, %v1029
  %v1094 = vpack.c.bf16 %v1030, %v1030
  %v1095 = vpack.c.bf16 %v1031, %v1031
  %v1096 = vpack.c.bf16 %v1032, %v1032
  %v1097 = vpack.c.bf16 %v1033, %v1033
  %v1098 = vpack.c.bf16 %v1034, %v1034
  %v1099 = vpack.c.bf16 %v1035, %v1035
  %v1100 = vpack.c.bf16 %v1036, %v1036
  %v1101 = vpack.c.bf16 %v1037, %v1037
  %v1102 = vpack.c.bf16 %v1038, %v1038
  %v1103 = vpack.c.bf16 %v1039, %v1039
  %v1104 = vpack.c.bf16 %v1040, %v1040
  %v1105 = vpack.c.bf16 %v1041, %v1041
  %v1106 = vpack.c.bf16 %v1042, %v1042
  %v1107 = vpack.c.bf16 %v1043, %v1043
  %v1108 = vpack.c.bf16 %v1044, %v1044
  %v1109 = vpack.c.bf16 %v1045, %v1045
  %v1110 = vpack.c.bf16 %v1046, %v1046
  %v1111 = vpack.c.bf16 %v1047, %v1047
  %v1112 = vpack.c.bf16 %v1048, %v1048
  %v1113 = vpack.c.bf16 %v1049, %v1049
  %v1114 = vpack.c.bf16 %v1050, %v1050
  %v1115 = vpack.c.bf16 %v1051, %v1051
  %v1116 = vpack.c.bf16 %v1052, %v1052
  %v1117 = vpack.c.bf16 %v1053, %v1053
  %1118 = vst [vmem:[%s4] sm:$0xf] %v1054
  %1119 = vst [vmem:[%s4 + $0x4] sm:$0xf] %v1055
  %1120 = vst [vmem:[%s4 + $0x8] sm:$0xf] %v1056
  %1121 = vst [vmem:[%s4 + $0xc] sm:$0xf] %v1057
  %1122 = vst [vmem:[%s4 + $0x10] sm:$0xf] %v1058
  %1123 = vst [vmem:[%s4 + $0x14] sm:$0xf] %v1059
  %1124 = vst [vmem:[%s4 + $0x18] sm:$0xf] %v1060
  %1125 = vst [vmem:[%s4 + $0x1c] sm:$0xf] %v1061
  %1126 = vst [vmem:[%s4 + $0x20] sm:$0xf] %v1062
  %1127 = vst [vmem:[%s4 + $0x24] sm:$0xf] %v1063
  %1128 = vst [vmem:[%s4 + $0x28] sm:$0xf] %v1064
  %1129 = vst [vmem:[%s4 + $0x2c] sm:$0xf] %v1065
  %1130 = vst [vmem:[%s4 + $0x30] sm:$0xf] %v1066
  %1131 = vst [vmem:[%s4 + $0x34] sm:$0xf] %v1067
  %1132 = vst [vmem:[%s4 + $0x38] sm:$0xf] %v1068
  %1133 = vst [vmem:[%s4 + $0x3c] sm:$0xf] %v1069
  %1134 = vst [vmem:[%s4 + $0x40] sm:$0xf] %v1070
  %1135 = vst [vmem:[%s4 + $0x44] sm:$0xf] %v1071
  %1136 = vst [vmem:[%s4 + $0x48] sm:$0xf] %v1072
  %1137 = vst [vmem:[%s4 + $0x4c] sm:$0xf] %v1073
  %1138 = vst [vmem:[%s4 + $0x50] sm:$0xf] %v1074
  %1139 = vst [vmem:[%s4 + $0x54] sm:$0xf] %v1075
  %1140 = vst [vmem:[%s4 + $0x58] sm:$0xf] %v1076
  %1141 = vst [vmem:[%s4 + $0x5c] sm:$0xf] %v1077
  %1142 = vst [vmem:[%s4 + $0x60] sm:$0xf] %v1078
  %1143 = vst [vmem:[%s4 + $0x64] sm:$0xf] %v1079
  %1144 = vst [vmem:[%s4 + $0x68] sm:$0xf] %v1080
  %1145 = vst [vmem:[%s4 + $0x6c] sm:$0xf] %v1081
  %1146 = vst [vmem:[%s4 + $0x70] sm:$0xf] %v1082
  %1147 = vst [vmem:[%s4 + $0x74] sm:$0xf] %v1083
  %1148 = vst [vmem:[%s4 + $0x78] sm:$0xf] %v1084
  %1149 = vst [vmem:[%s4 + $0x7c] sm:$0xf] %v1085
  %1150 = vst [vmem:[%s4 + $0x80] sm:$0xf] %v1086
  %1151 = vst [vmem:[%s4 + $0x84] sm:$0xf] %v1087
  %1152 = vst [vmem:[%s4 + $0x88] sm:$0xf] %v1088
  %1153 = vst [vmem:[%s4 + $0x8c] sm:$0xf] %v1089
  %1154 = vst [vmem:[%s4 + $0x90] sm:$0xf] %v1090
  %1155 = vst [vmem:[%s4 + $0x94] sm:$0xf] %v1091
  %1156 = vst [vmem:[%s4 + $0x98] sm:$0xf] %v1092
  %1157 = vst [vmem:[%s4 + $0x9c] sm:$0xf] %v1093
  %1158 = vst [vmem:[%s4 + $0xa0] sm:$0xf] %v1094
  %1159 = vst [vmem:[%s4 + $0xa4] sm:$0xf] %v1095
  %1160 = vst [vmem:[%s4 + $0xa8] sm:$0xf] %v1096
  %1161 = vst [vmem:[%s4 + $0xac] sm:$0xf] %v1097
  %1162 = vst [vmem:[%s4 + $0xb0] sm:$0xf] %v1098
  %1163 = vst [vmem:[%s4 + $0xb4] sm:$0xf] %v1099
  %1164 = vst [vmem:[%s4 + $0xb8] sm:$0xf] %v1100
  %1165 = vst [vmem:[%s4 + $0xbc] sm:$0xf] %v1101
  %1166 = vst [vmem:[%s4 + $0xc0] sm:$0xf] %v1102
  %1167 = vst [vmem:[%s4 + $0xc4] sm:$0xf] %v1103
  %1168 = vst [vmem:[%s4 + $0xc8] sm:$0xf] %v1104
  %1169 = vst [vmem:[%s4 + $0xcc] sm:$0xf] %v1105
  %1170 = vst [vmem:[%s4 + $0xd0] sm:$0xf] %v1106
  %1171 = vst [vmem:[%s4 + $0xd4] sm:$0xf] %v1107
  %1172 = vst [vmem:[%s4 + $0xd8] sm:$0xf] %v1108
  %1173 = vst [vmem:[%s4 + $0xdc] sm:$0xf] %v1109
  %1174 = vst [vmem:[%s4 + $0xe0] sm:$0xf] %v1110
  %1175 = vst [vmem:[%s4 + $0xe4] sm:$0xf] %v1111
  %1176 = vst [vmem:[%s4 + $0xe8] sm:$0xf] %v1112
  %1177 = vst [vmem:[%s4 + $0xec] sm:$0xf] %v1113
  %1178 = vst [vmem:[%s4 + $0xf0] sm:$0xf] %v1114
  %1179 = vst [vmem:[%s4 + $0xf4] sm:$0xf] %v1115
  %1180 = vst [vmem:[%s4 + $0xf8] sm:$0xf] %v1116
  %1181 = vst [vmem:[%s4 + $0xfc] sm:$0xf] %v1117
  // Predicated region
  $region18: #{_lambda_.5} parent=0 // pred_check
    _
  $region19: #{_lambda_.5} parent=0 // pred_check_branch
    %1183 = sbr.rel (0) target = $region21
  $region20: #{_lambda_.5} parent=0 // pred_region
    _
  $region21: #{_lambda_.5} parent=0 // pred_fallthru
    _
  // Predicated region
  $region22: #{_lambda_.5} parent=0 // pred_check
    _
  $region23: #{_lambda_.5} parent=0 // pred_check_branch
    %1185 = sbr.rel (0) target = $region25
  $region24: #{_lambda_.5} parent=0 // pred_region
    _
  $region25: #{_lambda_.5} parent=0 // pred_fallthru
    _

// kernel: _lambda_.6
$region0: #{_lambda_.6}
  #allocation0 [shape = 'u32[]', space=smem, size = 0x4, offset = 0x4, fixed_abs, tag = 'smem constant byte address 0x4 - core index']
  #allocation1 [shape = 'u32[72,128]{1,0:T(1,128)}', space=vmem, size = 0x9000, scoped, tag = 'internal scratch']
  %s0 = inlined_call_operand.vmem [shape: bf16[128,256], index: 0, kind: input, shape index: {}]
  %s1 = inlined_call_operand.vmem [shape: bf16[256,128], index: 1, kind: input, shape index: {}]
  %s2 = inlined_call_operand.vmem [shape: f32[1,128], index: 2, kind: input, shape index: {}]
  %s3 = inlined_call_operand.vmem [shape: f32[1,128], index: 3, kind: input, shape index: {}]
  %s4 = inlined_call_operand.vmem [shape: bf16[128,128], index: 4, kind: output, shape index: {}]
  %s5 = sld [smem:[#allocation0]]
  $region26: #{_lambda_.6} parent=0
    _
  %s7 = ssub.s32 1, %s5
  %s8 = scalar_select 0, %s7, %s5
  // Predicated region
  $region2: #{_lambda_.6} parent=0 // pred_check
    _
  $region3: #{_lambda_.6} parent=0 // pred_check_branch
    %10 = sbr.rel (0) target = $region5
  $region4: #{_lambda_.6} parent=0 // pred_region
    _
  $region5: #{_lambda_.6} parent=0 // pred_fallthru
    _
  // Predicated region
  $region6: #{_lambda_.6} parent=0 // pred_check
    _
  $region7: #{_lambda_.6} parent=0 // pred_check_branch
    %12 = sbr.rel (0) target = $region9
  $region8: #{_lambda_.6} parent=0 // pred_region
    _
  $region9: #{_lambda_.6} parent=0 // pred_fallthru
    _
  // Predicated region
  $region10: #{_lambda_.6} parent=0 // pred_check
    _
  $region11: #{_lambda_.6} parent=0 // pred_check_branch
    %14 = sbr.rel (0) target = $region13
  $region12: #{_lambda_.6} parent=0 // pred_region
    _
  $region13: #{_lambda_.6} parent=0 // pred_fallthru
    _
  // Predicated region
  $region14: #{_lambda_.6} parent=0 // pred_check
    _
  $region15: #{_lambda_.6} parent=0 // pred_check_branch
    %16 = sbr.rel (0) target = $region17
  $region16: #{_lambda_.6} parent=0 // pred_region
    _
  $region17: #{_lambda_.6} parent=0 // pred_fallthru
    _
  %v17 = vld [vmem:[%s0] sm:$0xff]
  %v18 = vld [vmem:[%s0 + $0x8] sm:$0xff]
  %v19 = vld [vmem:[%s0 + $0x10] sm:$0xff]
  %v20 = vld [vmem:[%s0 + $0x18] sm:$0xff]
  %v21 = vld [vmem:[%s0 + $0x20] sm:$0xff]
  %v22 = vld [vmem:[%s0 + $0x28] sm:$0xff]
  %v23 = vld [vmem:[%s0 + $0x30] sm:$0xff]
  %v24 = vld [vmem:[%s0 + $0x38] sm:$0xff]
  %v25 = vld [vmem:[%s0 + $0x40] sm:$0xff]
  %v26 = vld [vmem:[%s0 + $0x48] sm:$0xff]
  %v27 = vld [vmem:[%s0 + $0x50] sm:$0xff]
  %v28 = vld [vmem:[%s0 + $0x58] sm:$0xff]
  %v29 = vld [vmem:[%s0 + $0x60] sm:$0xff]
  %v30 = vld [vmem:[%s0 + $0x68] sm:$0xff]
  %v31 = vld [vmem:[%s0 + $0x70] sm:$0xff]
  %v32 = vld [vmem:[%s0 + $0x78] sm:$0xff]
  %v33 = vld [vmem:[%s1] sm:$0xf]
  %v34 = vld [vmem:[%s1 + $0x4] sm:$0xf]
  %v35 = vld [vmem:[%s1 + $0x8] sm:$0xf]
  %v36 = vld [vmem:[%s1 + $0xc] sm:$0xf]
  %v37 = vld [vmem:[%s1 + $0x10] sm:$0xf]
  %v38 = vld [vmem:[%s1 + $0x14] sm:$0xf]
  %v39 = vld [vmem:[%s1 + $0x18] sm:$0xf]
  %v40 = vld [vmem:[%s1 + $0x1c] sm:$0xf]
  %v41 = vld [vmem:[%s1 + $0x20] sm:$0xf]
  %v42 = vld [vmem:[%s1 + $0x24] sm:$0xf]
  %v43 = vld [vmem:[%s1 + $0x28] sm:$0xf]
  %v44 = vld [vmem:[%s1 + $0x2c] sm:$0xf]
  %v45 = vld [vmem:[%s1 + $0x30] sm:$0xf]
  %v46 = vld [vmem:[%s1 + $0x34] sm:$0xf]
  %v47 = vld [vmem:[%s1 + $0x38] sm:$0xf]
  %v48 = vld [vmem:[%s1 + $0x3c] sm:$0xf]
  %v49 = vld [vmem:[%s1 + $0x40] sm:$0xf]
  %v50 = vld [vmem:[%s1 + $0x44] sm:$0xf]
  %v51 = vld [vmem:[%s1 + $0x48] sm:$0xf]
  %v52 = vld [vmem:[%s1 + $0x4c] sm:$0xf]
  %v53 = vld [vmem:[%s1 + $0x50] sm:$0xf]
  %v54 = vld [vmem:[%s1 + $0x54] sm:$0xf]
  %v55 = vld [vmem:[%s1 + $0x58] sm:$0xf]
  %v56 = vld [vmem:[%s1 + $0x5c] sm:$0xf]
  %v57 = vld [vmem:[%s1 + $0x60] sm:$0xf]
  %v58 = vld [vmem:[%s1 + $0x64] sm:$0xf]
  %v59 = vld [vmem:[%s1 + $0x68] sm:$0xf]
  %v60 = vld [vmem:[%s1 + $0x6c] sm:$0xf]
  %v61 = vld [vmem:[%s1 + $0x70] sm:$0xf]
  %v62 = vld [vmem:[%s1 + $0x74] sm:$0xf]
  %v63 = vld [vmem:[%s1 + $0x78] sm:$0xf]
  %v64 = vld [vmem:[%s1 + $0x7c] sm:$0xf]
  %v81 = vunpack.c.l.b16 %v17
  %v82 = vunpack.c.h.b16 %v17
  %v83 = vunpack.c.l.b16 %v18
  %v84 = vunpack.c.h.b16 %v18
  %v85 = vunpack.c.l.b16 %v19
  %v86 = vunpack.c.h.b16 %v19
  %v87 = vunpack.c.l.b16 %v20
  %v88 = vunpack.c.h.b16 %v20
  %v89 = vunpack.c.l.b16 %v21
  %v90 = vunpack.c.h.b16 %v21
  %v91 = vunpack.c.l.b16 %v22
  %v92 = vunpack.c.h.b16 %v22
  %v93 = vunpack.c.l.b16 %v23
  %v94 = vunpack.c.h.b16 %v23
  %v95 = vunpack.c.l.b16 %v24
  %v96 = vunpack.c.h.b16 %v24
  %v97 = vunpack.c.l.b16 %v25
  %v98 = vunpack.c.h.b16 %v25
  %v99 = vunpack.c.l.b16 %v26
  %v100 = vunpack.c.h.b16 %v26
  %v101 = vunpack.c.l.b16 %v27
  %v102 = vunpack.c.h.b16 %v27
  %v103 = vunpack.c.l.b16 %v28
  %v104 = vunpack.c.h.b16 %v28
  %v105 = vunpack.c.l.b16 %v29
  %v106 = vunpack.c.h.b16 %v29
  %v107 = vunpack.c.l.b16 %v30
  %v108 = vunpack.c.h.b16 %v30
  %v109 = vunpack.c.l.b16 %v31
  %v110 = vunpack.c.h.b16 %v31
  %v111 = vunpack.c.l.b16 %v32
  %v112 = vunpack.c.h.b16 %v32
  %v113 = vpack.c.b16 %v83, %v81
  %v114 = vpack.c.b16 %v84, %v82
  %v115 = vpack.c.b16 %v87, %v85
  %v116 = vpack.c.b16 %v88, %v86
  %v117 = vpack.c.b16 %v91, %v89
  %v118 = vpack.c.b16 %v92, %v90
  %v119 = vpack.c.b16 %v95, %v93
  %v120 = vpack.c.b16 %v96, %v94
  %v121 = vpack.c.b16 %v99, %v97
  %v122 = vpack.c.b16 %v100, %v98
  %v123 = vpack.c.b16 %v103, %v101
  %v124 = vpack.c.b16 %v104, %v102
  %v125 = vpack.c.b16 %v107, %v105
  %v126 = vpack.c.b16 %v108, %v106
  %v127 = vpack.c.b16 %v111, %v109
  %v128 = vpack.c.b16 %v112, %v110
  %v177 = vunpack.c.l.b16 %v33
  %v178 = vunpack.c.l.b16 %v34
  %v179 = vunpack.c.l.b16 %v35
  %v180 = vunpack.c.l.b16 %v36
  %v181 = vunpack.c.l.b16 %v37
  %v182 = vunpack.c.l.b16 %v38
  %v183 = vunpack.c.l.b16 %v39
  %v184 = vunpack.c.l.b16 %v40
  %v185 = vunpack.c.l.b16 %v41
  %v186 = vunpack.c.l.b16 %v42
  %v187 = vunpack.c.l.b16 %v43
  %v188 = vunpack.c.l.b16 %v44
  %v189 = vunpack.c.l.b16 %v45
  %v190 = vunpack.c.l.b16 %v46
  %v191 = vunpack.c.l.b16 %v47
  %v192 = vunpack.c.l.b16 %v48
  %v193 = vunpack.c.l.b16 %v49
  %v194 = vunpack.c.l.b16 %v50
  %v195 = vunpack.c.l.b16 %v51
  %v196 = vunpack.c.l.b16 %v52
  %v197 = vunpack.c.l.b16 %v53
  %v198 = vunpack.c.l.b16 %v54
  %v199 = vunpack.c.l.b16 %v55
  %v200 = vunpack.c.l.b16 %v56
  %v201 = vunpack.c.l.b16 %v57
  %v202 = vunpack.c.l.b16 %v58
  %v203 = vunpack.c.l.b16 %v59
  %v204 = vunpack.c.l.b16 %v60
  %v205 = vunpack.c.l.b16 %v61
  %v206 = vunpack.c.l.b16 %v62
  %v207 = vunpack.c.l.b16 %v63
  %v208 = vunpack.c.l.b16 %v64
  %v209 = vpack.c.b16 %v178, %v177
  %v210 = vpack.c.b16 %v180, %v179
  %v211 = vpack.c.b16 %v182, %v181
  %v212 = vpack.c.b16 %v184, %v183
  %v213 = vpack.c.b16 %v186, %v185
  %v214 = vpack.c.b16 %v188, %v187
  %v215 = vpack.c.b16 %v190, %v189
  %v216 = vpack.c.b16 %v192, %v191
  %v217 = vpack.c.b16 %v194, %v193
  %v218 = vpack.c.b16 %v196, %v195
  %v219 = vpack.c.b16 %v198, %v197
  %v220 = vpack.c.b16 %v200, %v199
  %v221 = vpack.c.b16 %v202, %v201
  %v222 = vpack.c.b16 %v204, %v203
  %v223 = vpack.c.b16 %v206, %v205
  %v224 = vpack.c.b16 %v208, %v207
  %241 = vmatpush.bf16.msra.mxu0 %v216
  %242 = vmatpush.bf16.msra.mxu0 %v215
  %243 = vmatpush.bf16.msra.mxu0 %v214
  %244 = vmatpush.bf16.msra.mxu0 %v213
  %245 = vmatpush.bf16.msra.mxu0 %v212
  %246 = vmatpush.bf16.msra.mxu0 %v211
  %247 = vmatpush.bf16.msra.mxu0 %v210
  %248 = vmatpush.bf16.msra.mxu0 %v209
  %249 = vmatmul.bf16.gmra.mxu0 %v113
  %v250 = vpop.f32.mrf.mxu0
  %v251 = vadd.f32 0.0, %v250
  %v252 = vpop.f32.mrf.mxu0
  %v253 = vadd.f32 0.0, %v252
  %254 = vmatmul.bf16.gmra.mxu0 %v115
  %v255 = vpop.f32.mrf.mxu0
  %v256 = vadd.f32 0.0, %v255
  %v257 = vpop.f32.mrf.mxu0
  %v258 = vadd.f32 0.0, %v257
  %259 = vmatmul.bf16.gmra.mxu0 %v117
  %v260 = vpop.f32.mrf.mxu0
  %v261 = vadd.f32 0.0, %v260
  %v262 = vpop.f32.mrf.mxu0
  %v263 = vadd.f32 0.0, %v262
  %264 = vmatmul.bf16.gmra.mxu0 %v119
  %v265 = vpop.f32.mrf.mxu0
  %v266 = vadd.f32 0.0, %v265
  %v267 = vpop.f32.mrf.mxu0
  %v268 = vadd.f32 0.0, %v267
  %269 = vmatmul.bf16.gmra.mxu0 %v121
  %v270 = vpop.f32.mrf.mxu0
  %v271 = vadd.f32 0.0, %v270
  %v272 = vpop.f32.mrf.mxu0
  %v273 = vadd.f32 0.0, %v272
  %274 = vmatmul.bf16.gmra.mxu0 %v123
  %v275 = vpop.f32.mrf.mxu0
  %v276 = vadd.f32 0.0, %v275
  %v277 = vpop.f32.mrf.mxu0
  %v278 = vadd.f32 0.0, %v277
  %279 = vmatmul.bf16.gmra.mxu0 %v125
  %v280 = vpop.f32.mrf.mxu0
  %v281 = vadd.f32 0.0, %v280
  %v282 = vpop.f32.mrf.mxu0
  %v283 = vadd.f32 0.0, %v282
  %284 = vmatmul.bf16.gmra.mxu0 %v127
  %v285 = vpop.f32.mrf.mxu0
  %v286 = vadd.f32 0.0, %v285
  %v287 = vpop.f32.mrf.mxu0
  %v288 = vadd.f32 0.0, %v287
  %289 = vdwg.mxu0
  %290 = vmatpush.bf16.msra.mxu0 %v224
  %291 = vmatpush.bf16.msra.mxu0 %v223
  %292 = vmatpush.bf16.msra.mxu0 %v222
  %293 = vmatpush.bf16.msra.mxu0 %v221
  %294 = vmatpush.bf16.msra.mxu0 %v220
  %295 = vmatpush.bf16.msra.mxu0 %v219
  %296 = vmatpush.bf16.msra.mxu0 %v218
  %297 = vmatpush.bf16.msra.mxu0 %v217
  %298 = vmatmul.bf16.gmra.mxu0 %v114
  %v299 = vpop.f32.mrf.mxu0
  %v300 = vadd.f32 %v251, %v299
  %v301 = vpop.f32.mrf.mxu0
  %v302 = vadd.f32 %v253, %v301
  %303 = vmatmul.bf16.gmra.mxu0 %v116
  %v304 = vpop.f32.mrf.mxu0
  %v305 = vadd.f32 %v256, %v304
  %v306 = vpop.f32.mrf.mxu0
  %v307 = vadd.f32 %v258, %v306
  %308 = vmatmul.bf16.gmra.mxu0 %v118
  %v309 = vpop.f32.mrf.mxu0
  %v310 = vadd.f32 %v261, %v309
  %v311 = vpop.f32.mrf.mxu0
  %v312 = vadd.f32 %v263, %v311
  %313 = vmatmul.bf16.gmra.mxu0 %v120
  %v314 = vpop.f32.mrf.mxu0
  %v315 = vadd.f32 %v266, %v314
  %v316 = vpop.f32.mrf.mxu0
  %v317 = vadd.f32 %v268, %v316
  %318 = vmatmul.bf16.gmra.mxu0 %v122
  %v319 = vpop.f32.mrf.mxu0
  %v320 = vadd.f32 %v271, %v319
  %v321 = vpop.f32.mrf.mxu0
  %v322 = vadd.f32 %v273, %v321
  %323 = vmatmul.bf16.gmra.mxu0 %v124
  %v324 = vpop.f32.mrf.mxu0
  %v325 = vadd.f32 %v276, %v324
  %v326 = vpop.f32.mrf.mxu0
  %v327 = vadd.f32 %v278, %v326
  %328 = vmatmul.bf16.gmra.mxu0 %v126
  %v329 = vpop.f32.mrf.mxu0
  %v330 = vadd.f32 %v281, %v329
  %v331 = vpop.f32.mrf.mxu0
  %v332 = vadd.f32 %v283, %v331
  %333 = vmatmul.bf16.gmra.mxu0 %v128
  %v334 = vpop.f32.mrf.mxu0
  %v335 = vadd.f32 %v286, %v334
  %v336 = vpop.f32.mrf.mxu0
  %v337 = vadd.f32 %v288, %v336
  %338 = vdwg.mxu0
  %v339 = vld [vmem:[%s2] sm:$0x1]
  %v340 = vld [vmem:[%s3] sm:$0x1]
  %v341 = vadd.f32 %v300, %v302
  %v342 = vadd.f32 %v341, %v305
  %v343 = vadd.f32 %v342, %v307
  %v344 = vadd.f32 %v343, %v310
  %v345 = vadd.f32 %v344, %v312
  %v346 = vadd.f32 %v345, %v315
  %v347 = vadd.f32 %v346, %v317
  %v348 = vadd.f32 %v347, %v320
  %v349 = vadd.f32 %v348, %v322
  %v350 = vadd.f32 %v349, %v325
  %v351 = vadd.f32 %v350, %v327
  %v352 = vadd.f32 %v351, %v330
  %v353 = vadd.f32 %v352, %v332
  %v354 = vadd.f32 %v353, %v335
  %v355 = vadd.f32 %v354, %v337
  %v356 = vrot.slane %v355, 4
  %v357 = vadd.f32 %v355, %v356
  %v358 = vrot.slane %v357, 2
  %v359 = vadd.f32 %v357, %v358
  %v360 = vrot.slane %v359, 1
  %v361 = vadd.f32 %v359, %v360
  %v362 = vmul.f32 %v361, 0.0078125
  %v363 = vmul.f32 %v300, %v300
  %v364 = vmul.f32 %v302, %v302
  %v365 = vmul.f32 %v305, %v305
  %v366 = vmul.f32 %v307, %v307
  %v367 = vmul.f32 %v310, %v310
  %v368 = vmul.f32 %v312, %v312
  %v369 = vmul.f32 %v315, %v315
  %v370 = vmul.f32 %v317, %v317
  %v371 = vmul.f32 %v320, %v320
  %v372 = vmul.f32 %v322, %v322
  %v373 = vmul.f32 %v325, %v325
  %v374 = vmul.f32 %v327, %v327
  %v375 = vmul.f32 %v330, %v330
  %v376 = vmul.f32 %v332, %v332
  %v377 = vmul.f32 %v335, %v335
  %v378 = vmul.f32 %v337, %v337
  %v379 = vadd.f32 %v363, %v364
  %v380 = vadd.f32 %v379, %v365
  %v381 = vadd.f32 %v380, %v366
  %v382 = vadd.f32 %v381, %v367
  %v383 = vadd.f32 %v382, %v368
  %v384 = vadd.f32 %v383, %v369
  %v385 = vadd.f32 %v384, %v370
  %v386 = vadd.f32 %v385, %v371
  %v387 = vadd.f32 %v386, %v372
  %v388 = vadd.f32 %v387, %v373
  %v389 = vadd.f32 %v388, %v374
  %v390 = vadd.f32 %v389, %v375
  %v391 = vadd.f32 %v390, %v376
  %v392 = vadd.f32 %v391, %v377
  %v393 = vadd.f32 %v392, %v378
  %v394 = vrot.slane %v393, 4
  %v395 = vadd.f32 %v393, %v394
  %v396 = vrot.slane %v395, 2
  %v397 = vadd.f32 %v395, %v396
  %v398 = vrot.slane %v397, 1
  %v399 = vadd.f32 %v397, %v398
  %v400 = vmul.f32 %v399, 0.0078125
  %v401 = vmul.f32 %v362, %v362
  %v402 = vsub.f32 %v400, %v401
  %v403 = vadd.f32 %v402, 1e-05
  %v404 = vrsqrt.pop %v403
  %v405 = vmul.f32 %v404, %v403
  %v406 = vmul.f32 %v405, %v404
  %v407 = vmul.f32 0.5, %v406
  %v408 = vsub.f32 1.5, %v407
  %v409 = vmul.f32 %v404, %v408
  %vm410 = vweird.f32 %v403
  %vm411 = vweird.f32 %v404
  %vm412 = vmor %vm410, %vm411
  %v413 = vsel %vm412, %v404, %v409
  %v414 = vmul.f32 %v339, %v413
  %v415 = vmul.f32 %v362, %v414
  %v416 = vsub.f32 %v340, %v415
  %v418 = vperm.slane %v414, 0
  %v420 = vmul.f32 %v300, %v418
  %v421 = vmul.f32 %v302, %v418
  %v422 = vmul.f32 %v305, %v418
  %v423 = vmul.f32 %v307, %v418
  %v424 = vmul.f32 %v310, %v418
  %v425 = vmul.f32 %v312, %v418
  %v426 = vmul.f32 %v315, %v418
  %v427 = vmul.f32 %v317, %v418
  %v428 = vmul.f32 %v320, %v418
  %v429 = vmul.f32 %v322, %v418
  %v430 = vmul.f32 %v325, %v418
  %v431 = vmul.f32 %v327, %v418
  %v432 = vmul.f32 %v330, %v418
  %v433 = vmul.f32 %v332, %v418
  %v434 = vmul.f32 %v335, %v418
  %v435 = vmul.f32 %v337, %v418
  %v437 = vperm.slane %v416, 0
  %v439 = vadd.f32 %v420, %v437
  %v440 = vadd.f32 %v421, %v437
  %v441 = vadd.f32 %v422, %v437
  %v442 = vadd.f32 %v423, %v437
  %v443 = vadd.f32 %v424, %v437
  %v444 = vadd.f32 %v425, %v437
  %v445 = vadd.f32 %v426, %v437
  %v446 = vadd.f32 %v427, %v437
  %v447 = vadd.f32 %v428, %v437
  %v448 = vadd.f32 %v429, %v437
  %v449 = vadd.f32 %v430, %v437
  %v450 = vadd.f32 %v431, %v437
  %v451 = vadd.f32 %v432, %v437
  %v452 = vadd.f32 %v433, %v437
  %v453 = vadd.f32 %v434, %v437
  %v454 = vadd.f32 %v435, %v437
  %vm455 = vcmp.ge.f32.partialorder %v439, 0.0
  %vm456 = vcmp.ge.f32.partialorder %v440, 0.0
  %vm457 = vcmp.ge.f32.partialorder %v441, 0.0
  %vm458 = vcmp.ge.f32.partialorder %v442, 0.0
  %vm459 = vcmp.ge.f32.partialorder %v443, 0.0
  %vm460 = vcmp.ge.f32.partialorder %v444, 0.0
  %vm461 = vcmp.ge.f32.partialorder %v445, 0.0
  %vm462 = vcmp.ge.f32.partialorder %v446, 0.0
  %vm463 = vcmp.ge.f32.partialorder %v447, 0.0
  %vm464 = vcmp.ge.f32.partialorder %v448, 0.0
  %vm465 = vcmp.ge.f32.partialorder %v449, 0.0
  %vm466 = vcmp.ge.f32.partialorder %v450, 0.0
  %vm467 = vcmp.ge.f32.partialorder %v451, 0.0
  %vm468 = vcmp.ge.f32.partialorder %v452, 0.0
  %vm469 = vcmp.ge.f32.partialorder %v453, 0.0
  %vm470 = vcmp.ge.f32.partialorder %v454, 0.0
  %v471 = vmul.f32 %v439, 0.2
  %v472 = vmul.f32 %v440, 0.2
  %v473 = vmul.f32 %v441, 0.2
  %v474 = vmul.f32 %v442, 0.2
  %v475 = vmul.f32 %v443, 0.2
  %v476 = vmul.f32 %v444, 0.2
  %v477 = vmul.f32 %v445, 0.2
  %v478 = vmul.f32 %v446, 0.2
  %v479 = vmul.f32 %v447, 0.2
  %v480 = vmul.f32 %v448, 0.2
  %v481 = vmul.f32 %v449, 0.2
  %v482 = vmul.f32 %v450, 0.2
  %v483 = vmul.f32 %v451, 0.2
  %v484 = vmul.f32 %v452, 0.2
  %v485 = vmul.f32 %v453, 0.2
  %v486 = vmul.f32 %v454, 0.2
  %v487 = vsel %vm455, %v439, %v471
  %v488 = vsel %vm456, %v440, %v472
  %v489 = vsel %vm457, %v441, %v473
  %v490 = vsel %vm458, %v442, %v474
  %v491 = vsel %vm459, %v443, %v475
  %v492 = vsel %vm460, %v444, %v476
  %v493 = vsel %vm461, %v445, %v477
  %v494 = vsel %vm462, %v446, %v478
  %v495 = vsel %vm463, %v447, %v479
  %v496 = vsel %vm464, %v448, %v480
  %v497 = vsel %vm465, %v449, %v481
  %v498 = vsel %vm466, %v450, %v482
  %v499 = vsel %vm467, %v451, %v483
  %v500 = vsel %vm468, %v452, %v484
  %v501 = vsel %vm469, %v453, %v485
  %v502 = vsel %vm470, %v454, %v486
  %v503 = vpack.c.bf16 %v487, %v487
  %v504 = vpack.c.bf16 %v488, %v488
  %v505 = vpack.c.bf16 %v489, %v489
  %v506 = vpack.c.bf16 %v490, %v490
  %v507 = vpack.c.bf16 %v491, %v491
  %v508 = vpack.c.bf16 %v492, %v492
  %v509 = vpack.c.bf16 %v493, %v493
  %v510 = vpack.c.bf16 %v494, %v494
  %v511 = vpack.c.bf16 %v495, %v495
  %v512 = vpack.c.bf16 %v496, %v496
  %v513 = vpack.c.bf16 %v497, %v497
  %v514 = vpack.c.bf16 %v498, %v498
  %v515 = vpack.c.bf16 %v499, %v499
  %v516 = vpack.c.bf16 %v500, %v500
  %v517 = vpack.c.bf16 %v501, %v501
  %v518 = vpack.c.bf16 %v502, %v502
  %519 = vst [vmem:[%s4] sm:$0xf] %v503
  %520 = vst [vmem:[%s4 + $0x4] sm:$0xf] %v504
  %521 = vst [vmem:[%s4 + $0x8] sm:$0xf] %v505
  %522 = vst [vmem:[%s4 + $0xc] sm:$0xf] %v506
  %523 = vst [vmem:[%s4 + $0x10] sm:$0xf] %v507
  %524 = vst [vmem:[%s4 + $0x14] sm:$0xf] %v508
  %525 = vst [vmem:[%s4 + $0x18] sm:$0xf] %v509
  %526 = vst [vmem:[%s4 + $0x1c] sm:$0xf] %v510
  %527 = vst [vmem:[%s4 + $0x20] sm:$0xf] %v511
  %528 = vst [vmem:[%s4 + $0x24] sm:$0xf] %v512
  %529 = vst [vmem:[%s4 + $0x28] sm:$0xf] %v513
  %530 = vst [vmem:[%s4 + $0x2c] sm:$0xf] %v514
  %531 = vst [vmem:[%s4 + $0x30] sm:$0xf] %v515
  %532 = vst [vmem:[%s4 + $0x34] sm:$0xf] %v516
  %533 = vst [vmem:[%s4 + $0x38] sm:$0xf] %v517
  %534 = vst [vmem:[%s4 + $0x3c] sm:$0xf] %v518
  // Predicated region
  $region18: #{_lambda_.6} parent=0 // pred_check
    _
  $region19: #{_lambda_.6} parent=0 // pred_check_branch
    %536 = sbr.rel (0) target = $region21
  $region20: #{_lambda_.6} parent=0 // pred_region
    _
  $region21: #{_lambda_.6} parent=0 // pred_fallthru
    _
  // Predicated region
  $region22: #{_lambda_.6} parent=0 // pred_check
    _
  $region23: #{_lambda_.6} parent=0 // pred_check_branch
    %538 = sbr.rel (0) target = $region25
  $region24: #{_lambda_.6} parent=0 // pred_region
    _
  $region25: #{_lambda_.6} parent=0 // pred_fallthru
    _

// kernel: _lambda_.7
$region0: #{_lambda_.7}
  #allocation0 [shape = 'u32[]', space=smem, size = 0x4, offset = 0x4, fixed_abs, tag = 'smem constant byte address 0x4 - core index']
  #allocation1 [shape = 'u32[72,128]{1,0:T(1,128)}', space=vmem, size = 0x9000, scoped, tag = 'internal scratch']
  %s0 = inlined_call_operand.vmem [shape: bf16[32,512], index: 0, kind: input, shape index: {}]
  %s1 = inlined_call_operand.vmem [shape: bf16[512,128], index: 1, kind: input, shape index: {}]
  %s2 = inlined_call_operand.vmem [shape: f32[1,128], index: 2, kind: input, shape index: {}]
  %s3 = inlined_call_operand.vmem [shape: f32[1,128], index: 3, kind: input, shape index: {}]
  %s4 = inlined_call_operand.vmem [shape: f32[32,128], index: 4, kind: input, shape index: {}]
  %s5 = inlined_call_operand.vmem [shape: f32[2,32], index: 5, kind: input, shape index: {}]
  %s6 = inlined_call_operand.vmem [shape: f32[2,1], index: 6, kind: output, shape index: {}]
  %s7 = sld [smem:[#allocation0]]
  $region34: #{_lambda_.7} parent=0
    _
  %s9 = ssub.s32 1, %s7
  %s10 = scalar_select 0, %s9, %s7
  // Predicated region
  $region2: #{_lambda_.7} parent=0 // pred_check
    _
  $region3: #{_lambda_.7} parent=0 // pred_check_branch
    %12 = sbr.rel (0) target = $region5
  $region4: #{_lambda_.7} parent=0 // pred_region
    _
  $region5: #{_lambda_.7} parent=0 // pred_fallthru
    _
  // Predicated region
  $region6: #{_lambda_.7} parent=0 // pred_check
    _
  $region7: #{_lambda_.7} parent=0 // pred_check_branch
    %14 = sbr.rel (0) target = $region9
  $region8: #{_lambda_.7} parent=0 // pred_region
    _
  $region9: #{_lambda_.7} parent=0 // pred_fallthru
    _
  // Predicated region
  $region10: #{_lambda_.7} parent=0 // pred_check
    _
  $region11: #{_lambda_.7} parent=0 // pred_check_branch
    %16 = sbr.rel (0) target = $region13
  $region12: #{_lambda_.7} parent=0 // pred_region
    _
  $region13: #{_lambda_.7} parent=0 // pred_fallthru
    _
  // Predicated region
  $region14: #{_lambda_.7} parent=0 // pred_check
    _
  $region15: #{_lambda_.7} parent=0 // pred_check_branch
    %18 = sbr.rel (0) target = $region17
  $region16: #{_lambda_.7} parent=0 // pred_region
    _
  $region17: #{_lambda_.7} parent=0 // pred_fallthru
    _
  // Predicated region
  $region18: #{_lambda_.7} parent=0 // pred_check
    _
  $region19: #{_lambda_.7} parent=0 // pred_check_branch
    %20 = sbr.rel (0) target = $region21
  $region20: #{_lambda_.7} parent=0 // pred_region
    _
  $region21: #{_lambda_.7} parent=0 // pred_fallthru
    _
  // Predicated region
  $region22: #{_lambda_.7} parent=0 // pred_check
    _
  $region23: #{_lambda_.7} parent=0 // pred_check_branch
    %22 = sbr.rel (0) target = $region25
  $region24: #{_lambda_.7} parent=0 // pred_region
    _
  $region25: #{_lambda_.7} parent=0 // pred_fallthru
    _
  %v23 = vld [vmem:[%s0] sm:$0xff]
  %v24 = vld [vmem:[%s0 + $0x8] sm:$0xff]
  %v25 = vld [vmem:[%s0 + $0x10] sm:$0xff]
  %v26 = vld [vmem:[%s0 + $0x18] sm:$0xff]
  %v27 = vld [vmem:[%s0 + $0x20] sm:$0xff]
  %v28 = vld [vmem:[%s0 + $0x28] sm:$0xff]
  %v29 = vld [vmem:[%s0 + $0x30] sm:$0xff]
  %v30 = vld [vmem:[%s0 + $0x38] sm:$0xff]
  %v31 = vld [vmem:[%s1] sm:$0xf]
  %v32 = vld [vmem:[%s1 + $0x4] sm:$0xf]
  %v33 = vld [vmem:[%s1 + $0x8] sm:$0xf]
  %v34 = vld [vmem:[%s1 + $0xc] sm:$0xf]
  %v35 = vld [vmem:[%s1 + $0x10] sm:$0xf]
  %v36 = vld [vmem:[%s1 + $0x14] sm:$0xf]
  %v37 = vld [vmem:[%s1 + $0x18] sm:$0xf]
  %v38 = vld [vmem:[%s1 + $0x1c] sm:$0xf]
  %v39 = vld [vmem:[%s1 + $0x20] sm:$0xf]
  %v40 = vld [vmem:[%s1 + $0x24] sm:$0xf]
  %v41 = vld [vmem:[%s1 + $0x28] sm:$0xf]
  %v42 = vld [vmem:[%s1 + $0x2c] sm:$0xf]
  %v43 = vld [vmem:[%s1 + $0x30] sm:$0xf]
  %v44 = vld [vmem:[%s1 + $0x34] sm:$0xf]
  %v45 = vld [vmem:[%s1 + $0x38] sm:$0xf]
  %v46 = vld [vmem:[%s1 + $0x3c] sm:$0xf]
  %v47 = vld [vmem:[%s1 + $0x40] sm:$0xf]
  %v48 = vld [vmem:[%s1 + $0x44] sm:$0xf]
  %v49 = vld [vmem:[%s1 + $0x48] sm:$0xf]
  %v50 = vld [vmem:[%s1 + $0x4c] sm:$0xf]
  %v51 = vld [vmem:[%s1 + $0x50] sm:$0xf]
  %v52 = vld [vmem:[%s1 + $0x54] sm:$0xf]
  %v53 = vld [vmem:[%s1 + $0x58] sm:$0xf]
  %v54 = vld [vmem:[%s1 + $0x5c] sm:$0xf]
  %v55 = vld [vmem:[%s1 + $0x60] sm:$0xf]
  %v56 = vld [vmem:[%s1 + $0x64] sm:$0xf]
  %v57 = vld [vmem:[%s1 + $0x68] sm:$0xf]
  %v58 = vld [vmem:[%s1 + $0x6c] sm:$0xf]
  %v59 = vld [vmem:[%s1 + $0x70] sm:$0xf]
  %v60 = vld [vmem:[%s1 + $0x74] sm:$0xf]
  %v61 = vld [vmem:[%s1 + $0x78] sm:$0xf]
  %v62 = vld [vmem:[%s1 + $0x7c] sm:$0xf]
  %v63 = vld [vmem:[%s1 + $0x80] sm:$0xf]
  %v64 = vld [vmem:[%s1 + $0x84] sm:$0xf]
  %v65 = vld [vmem:[%s1 + $0x88] sm:$0xf]
  %v66 = vld [vmem:[%s1 + $0x8c] sm:$0xf]
  %v67 = vld [vmem:[%s1 + $0x90] sm:$0xf]
  %v68 = vld [vmem:[%s1 + $0x94] sm:$0xf]
  %v69 = vld [vmem:[%s1 + $0x98] sm:$0xf]
  %v70 = vld [vmem:[%s1 + $0x9c] sm:$0xf]
  %v71 = vld [vmem:[%s1 + $0xa0] sm:$0xf]
  %v72 = vld [vmem:[%s1 + $0xa4] sm:$0xf]
  %v73 = vld [vmem:[%s1 + $0xa8] sm:$0xf]
  %v74 = vld [vmem:[%s1 + $0xac] sm:$0xf]
  %v75 = vld [vmem:[%s1 + $0xb0] sm:$0xf]
  %v76 = vld [vmem:[%s1 + $0xb4] sm:$0xf]
  %v77 = vld [vmem:[%s1 + $0xb8] sm:$0xf]
  %v78 = vld [vmem:[%s1 + $0xbc] sm:$0xf]
  %v79 = vld [vmem:[%s1 + $0xc0] sm:$0xf]
  %v80 = vld [vmem:[%s1 + $0xc4] sm:$0xf]
  %v81 = vld [vmem:[%s1 + $0xc8] sm:$0xf]
  %v82 = vld [vmem:[%s1 + $0xcc] sm:$0xf]
  %v83 = vld [vmem:[%s1 + $0xd0] sm:$0xf]
  %v84 = vld [vmem:[%s1 + $0xd4] sm:$0xf]
  %v85 = vld [vmem:[%s1 + $0xd8] sm:$0xf]
  %v86 = vld [vmem:[%s1 + $0xdc] sm:$0xf]
  %v87 = vld [vmem:[%s1 + $0xe0] sm:$0xf]
  %v88 = vld [vmem:[%s1 + $0xe4] sm:$0xf]
  %v89 = vld [vmem:[%s1 + $0xe8] sm:$0xf]
  %v90 = vld [vmem:[%s1 + $0xec] sm:$0xf]
  %v91 = vld [vmem:[%s1 + $0xf0] sm:$0xf]
  %v92 = vld [vmem:[%s1 + $0xf4] sm:$0xf]
  %v93 = vld [vmem:[%s1 + $0xf8] sm:$0xf]
  %v94 = vld [vmem:[%s1 + $0xfc] sm:$0xf]
  %v103 = vunpack.c.l.b16 %v23
  %v104 = vunpack.c.h.b16 %v23
  %v105 = vunpack.c.l.b16 %v24
  %v106 = vunpack.c.h.b16 %v24
  %v107 = vunpack.c.l.b16 %v25
  %v108 = vunpack.c.h.b16 %v25
  %v109 = vunpack.c.l.b16 %v26
  %v110 = vunpack.c.h.b16 %v26
  %v111 = vunpack.c.l.b16 %v27
  %v112 = vunpack.c.h.b16 %v27
  %v113 = vunpack.c.l.b16 %v28
  %v114 = vunpack.c.h.b16 %v28
  %v115 = vunpack.c.l.b16 %v29
  %v116 = vunpack.c.h.b16 %v29
  %v117 = vunpack.c.l.b16 %v30
  %v118 = vunpack.c.h.b16 %v30
  %v119 = vpack.c.b16 %v107, %v103
  %v120 = vpack.c.b16 %v108, %v104
  %v121 = vpack.c.b16 %v109, %v105
  %v122 = vpack.c.b16 %v110, %v106
  %v123 = vpack.c.b16 %v115, %v111
  %v124 = vpack.c.b16 %v116, %v112
  %v125 = vpack.c.b16 %v117, %v113
  %v126 = vpack.c.b16 %v118, %v114
  %v199 = vunpack.c.l.b16 %v31
  %v200 = vunpack.c.l.b16 %v32
  %v201 = vunpack.c.l.b16 %v33
  %v202 = vunpack.c.l.b16 %v34
  %v203 = vunpack.c.l.b16 %v35
  %v204 = vunpack.c.l.b16 %v36
  %v205 = vunpack.c.l.b16 %v37
  %v206 = vunpack.c.l.b16 %v38
  %v207 = vunpack.c.l.b16 %v39
  %v208 = vunpack.c.l.b16 %v40
  %v209 = vunpack.c.l.b16 %v41
  %v210 = vunpack.c.l.b16 %v42
  %v211 = vunpack.c.l.b16 %v43
  %v212 = vunpack.c.l.b16 %v44
  %v213 = vunpack.c.l.b16 %v45
  %v214 = vunpack.c.l.b16 %v46
  %v215 = vunpack.c.l.b16 %v47
  %v216 = vunpack.c.l.b16 %v48
  %v217 = vunpack.c.l.b16 %v49
  %v218 = vunpack.c.l.b16 %v50
  %v219 = vunpack.c.l.b16 %v51
  %v220 = vunpack.c.l.b16 %v52
  %v221 = vunpack.c.l.b16 %v53
  %v222 = vunpack.c.l.b16 %v54
  %v223 = vunpack.c.l.b16 %v55
  %v224 = vunpack.c.l.b16 %v56
  %v225 = vunpack.c.l.b16 %v57
  %v226 = vunpack.c.l.b16 %v58
  %v227 = vunpack.c.l.b16 %v59
  %v228 = vunpack.c.l.b16 %v60
  %v229 = vunpack.c.l.b16 %v61
  %v230 = vunpack.c.l.b16 %v62
  %v231 = vunpack.c.l.b16 %v63
  %v232 = vunpack.c.l.b16 %v64
  %v233 = vunpack.c.l.b16 %v65
  %v234 = vunpack.c.l.b16 %v66
  %v235 = vunpack.c.l.b16 %v67
  %v236 = vunpack.c.l.b16 %v68
  %v237 = vunpack.c.l.b16 %v69
  %v238 = vunpack.c.l.b16 %v70
  %v239 = vunpack.c.l.b16 %v71
  %v240 = vunpack.c.l.b16 %v72
  %v241 = vunpack.c.l.b16 %v73
  %v242 = vunpack.c.l.b16 %v74
  %v243 = vunpack.c.l.b16 %v75
  %v244 = vunpack.c.l.b16 %v76
  %v245 = vunpack.c.l.b16 %v77
  %v246 = vunpack.c.l.b16 %v78
  %v247 = vunpack.c.l.b16 %v79
  %v248 = vunpack.c.l.b16 %v80
  %v249 = vunpack.c.l.b16 %v81
  %v250 = vunpack.c.l.b16 %v82
  %v251 = vunpack.c.l.b16 %v83
  %v252 = vunpack.c.l.b16 %v84
  %v253 = vunpack.c.l.b16 %v85
  %v254 = vunpack.c.l.b16 %v86
  %v255 = vunpack.c.l.b16 %v87
  %v256 = vunpack.c.l.b16 %v88
  %v257 = vunpack.c.l.b16 %v89
  %v258 = vunpack.c.l.b16 %v90
  %v259 = vunpack.c.l.b16 %v91
  %v260 = vunpack.c.l.b16 %v92
  %v261 = vunpack.c.l.b16 %v93
  %v262 = vunpack.c.l.b16 %v94
  %v263 = vpack.c.b16 %v200, %v199
  %v264 = vpack.c.b16 %v202, %v201
  %v265 = vpack.c.b16 %v204, %v203
  %v266 = vpack.c.b16 %v206, %v205
  %v267 = vpack.c.b16 %v208, %v207
  %v268 = vpack.c.b16 %v210, %v209
  %v269 = vpack.c.b16 %v212, %v211
  %v270 = vpack.c.b16 %v214, %v213
  %v271 = vpack.c.b16 %v216, %v215
  %v272 = vpack.c.b16 %v218, %v217
  %v273 = vpack.c.b16 %v220, %v219
  %v274 = vpack.c.b16 %v222, %v221
  %v275 = vpack.c.b16 %v224, %v223
  %v276 = vpack.c.b16 %v226, %v225
  %v277 = vpack.c.b16 %v228, %v227
  %v278 = vpack.c.b16 %v230, %v229
  %v279 = vpack.c.b16 %v232, %v231
  %v280 = vpack.c.b16 %v234, %v233
  %v281 = vpack.c.b16 %v236, %v235
  %v282 = vpack.c.b16 %v238, %v237
  %v283 = vpack.c.b16 %v240, %v239
  %v284 = vpack.c.b16 %v242, %v241
  %v285 = vpack.c.b16 %v244, %v243
  %v286 = vpack.c.b16 %v246, %v245
  %v287 = vpack.c.b16 %v248, %v247
  %v288 = vpack.c.b16 %v250, %v249
  %v289 = vpack.c.b16 %v252, %v251
  %v290 = vpack.c.b16 %v254, %v253
  %v291 = vpack.c.b16 %v256, %v255
  %v292 = vpack.c.b16 %v258, %v257
  %v293 = vpack.c.b16 %v260, %v259
  %v294 = vpack.c.b16 %v262, %v261
  %327 = vmatpush.bf16.msra.mxu0 %v270
  %328 = vmatpush.bf16.msra.mxu0 %v269
  %329 = vmatpush.bf16.msra.mxu0 %v268
  %330 = vmatpush.bf16.msra.mxu0 %v267
  %331 = vmatpush.bf16.msra.mxu0 %v266
  %332 = vmatpush.bf16.msra.mxu0 %v265
  %333 = vmatpush.bf16.msra.mxu0 %v264
  %334 = vmatpush.bf16.msra.mxu0 %v263
  %335 = vmatmul.bf16.gmra.mxu0 %v119
  %v336 = vpop.f32.mrf.mxu0
  %v337 = vadd.f32 0.0, %v336
  %v338 = vpop.f32.mrf.mxu0
  %v339 = vadd.f32 0.0, %v338
  %340 = vmatmul.bf16.gmra.mxu0 %v123
  %v341 = vpop.f32.mrf.mxu0
  %v342 = vadd.f32 0.0, %v341
  %v343 = vpop.f32.mrf.mxu0
  %v344 = vadd.f32 0.0, %v343
  %345 = vdwg.mxu0
  %346 = vmatpush.bf16.msra.mxu0 %v278
  %347 = vmatpush.bf16.msra.mxu0 %v277
  %348 = vmatpush.bf16.msra.mxu0 %v276
  %349 = vmatpush.bf16.msra.mxu0 %v275
  %350 = vmatpush.bf16.msra.mxu0 %v274
  %351 = vmatpush.bf16.msra.mxu0 %v273
  %352 = vmatpush.bf16.msra.mxu0 %v272
  %353 = vmatpush.bf16.msra.mxu0 %v271
  %354 = vmatmul.bf16.gmra.mxu0 %v120
  %v355 = vpop.f32.mrf.mxu0
  %v356 = vadd.f32 %v337, %v355
  %v357 = vpop.f32.mrf.mxu0
  %v358 = vadd.f32 %v339, %v357
  %359 = vmatmul.bf16.gmra.mxu0 %v124
  %v360 = vpop.f32.mrf.mxu0
  %v361 = vadd.f32 %v342, %v360
  %v362 = vpop.f32.mrf.mxu0
  %v363 = vadd.f32 %v344, %v362
  %364 = vdwg.mxu0
  %365 = vmatpush.bf16.msra.mxu0 %v286
  %366 = vmatpush.bf16.msra.mxu0 %v285
  %367 = vmatpush.bf16.msra.mxu0 %v284
  %368 = vmatpush.bf16.msra.mxu0 %v283
  %369 = vmatpush.bf16.msra.mxu0 %v282
  %370 = vmatpush.bf16.msra.mxu0 %v281
  %371 = vmatpush.bf16.msra.mxu0 %v280
  %372 = vmatpush.bf16.msra.mxu0 %v279
  %373 = vmatmul.bf16.gmra.mxu0 %v121
  %v374 = vpop.f32.mrf.mxu0
  %v375 = vadd.f32 %v356, %v374
  %v376 = vpop.f32.mrf.mxu0
  %v377 = vadd.f32 %v358, %v376
  %378 = vmatmul.bf16.gmra.mxu0 %v125
  %v379 = vpop.f32.mrf.mxu0
  %v380 = vadd.f32 %v361, %v379
  %v381 = vpop.f32.mrf.mxu0
  %v382 = vadd.f32 %v363, %v381
  %383 = vdwg.mxu0
  %384 = vmatpush.bf16.msra.mxu0 %v294
  %385 = vmatpush.bf16.msra.mxu0 %v293
  %386 = vmatpush.bf16.msra.mxu0 %v292
  %387 = vmatpush.bf16.msra.mxu0 %v291
  %388 = vmatpush.bf16.msra.mxu0 %v290
  %389 = vmatpush.bf16.msra.mxu0 %v289
  %390 = vmatpush.bf16.msra.mxu0 %v288
  %391 = vmatpush.bf16.msra.mxu0 %v287
  %392 = vmatmul.bf16.gmra.mxu0 %v122
  %v393 = vpop.f32.mrf.mxu0
  %v394 = vadd.f32 %v375, %v393
  %v395 = vpop.f32.mrf.mxu0
  %v396 = vadd.f32 %v377, %v395
  %397 = vmatmul.bf16.gmra.mxu0 %v126
  %v398 = vpop.f32.mrf.mxu0
  %v399 = vadd.f32 %v380, %v398
  %v400 = vpop.f32.mrf.mxu0
  %v401 = vadd.f32 %v382, %v400
  %402 = vdwg.mxu0
  %v403 = vld [vmem:[%s2] sm:$0x1]
  %v404 = vld [vmem:[%s3] sm:$0x1]
  %v405 = vadd.f32 %v394, %v396
  %v406 = vadd.f32 %v405, %v399
  %v407 = vadd.f32 %v406, %v401
  %v408 = vrot.slane %v407, 4
  %v409 = vadd.f32 %v407, %v408
  %v410 = vrot.slane %v409, 2
  %v411 = vadd.f32 %v409, %v410
  %v412 = vrot.slane %v411, 1
  %v413 = vadd.f32 %v411, %v412
  %v414 = vmul.f32 %v413, 0.03125
  %v415 = vmul.f32 %v394, %v394
  %v416 = vmul.f32 %v396, %v396
  %v417 = vmul.f32 %v399, %v399
  %v418 = vmul.f32 %v401, %v401
  %v419 = vadd.f32 %v415, %v416
  %v420 = vadd.f32 %v419, %v417
  %v421 = vadd.f32 %v420, %v418
  %v422 = vrot.slane %v421, 4
  %v423 = vadd.f32 %v421, %v422
  %v424 = vrot.slane %v423, 2
  %v425 = vadd.f32 %v423, %v424
  %v426 = vrot.slane %v425, 1
  %v427 = vadd.f32 %v425, %v426
  %v428 = vmul.f32 %v427, 0.03125
  %v429 = vmul.f32 %v414, %v414
  %v430 = vsub.f32 %v428, %v429
  %v431 = vadd.f32 %v430, 1e-05
  %v432 = vrsqrt.pop %v431
  %v433 = vmul.f32 %v432, %v431
  %v434 = vmul.f32 %v433, %v432
  %v435 = vmul.f32 0.5, %v434
  %v436 = vsub.f32 1.5, %v435
  %v437 = vmul.f32 %v432, %v436
  %vm438 = vweird.f32 %v431
  %vm439 = vweird.f32 %v432
  %vm440 = vmor %vm438, %vm439
  %v441 = vsel %vm440, %v432, %v437
  %v442 = vmul.f32 %v403, %v441
  %v443 = vmul.f32 %v414, %v442
  %v444 = vsub.f32 %v404, %v443
  %v446 = vperm.slane %v442, 0
  %v448 = vmul.f32 %v394, %v446
  %v449 = vmul.f32 %v396, %v446
  %v450 = vmul.f32 %v399, %v446
  %v451 = vmul.f32 %v401, %v446
  %v453 = vperm.slane %v444, 0
  %v455 = vadd.f32 %v448, %v453
  %v456 = vadd.f32 %v449, %v453
  %v457 = vadd.f32 %v450, %v453
  %v458 = vadd.f32 %v451, %v453
  %vm459 = vcmp.ge.f32.partialorder %v455, 0.0
  %vm460 = vcmp.ge.f32.partialorder %v456, 0.0
  %vm461 = vcmp.ge.f32.partialorder %v457, 0.0
  %vm462 = vcmp.ge.f32.partialorder %v458, 0.0
  %v463 = vmul.f32 %v455, 0.2
  %v464 = vmul.f32 %v456, 0.2
  %v465 = vmul.f32 %v457, 0.2
  %v466 = vmul.f32 %v458, 0.2
  %v467 = vsel %vm459, %v455, %v463
  %v468 = vsel %vm460, %v456, %v464
  %v469 = vsel %vm461, %v457, %v465
  %v470 = vsel %vm462, %v458, %v466
  %v471 = vld [vmem:[%s4] sm:$0xff]
  %v472 = vld [vmem:[%s4 + $0x8] sm:$0xff]
  %v473 = vld [vmem:[%s4 + $0x10] sm:$0xff]
  %v474 = vld [vmem:[%s4 + $0x18] sm:$0xff]
  %v475 = vmul.f32 %v467, %v471
  %v476 = vmul.f32 %v468, %v472
  %v477 = vmul.f32 %v469, %v473
  %v478 = vmul.f32 %v470, %v474
  %v479 = vld [vmem:[%s5] sm:$0x3]
  %vm480 = vcmask 261120
  %v482 = vsel %vm480, %v479, 0
  %484 = vmatpush.msra.mxu0 0.0
  %485 = vmatpush.msra.mxu0 0.0
  %486 = vmatpush.msra.mxu0 0.0
  %487 = vmatpush.msra.mxu0 0.0
  %488 = vmatpush.msra.mxu0 0.0
  %489 = vmatpush.msra.mxu0 0.0
  %490 = vmatpush.msra.mxu0 0.0
  %491 = vmatpush.msra.mxu0 0.0
  %492 = vmatpush.msra.mxu0 0.0
  %493 = vmatpush.msra.mxu0 0.0
  %494 = vmatpush.msra.mxu0 0.0
  %495 = vmatpush.msra.mxu0 0.0
  %496 = vmatpush.msra.mxu0 %v478
  %497 = vmatpush.msra.mxu0 %v477
  %498 = vmatpush.msra.mxu0 %v476
  %499 = vmatpush.msra.mxu0 %v475
  %500 = vmatmul.f32.gmra.mxu0 %v482
  %v501 = vpop.f32.mrf.mxu0
  %v502 = vadd.f32 0.0, %v501
  %503 = vdwg.mxu0
  %vm504 = vcmask 1041408
  %v505 = vsel %vm504, %v502, 0.0
  %506 = vadd.xlane.f32.xlu0 %v505
  %v507 = vpop.xlane.xlu0 %506
  %v508 = vsub.f32 0.0, %v507
  %v509 = vmul.f32 %v508, 1.442695
  %v510 = vpow.pop %v509
  %v511 = vadd.f32 %v510, 1.0
  %v512 = vrcp.pop %v511
  %v513 = vmul.f32 %v511, %v512
  %v514 = vsub.f32 1.0, %v513
  %v515 = vmul.f32 %v512, %v514
  %v516 = vadd.f32 %v512, %v515
  %vm517 = vweird.f32 %v511
  %vm518 = vweird.f32 %v512
  %vm519 = vmor %vm517, %vm518
  %v520 = vsel %vm519, %v512, %v516
  %v521 = vand.u32 2147483647, %v511
  %vm522 = vcmp.eq.f32.partialorder %v521, 8.507059e+37
  %v523 = vand.u32 %v511, 2147483648
  %v524 = vor.u32 1.1754944e-38, %v523
  %v525 = vsel %vm522, %v524, %v520
  %v526 = vmul.f32 1.0, %v525
  %vm527 = vcmask 1024
  %528 = vst.msk [vmem:[%s6] sm:$0x3] %vm527, %v526
  // Predicated region
  $region26: #{_lambda_.7} parent=0 // pred_check
    _
  $region27: #{_lambda_.7} parent=0 // pred_check_branch
    %530 = sbr.rel (0) target = $region29
  $region28: #{_lambda_.7} parent=0 // pred_region
    _
  $region29: #{_lambda_.7} parent=0 // pred_fallthru
    _
  // Predicated region
  $region30: #{_lambda_.7} parent=0 // pred_check
    _
  $region31: #{_lambda_.7} parent=0 // pred_check_branch
    %532 = sbr.rel (0) target = $region33
  $region32: #{_lambda_.7} parent=0 // pred_region
    _
  $region33: #{_lambda_.7} parent=0 // pred_fallthru
    _

</llo_original>
